<compile_context>
chip_gen: v7x
topology: tpu7x:2x2x1
jax: 0.10.0
libtpu: 0.0.40
codegen_flags: <defaults>
</compile_context>

<pallas_src>
import functools

import numpy as np
import jax
import jax.numpy as jnp
from jax.experimental import pallas as pl
from jax.experimental.pallas import tpu as pltpu

H = 7
W = 7
CIN = 3
C1 = 16
C2 = 32
HID = 128
HEAD_OUT = 128  # lane-dense padded width for [logits | value]


def _round_up(x, m):
    return (x + m - 1) // m * m


# ----------------------------- boundary masks --------------------------------
def _build_masks(batch, mp, ppt):
    """Columns 0..8: conv tap-validity masks (same-padding boundaries, and zero
    for the padded positions p >= 49).  Columns 9..9+ppt-1: head lane-expansion
    masks selecting which 32-lane block of the replicated activation row is
    'live' (j == (row // batch) % ppt).  Rows are ordered r = (h*W + w)*batch + b."""
    m = np.zeros((mp, 9 + ppt), np.float32)
    for p in range(H * W):
        h, w = divmod(p, W)
        for k in range(9):
            dh, dw = k // 3 - 1, k % 3 - 1
            if 0 <= h + dh < H and 0 <= w + dw < W:
                for b in range(batch):
                    m[p * batch + b, k] = 1.0
    for r in range(mp):
        j = (r // batch) % ppt
        m[r, 9 + j] = 1.0
    return m


# ------------------------------- kernel --------------------------------------
def _actor_critic_kernel(x_ref, m_ref, w1_ref, b1_ref, w2_ref, b2_ref,
                         wh1_ref, bh1_ref, wh2_ref, bh2_ref,
                         out_ref, shift_ref, rep_ref, *, batch, mp, pad, ppt):
    f32 = jnp.float32
    ncols = 9 * C2                                   # shift-scratch width (288)

    # Zero only the halo rows of the shift scratch; body rows are fully
    # overwritten by the stores below.
    shift_ref[0:pad, :] = jnp.zeros((pad, ncols), f32)
    shift_ref[pad + mp:pad + mp + pad, :] = jnp.zeros((pad, ncols), f32)

    # Row shift (in activation rows) of tap k = kh*3 + kw.
    shifts = [(dh * W + dw) * batch for dh in (-1, 0, 1) for dw in (-1, 0, 1)]

    # ---- conv1: one batched MXU matmul (mp,3)@(3,144), then 9 shifted,
    #      boundary-masked tap accumulations off the zero-haloed scratch. ----
    xw = jnp.dot(x_ref[...], w1_ref[...], preferred_element_type=f32)     # (mp, 144)
    shift_ref[pad:pad + mp, 0:9 * C1] = xw
    h1 = jnp.zeros((mp, C1), f32)
    for k, s in enumerate(shifts):
        blk = shift_ref[pad + s:pad + s + mp, k * C1:(k + 1) * C1]        # (mp, 16)
        h1 = h1 + m_ref[:, k:k + 1] * blk
    h1 = jnp.maximum(h1 + b1_ref[...], 0.0)

    # ---- conv2: (mp,16)@(16,288), same shift/mask accumulation ----
    hw = jnp.dot(h1, w2_ref[...], preferred_element_type=f32)             # (mp, 288)
    shift_ref[pad:pad + mp, :] = hw
    h2 = jnp.zeros((mp, C2), f32)
    for k, s in enumerate(shifts):
        blk = shift_ref[pad + s:pad + s + mp, k * C2:(k + 1) * C2]        # (mp, 32)
        h2 = h2 + m_ref[:, k:k + 1] * blk
    h2 = jnp.maximum(h2 + b2_ref[...], 0.0)                               # (mp, 32)

    # ---- fused actor/critic head-1, flatten folded into the matmul ----
    # Replicate h2 across ppt 32-lane blocks (aligned stores), selecting per row
    # the block that matches its position-within-8-row-tile; then each aligned
    # (8, ppt*32) tile contracts against the matching 128 rows of the permuted,
    # zero-padded head weight.  Padded positions hit all-zero weight rows.
    for j in range(ppt):
        rep_ref[:, j * C2:(j + 1) * C2] = h2 * m_ref[:, 9 + j:10 + j]
    lhs = rep_ref[...].astype(jnp.bfloat16)                               # (mp, ppt*32)
    acc = jnp.zeros((8, 2 * HID), jnp.float32)
    for g in range(mp // 8):
        acc = acc + jnp.dot(lhs[8 * g:8 * (g + 1), :],
                            wh1_ref[ppt * C2 * g:ppt * C2 * (g + 1), :],
                            preferred_element_type=f32)
    # Reduce the per-position-offset row pairs down to the real batch rows.
    hidden = acc[0:batch, :]
    for j in range(1, ppt):
        hidden = hidden + acc[j * batch:(j + 1) * batch, :]
    hidden = jnp.maximum(hidden + bh1_ref[...], 0.0)                      # (batch, 256)

    # ---- head-2: block-diagonal [w_a2 | w_c2], bf16, lane-dense 128 output ----
    out = jnp.dot(hidden.astype(jnp.bfloat16), wh2_ref[...],
                  preferred_element_type=f32) + bh2_ref[...]              # (batch, 128)
    out_ref[...] = out


def _full_block(shape):
    ndim = len(shape)
    return pl.BlockSpec(shape, lambda *_, _nd=ndim: (0,) * _nd)


def fused_forward_pallas(kp, x2d, *, batch, mp, pad, ppt, flops, bytes_accessed):
    kernel = functools.partial(_actor_critic_kernel,
                               batch=batch, mp=mp, pad=pad, ppt=ppt)
    return pl.pallas_call(
        kernel,
        out_shape=jax.ShapeDtypeStruct((batch, HEAD_OUT), jnp.float32),
        grid=(1,),
        in_specs=[
            _full_block((mp, CIN)),                        # x rows (h,w,b)
            _full_block((mp, 9 + ppt)),                    # tap + head masks
            _full_block((CIN, 9 * C1)),                    # conv1 weight (batched taps)
            _full_block((1, C1)),                          # conv1 bias
            _full_block((C1, 9 * C2)),                     # conv2 weight (batched taps)
            _full_block((1, C2)),                          # conv2 bias
            _full_block(((mp // batch) * C2, 2 * HID)),    # fused head-1 weight (bf16)
            _full_block((1, 2 * HID)),                     # fused head-1 bias
            _full_block((2 * HID, HEAD_OUT)),              # fused head-2 weight (bf16)
            _full_block((1, HEAD_OUT)),                    # fused head-2 bias
        ],
        out_specs=_full_block((batch, HEAD_OUT)),
        scratch_shapes=[
            pltpu.VMEM((mp + 2 * pad, 9 * C2), jnp.float32),   # zero-haloed tap scratch
            pltpu.VMEM((mp, ppt * C2), jnp.float32),           # lane-expanded activation
        ],
        compiler_params=pltpu.CompilerParams(
            dimension_semantics=("arbitrary",),
            vmem_limit_bytes=8 * 1024 * 1024,
        ),
        cost_estimate=pl.CostEstimate(
            flops=flops, transcendentals=0, bytes_accessed=bytes_accessed),
    )(x2d, kp["masks"], kp["w_conv1"], kp["b_conv1"], kp["w_conv2"], kp["b_conv2"],
      kp["w_h1"], kp["b_h1"], kp["w_h2"], kp["b_h2"])


# ----------------------------- parameters ------------------------------------
def init_params(key, n_actions=5):
    """PyTorch-equivalent parameters (conv weights in im2col layout
    (kh, kw, cin) x cout; head-1 rows in the NCHW flatten order c*49 + p)."""
    ks = jax.random.split(key, 12)

    def u(k, shape, fan_in):
        bound = 1.0 / jnp.sqrt(fan_in)
        return jax.random.uniform(k, shape, jnp.float32, -bound, bound)

    return {
        "w_conv1": u(ks[0], (9 * CIN, C1), 9 * CIN),
        "b_conv1": u(ks[1], (C1,), 9 * CIN),
        "w_conv2": u(ks[2], (9 * C1, C2), 9 * C1),
        "b_conv2": u(ks[3], (C2,), 9 * C1),
        "w_a1": u(ks[4], (C2 * H * W, HID), C2 * H * W),
        "b_a1": u(ks[5], (HID,), C2 * H * W),
        "w_a2": u(ks[6], (HID, n_actions), HID),
        "b_a2": u(ks[7], (n_actions,), HID),
        "w_c1": u(ks[8], (C2 * H * W, HID), C2 * H * W),
        "b_c1": u(ks[9], (HID,), C2 * H * W),
        "w_c2": u(ks[10], (HID, 1), HID),
        "b_c2": u(ks[11], (1,), HID),
    }


def prepare_kernel_params(params, batch, n_actions):
    """One-time host-side repack: batch the 9 conv taps into one weight per
    layer, fuse actor/critic heads, permute head-1 rows from PyTorch's NCHW
    flatten order (c*49+p) to the kernel order (p*32+c) and zero-pad the padded
    positions, build the bf16 block-diagonal head-2, and precompute masks."""
    assert 8 % batch == 0, "8-row head grouping requires batch in {1,2,4,8}"
    assert n_actions + 1 <= HEAD_OUT
    mp = _round_up(H * W * batch, 8)
    ppt = 8 // batch
    p_pad = mp // batch
    conv_out = C2 * H * W

    w1all = (params["w_conv1"].reshape(9, CIN, C1)
             .transpose(1, 0, 2).reshape(CIN, 9 * C1))
    w2all = (params["w_conv2"].reshape(9, C1, C2)
             .transpose(1, 0, 2).reshape(C1, 9 * C2))

    w1cat = jnp.concatenate([params["w_a1"], params["w_c1"]], axis=1)     # (1568, 256)
    w1cat = (w1cat.reshape(C2, H * W, 2 * HID)
             .transpose(1, 0, 2)
             .reshape(conv_out, 2 * HID))                                 # rows p*32+c
    w1cat = jnp.pad(w1cat, ((0, (p_pad - H * W) * C2), (0, 0)))           # zero pad rows
    b1cat = jnp.concatenate([params["b_a1"], params["b_c1"]]).reshape(1, 2 * HID)

    w2blk = jnp.zeros((2 * HID, HEAD_OUT), jnp.float32)
    w2blk = w2blk.at[:HID, :n_actions].set(params["w_a2"])
    w2blk = w2blk.at[HID:, n_actions:n_actions + 1].set(params["w_c2"])
    b2blk = jnp.zeros((HEAD_OUT,), jnp.float32)
    b2blk = b2blk.at[:n_actions].set(params["b_a2"])
    b2blk = b2blk.at[n_actions:n_actions + 1].set(params["b_c2"])

    return {
        "masks": jnp.asarray(_build_masks(batch, mp, ppt)),
        "w_conv1": w1all,
        "b_conv1": params["b_conv1"].reshape(1, C1),
        "w_conv2": w2all,
        "b_conv2": params["b_conv2"].reshape(1, C2),
        "w_h1": w1cat.astype(jnp.bfloat16),
        "b_h1": b1cat,
        "w_h2": w2blk.astype(jnp.bfloat16),
        "b_h2": b2blk.reshape(1, HEAD_OUT),
    }


# ------------------------------- forward --------------------------------------
def actor_critic_forward(kp, x_nchw, *, n_actions):
    batch = x_nchw.shape[0]
    assert 8 % batch == 0
    mp = _round_up(H * W * batch, 8)
    ppt = 8 // batch
    pad = 8 * batch

    # NCHW -> rows ordered (h, w, b), channels last; zero-pad rows to mp.
    x2d = jnp.transpose(x_nchw.astype(jnp.float32), (2, 3, 0, 1))
    x2d = x2d.reshape(H * W * batch, CIN)
    x2d = jnp.pad(x2d, ((0, mp - H * W * batch), (0, 0)))

    flops = 2 * (mp * CIN * (9 * C1)
                 + mp * C1 * (9 * C2)
                 + mp * (ppt * C2) * (2 * HID)
                 + batch * (2 * HID) * HEAD_OUT)
    bytes_accessed = int(
        x2d.size * 4
        + sum(int(v.size) * v.dtype.itemsize for v in kp.values())
        + batch * HEAD_OUT * 4)

    out = fused_forward_pallas(kp, x2d, batch=batch, mp=mp, pad=pad, ppt=ppt,
                               flops=flops, bytes_accessed=bytes_accessed)
    logits = out[:, :n_actions]
    value = out[:, n_actions:n_actions + 1]
    return logits, value


# pure-jnp f32 reference mirroring the PyTorch module exactly
def reference_forward(params, x_nchw):
    x = jnp.transpose(x_nchw.astype(jnp.float32), (0, 2, 3, 1))           # NHWC
    B = x.shape[0]

    def conv(xh, w, b):
        xp = jnp.pad(xh, ((0, 0), (1, 1), (1, 1), (0, 0)))
        cols = jnp.concatenate(
            [xp[:, i:i + H, j:j + W, :] for i in range(3) for j in range(3)],
            axis=-1)
        out = cols.reshape(B * H * W, -1) @ w + b
        return jnp.maximum(out, 0.0).reshape(B, H, W, -1)

    h = conv(x, params["w_conv1"], params["b_conv1"])
    h = conv(h, params["w_conv2"], params["b_conv2"])
    flat = jnp.transpose(h, (0, 3, 1, 2)).reshape(B, -1)                  # NCHW flatten
    a = jnp.maximum(flat @ params["w_a1"] + params["b_a1"], 0.0)
    logits = a @ params["w_a2"] + params["b_a2"]
    c = jnp.maximum(flat @ params["w_c1"] + params["b_c1"], 0.0)
    value = c @ params["w_c2"] + params["b_c2"]
    return logits, value


if __name__ == "__main__":
    key = jax.random.PRNGKey(0)
    k_param, k_x = jax.random.split(key)
    n_actions = 5

    params = init_params(k_param, n_actions=n_actions)
    x = jax.random.normal(k_x, (2, 3, 7, 7), jnp.float32)                 # (B, C, H, W)

    kparams = prepare_kernel_params(params, batch=x.shape[0], n_actions=n_actions)
    fwd = jax.jit(functools.partial(actor_critic_forward, n_actions=n_actions))

    logits, value = fwd(kparams, x)
    logits = jax.block_until_ready(logits)
    value = jax.block_until_ready(value)

    ref_logits, ref_value = reference_forward(params, x)
    assert logits.shape == (2, n_actions) and value.shape == (2, 1)
    # Both head matmuls run with bf16 operands (f32 MXU accumulation) -> compare
    # against the pure-f32 reference with a correspondingly loosened tolerance.
    assert jnp.allclose(logits, ref_logits, atol=3e-2, rtol=3e-2), (
        float(jnp.max(jnp.abs(logits - ref_logits))))
    assert jnp.allclose(value, ref_value, atol=3e-2, rtol=3e-2), (
        float(jnp.max(jnp.abs(value - ref_value))))

    print("KERNEL_OK")
</pallas_src>

<mosaic_0001>
module attributes {stable_mosaic.version = 11 : i64} {
  func.func @_actor_critic_kernel(%arg0: i32, %arg1: memref<104x3xf32, #tpu.memory_space<vmem>>, %arg2: memref<104x13xf32, #tpu.memory_space<vmem>>, %arg3: memref<3x144xf32, #tpu.memory_space<vmem>>, %arg4: memref<1x16xf32, #tpu.memory_space<vmem>>, %arg5: memref<16x288xf32, #tpu.memory_space<vmem>>, %arg6: memref<1x32xf32, #tpu.memory_space<vmem>>, %arg7: memref<1664x256xbf16, #tpu.memory_space<vmem>>, %arg8: memref<1x256xf32, #tpu.memory_space<vmem>>, %arg9: memref<256x128xbf16, #tpu.memory_space<vmem>>, %arg10: memref<1x128xf32, #tpu.memory_space<vmem>>, %arg11: memref<2x128xf32, #tpu.memory_space<vmem>>, %arg12: memref<136x288xf32, #tpu.memory_space<vmem>>, %arg13: memref<104x128xf32, #tpu.memory_space<vmem>>) attributes {dimension_semantics = [#tpu.dimension_semantics<arbitrary>], iteration_bounds = array<i64: 1>, scalar_prefetch = 0 : i64, scratch_operands = 2 : i64, tpu.core_type = #tpu.core_type<tc>, window_params = [{pipeline_mode = #tpu.pipeline_mode<synchronous>, transform_indices = @transform_0, window_bounds = array<i64: 104, 3>}, {pipeline_mode = #tpu.pipeline_mode<synchronous>, transform_indices = @transform_1, window_bounds = array<i64: 104, 13>}, {pipeline_mode = #tpu.pipeline_mode<synchronous>, transform_indices = @transform_2, window_bounds = array<i64: 3, 144>}, {pipeline_mode = #tpu.pipeline_mode<synchronous>, transform_indices = @transform_3, window_bounds = array<i64: 1, 16>}, {pipeline_mode = #tpu.pipeline_mode<synchronous>, transform_indices = @transform_4, window_bounds = array<i64: 16, 288>}, {pipeline_mode = #tpu.pipeline_mode<synchronous>, transform_indices = @transform_5, window_bounds = array<i64: 1, 32>}, {pipeline_mode = #tpu.pipeline_mode<synchronous>, transform_indices = @transform_6, window_bounds = array<i64: 1664, 256>}, {pipeline_mode = #tpu.pipeline_mode<synchronous>, transform_indices = @transform_7, window_bounds = array<i64: 1, 256>}, {pipeline_mode = #tpu.pipeline_mode<synchronous>, transform_indices = @transform_8, window_bounds = array<i64: 256, 128>}, {pipeline_mode = #tpu.pipeline_mode<synchronous>, transform_indices = @transform_9, window_bounds = array<i64: 1, 128>}, {pipeline_mode = #tpu.pipeline_mode<synchronous>, transform_indices = @transform_10, window_bounds = array<i64: 2, 128>}]} {
    %cst = arith.constant 0.000000e+00 : f32
    %0 = vector.broadcast %cst : f32 to vector<16x288xf32>
    %c0 = arith.constant 0 : index
    %c0_0 = arith.constant 0 : index
    %1 = vector.load %arg12[%c0, %c0_0] : memref<136x288xf32, #tpu.memory_space<vmem>>, vector<16x288xf32>
    tpu.vector_store %arg12[%c0, %c0_0], %0 {strides = array<i32>} : memref<136x288xf32, #tpu.memory_space<vmem>>, vector<16x288xf32>,
    %cst_1 = arith.constant 0.000000e+00 : f32
    %2 = vector.broadcast %cst_1 : f32 to vector<16x288xf32>
    %c120 = arith.constant 120 : index
    %c0_2 = arith.constant 0 : index
    %3 = vector.load %arg12[%c120, %c0_2] : memref<136x288xf32, #tpu.memory_space<vmem>>, vector<16x288xf32>
    tpu.vector_store %arg12[%c120, %c0_2], %2 {strides = array<i32>} : memref<136x288xf32, #tpu.memory_space<vmem>>, vector<16x288xf32>,
    %c0_3 = arith.constant 0 : index
    %c0_4 = arith.constant 0 : index
    %4 = vector.load %arg1[%c0_3, %c0_4] : memref<104x3xf32, #tpu.memory_space<vmem>>, vector<104x3xf32>
    %c0_5 = arith.constant 0 : index
    %c0_6 = arith.constant 0 : index
    %5 = vector.load %arg3[%c0_5, %c0_6] : memref<3x144xf32, #tpu.memory_space<vmem>>, vector<3x144xf32>
    %cst_7 = arith.constant dense<0.000000e+00> : vector<104x144xf32>
    %6 = tpu.matmul %4, %5, %cst_7 {dimension_numbers = #tpu.dot_dimension_numbers<[1], [0], [0], [1], [0, 0, 1, 1], [], []>} : vector<104x3xf32>, vector<3x144xf32>, vector<104x144xf32> -> vector<104x144xf32>
    %c16 = arith.constant 16 : index
    %c0_8 = arith.constant 0 : index
    %7 = vector.load %arg12[%c16, %c0_8] : memref<136x288xf32, #tpu.memory_space<vmem>>, vector<104x144xf32>
    tpu.vector_store %arg12[%c16, %c0_8], %6 {strides = array<i32>} : memref<136x288xf32, #tpu.memory_space<vmem>>, vector<104x144xf32>,
    %cst_9 = arith.constant 0.000000e+00 : f32
    %8 = vector.broadcast %cst_9 : f32 to vector<104x16xf32>
    %c0_10 = arith.constant 0 : index
    %c0_11 = arith.constant 0 : index
    %9 = vector.load %arg12[%c0_10, %c0_11] : memref<136x288xf32, #tpu.memory_space<vmem>>, vector<104x16xf32>
    %c0_12 = arith.constant 0 : index
    %c0_13 = arith.constant 0 : index
    %10 = vector.load %arg2[%c0_12, %c0_13] : memref<104x13xf32, #tpu.memory_space<vmem>>, vector<104x1xf32>
    %11 = vector.broadcast %10 : vector<104x1xf32> to vector<104x16xf32>
    %12 = arith.mulf %11, %9 : vector<104x16xf32>
    %13 = arith.addf %8, %12 : vector<104x16xf32>
    %c2 = arith.constant 2 : index
    %c16_14 = arith.constant 16 : index
    %14 = vector.load %arg12[%c2, %c16_14] : memref<136x288xf32, #tpu.memory_space<vmem>>, vector<104x16xf32>
    %c0_15 = arith.constant 0 : index
    %c1 = arith.constant 1 : index
    %15 = vector.load %arg2[%c0_15, %c1] : memref<104x13xf32, #tpu.memory_space<vmem>>, vector<104x1xf32>
    %16 = vector.broadcast %15 : vector<104x1xf32> to vector<104x16xf32>
    %17 = arith.mulf %16, %14 : vector<104x16xf32>
    %18 = arith.addf %13, %17 : vector<104x16xf32>
    %c4 = arith.constant 4 : index
    %c32 = arith.constant 32 : index
    %19 = vector.load %arg12[%c4, %c32] : memref<136x288xf32, #tpu.memory_space<vmem>>, vector<104x16xf32>
    %c0_16 = arith.constant 0 : index
    %c2_17 = arith.constant 2 : index
    %20 = vector.load %arg2[%c0_16, %c2_17] : memref<104x13xf32, #tpu.memory_space<vmem>>, vector<104x1xf32>
    %21 = vector.broadcast %20 : vector<104x1xf32> to vector<104x16xf32>
    %22 = arith.mulf %21, %19 : vector<104x16xf32>
    %23 = arith.addf %18, %22 : vector<104x16xf32>
    %c14 = arith.constant 14 : index
    %c48 = arith.constant 48 : index
    %24 = vector.load %arg12[%c14, %c48] : memref<136x288xf32, #tpu.memory_space<vmem>>, vector<104x16xf32>
    %c0_18 = arith.constant 0 : index
    %c3 = arith.constant 3 : index
    %25 = vector.load %arg2[%c0_18, %c3] : memref<104x13xf32, #tpu.memory_space<vmem>>, vector<104x1xf32>
    %26 = vector.broadcast %25 : vector<104x1xf32> to vector<104x16xf32>
    %27 = arith.mulf %26, %24 : vector<104x16xf32>
    %28 = arith.addf %23, %27 : vector<104x16xf32>
    %c16_19 = arith.constant 16 : index
    %c64 = arith.constant 64 : index
    %29 = vector.load %arg12[%c16_19, %c64] : memref<136x288xf32, #tpu.memory_space<vmem>>, vector<104x16xf32>
    %c0_20 = arith.constant 0 : index
    %c4_21 = arith.constant 4 : index
    %30 = vector.load %arg2[%c0_20, %c4_21] : memref<104x13xf32, #tpu.memory_space<vmem>>, vector<104x1xf32>
    %31 = vector.broadcast %30 : vector<104x1xf32> to vector<104x16xf32>
    %32 = arith.mulf %31, %29 : vector<104x16xf32>
    %33 = arith.addf %28, %32 : vector<104x16xf32>
    %c18 = arith.constant 18 : index
    %c80 = arith.constant 80 : index
    %34 = vector.load %arg12[%c18, %c80] : memref<136x288xf32, #tpu.memory_space<vmem>>, vector<104x16xf32>
    %c0_22 = arith.constant 0 : index
    %c5 = arith.constant 5 : index
    %35 = vector.load %arg2[%c0_22, %c5] : memref<104x13xf32, #tpu.memory_space<vmem>>, vector<104x1xf32>
    %36 = vector.broadcast %35 : vector<104x1xf32> to vector<104x16xf32>
    %37 = arith.mulf %36, %34 : vector<104x16xf32>
    %38 = arith.addf %33, %37 : vector<104x16xf32>
    %c28 = arith.constant 28 : index
    %c96 = arith.constant 96 : index
    %39 = vector.load %arg12[%c28, %c96] : memref<136x288xf32, #tpu.memory_space<vmem>>, vector<104x16xf32>
    %c0_23 = arith.constant 0 : index
    %c6 = arith.constant 6 : index
    %40 = vector.load %arg2[%c0_23, %c6] : memref<104x13xf32, #tpu.memory_space<vmem>>, vector<104x1xf32>
    %41 = vector.broadcast %40 : vector<104x1xf32> to vector<104x16xf32>
    %42 = arith.mulf %41, %39 : vector<104x16xf32>
    %43 = arith.addf %38, %42 : vector<104x16xf32>
    %c30 = arith.constant 30 : index
    %c112 = arith.constant 112 : index
    %44 = vector.load %arg12[%c30, %c112] : memref<136x288xf32, #tpu.memory_space<vmem>>, vector<104x16xf32>
    %c0_24 = arith.constant 0 : index
    %c7 = arith.constant 7 : index
    %45 = vector.load %arg2[%c0_24, %c7] : memref<104x13xf32, #tpu.memory_space<vmem>>, vector<104x1xf32>
    %46 = vector.broadcast %45 : vector<104x1xf32> to vector<104x16xf32>
    %47 = arith.mulf %46, %44 : vector<104x16xf32>
    %48 = arith.addf %43, %47 : vector<104x16xf32>
    %c32_25 = arith.constant 32 : index
    %c128 = arith.constant 128 : index
    %49 = vector.load %arg12[%c32_25, %c128] : memref<136x288xf32, #tpu.memory_space<vmem>>, vector<104x16xf32>
    %c0_26 = arith.constant 0 : index
    %c8 = arith.constant 8 : index
    %50 = vector.load %arg2[%c0_26, %c8] : memref<104x13xf32, #tpu.memory_space<vmem>>, vector<104x1xf32>
    %51 = vector.broadcast %50 : vector<104x1xf32> to vector<104x16xf32>
    %52 = arith.mulf %51, %49 : vector<104x16xf32>
    %53 = arith.addf %48, %52 : vector<104x16xf32>
    %c0_27 = arith.constant 0 : index
    %c0_28 = arith.constant 0 : index
    %54 = vector.load %arg4[%c0_27, %c0_28] : memref<1x16xf32, #tpu.memory_space<vmem>>, vector<1x16xf32>
    %55 = vector.broadcast %54 : vector<1x16xf32> to vector<104x16xf32>
    %56 = arith.addf %53, %55 : vector<104x16xf32>
    %cst_29 = arith.constant 0.000000e+00 : f32
    %57 = vector.broadcast %cst_29 : f32 to vector<104x16xf32>
    %58 = arith.maximumf %56, %57 : vector<104x16xf32>
    %c0_30 = arith.constant 0 : index
    %c0_31 = arith.constant 0 : index
    %59 = vector.load %arg5[%c0_30, %c0_31] : memref<16x288xf32, #tpu.memory_space<vmem>>, vector<16x288xf32>
    %cst_32 = arith.constant dense<0.000000e+00> : vector<104x288xf32>
    %60 = tpu.matmul %58, %59, %cst_32 {dimension_numbers = #tpu.dot_dimension_numbers<[1], [0], [0], [1], [0, 0, 1, 1], [], []>} : vector<104x16xf32>, vector<16x288xf32>, vector<104x288xf32> -> vector<104x288xf32>
    %c16_33 = arith.constant 16 : index
    %c0_34 = arith.constant 0 : index
    %61 = vector.load %arg12[%c16_33, %c0_34] : memref<136x288xf32, #tpu.memory_space<vmem>>, vector<104x288xf32>
    tpu.vector_store %arg12[%c16_33, %c0_34], %60 {strides = array<i32>} : memref<136x288xf32, #tpu.memory_space<vmem>>, vector<104x288xf32>,
    %cst_35 = arith.constant 0.000000e+00 : f32
    %62 = vector.broadcast %cst_35 : f32 to vector<104x32xf32>
    %c0_36 = arith.constant 0 : index
    %c0_37 = arith.constant 0 : index
    %63 = vector.load %arg12[%c0_36, %c0_37] : memref<136x288xf32, #tpu.memory_space<vmem>>, vector<104x32xf32>
    %c0_38 = arith.constant 0 : index
    %c0_39 = arith.constant 0 : index
    %64 = vector.load %arg2[%c0_38, %c0_39] : memref<104x13xf32, #tpu.memory_space<vmem>>, vector<104x1xf32>
    %65 = vector.broadcast %64 : vector<104x1xf32> to vector<104x32xf32>
    %66 = arith.mulf %65, %63 : vector<104x32xf32>
    %67 = arith.addf %62, %66 : vector<104x32xf32>
    %c2_40 = arith.constant 2 : index
    %c32_41 = arith.constant 32 : index
    %68 = vector.load %arg12[%c2_40, %c32_41] : memref<136x288xf32, #tpu.memory_space<vmem>>, vector<104x32xf32>
    %c0_42 = arith.constant 0 : index
    %c1_43 = arith.constant 1 : index
    %69 = vector.load %arg2[%c0_42, %c1_43] : memref<104x13xf32, #tpu.memory_space<vmem>>, vector<104x1xf32>
    %70 = vector.broadcast %69 : vector<104x1xf32> to vector<104x32xf32>
    %71 = arith.mulf %70, %68 : vector<104x32xf32>
    %72 = arith.addf %67, %71 : vector<104x32xf32>
    %c4_44 = arith.constant 4 : index
    %c64_45 = arith.constant 64 : index
    %73 = vector.load %arg12[%c4_44, %c64_45] : memref<136x288xf32, #tpu.memory_space<vmem>>, vector<104x32xf32>
    %c0_46 = arith.constant 0 : index
    %c2_47 = arith.constant 2 : index
    %74 = vector.load %arg2[%c0_46, %c2_47] : memref<104x13xf32, #tpu.memory_space<vmem>>, vector<104x1xf32>
    %75 = vector.broadcast %74 : vector<104x1xf32> to vector<104x32xf32>
    %76 = arith.mulf %75, %73 : vector<104x32xf32>
    %77 = arith.addf %72, %76 : vector<104x32xf32>
    %c14_48 = arith.constant 14 : index
    %c96_49 = arith.constant 96 : index
    %78 = vector.load %arg12[%c14_48, %c96_49] : memref<136x288xf32, #tpu.memory_space<vmem>>, vector<104x32xf32>
    %c0_50 = arith.constant 0 : index
    %c3_51 = arith.constant 3 : index
    %79 = vector.load %arg2[%c0_50, %c3_51] : memref<104x13xf32, #tpu.memory_space<vmem>>, vector<104x1xf32>
    %80 = vector.broadcast %79 : vector<104x1xf32> to vector<104x32xf32>
    %81 = arith.mulf %80, %78 : vector<104x32xf32>
    %82 = arith.addf %77, %81 : vector<104x32xf32>
    %c16_52 = arith.constant 16 : index
    %c128_53 = arith.constant 128 : index
    %83 = vector.load %arg12[%c16_52, %c128_53] : memref<136x288xf32, #tpu.memory_space<vmem>>, vector<104x32xf32>
    %c0_54 = arith.constant 0 : index
    %c4_55 = arith.constant 4 : index
    %84 = vector.load %arg2[%c0_54, %c4_55] : memref<104x13xf32, #tpu.memory_space<vmem>>, vector<104x1xf32>
    %85 = vector.broadcast %84 : vector<104x1xf32> to vector<104x32xf32>
    %86 = arith.mulf %85, %83 : vector<104x32xf32>
    %87 = arith.addf %82, %86 : vector<104x32xf32>
    %c18_56 = arith.constant 18 : index
    %c160 = arith.constant 160 : index
    %88 = vector.load %arg12[%c18_56, %c160] : memref<136x288xf32, #tpu.memory_space<vmem>>, vector<104x32xf32>
    %c0_57 = arith.constant 0 : index
    %c5_58 = arith.constant 5 : index
    %89 = vector.load %arg2[%c0_57, %c5_58] : memref<104x13xf32, #tpu.memory_space<vmem>>, vector<104x1xf32>
    %90 = vector.broadcast %89 : vector<104x1xf32> to vector<104x32xf32>
    %91 = arith.mulf %90, %88 : vector<104x32xf32>
    %92 = arith.addf %87, %91 : vector<104x32xf32>
    %c28_59 = arith.constant 28 : index
    %c192 = arith.constant 192 : index
    %93 = vector.load %arg12[%c28_59, %c192] : memref<136x288xf32, #tpu.memory_space<vmem>>, vector<104x32xf32>
    %c0_60 = arith.constant 0 : index
    %c6_61 = arith.constant 6 : index
    %94 = vector.load %arg2[%c0_60, %c6_61] : memref<104x13xf32, #tpu.memory_space<vmem>>, vector<104x1xf32>
    %95 = vector.broadcast %94 : vector<104x1xf32> to vector<104x32xf32>
    %96 = arith.mulf %95, %93 : vector<104x32xf32>
    %97 = arith.addf %92, %96 : vector<104x32xf32>
    %c30_62 = arith.constant 30 : index
    %c224 = arith.constant 224 : index
    %98 = vector.load %arg12[%c30_62, %c224] : memref<136x288xf32, #tpu.memory_space<vmem>>, vector<104x32xf32>
    %c0_63 = arith.constant 0 : index
    %c7_64 = arith.constant 7 : index
    %99 = vector.load %arg2[%c0_63, %c7_64] : memref<104x13xf32, #tpu.memory_space<vmem>>, vector<104x1xf32>
    %100 = vector.broadcast %99 : vector<104x1xf32> to vector<104x32xf32>
    %101 = arith.mulf %100, %98 : vector<104x32xf32>
    %102 = arith.addf %97, %101 : vector<104x32xf32>
    %c32_65 = arith.constant 32 : index
    %c256 = arith.constant 256 : index
    %103 = vector.load %arg12[%c32_65, %c256] : memref<136x288xf32, #tpu.memory_space<vmem>>, vector<104x32xf32>
    %c0_66 = arith.constant 0 : index
    %c8_67 = arith.constant 8 : index
    %104 = vector.load %arg2[%c0_66, %c8_67] : memref<104x13xf32, #tpu.memory_space<vmem>>, vector<104x1xf32>
    %105 = vector.broadcast %104 : vector<104x1xf32> to vector<104x32xf32>
    %106 = arith.mulf %105, %103 : vector<104x32xf32>
    %107 = arith.addf %102, %106 : vector<104x32xf32>
    %c0_68 = arith.constant 0 : index
    %c0_69 = arith.constant 0 : index
    %108 = vector.load %arg6[%c0_68, %c0_69] : memref<1x32xf32, #tpu.memory_space<vmem>>, vector<1x32xf32>
    %109 = vector.broadcast %108 : vector<1x32xf32> to vector<104x32xf32>
    %110 = arith.addf %107, %109 : vector<104x32xf32>
    %cst_70 = arith.constant 0.000000e+00 : f32
    %111 = vector.broadcast %cst_70 : f32 to vector<104x32xf32>
    %112 = arith.maximumf %110, %111 : vector<104x32xf32>
    %c0_71 = arith.constant 0 : index
    %c9 = arith.constant 9 : index
    %113 = vector.load %arg2[%c0_71, %c9] : memref<104x13xf32, #tpu.memory_space<vmem>>, vector<104x1xf32>
    %114 = vector.broadcast %113 : vector<104x1xf32> to vector<104x32xf32>
    %115 = arith.mulf %112, %114 : vector<104x32xf32>
    %c0_72 = arith.constant 0 : index
    %c0_73 = arith.constant 0 : index
    %116 = vector.load %arg13[%c0_72, %c0_73] : memref<104x128xf32, #tpu.memory_space<vmem>>, vector<104x32xf32>
    tpu.vector_store %arg13[%c0_72, %c0_73], %115 {strides = array<i32>} : memref<104x128xf32, #tpu.memory_space<vmem>>, vector<104x32xf32>,
    %c0_74 = arith.constant 0 : index
    %c10 = arith.constant 10 : index
    %117 = vector.load %arg2[%c0_74, %c10] : memref<104x13xf32, #tpu.memory_space<vmem>>, vector<104x1xf32>
    %118 = vector.broadcast %117 : vector<104x1xf32> to vector<104x32xf32>
    %119 = arith.mulf %112, %118 : vector<104x32xf32>
    %c0_75 = arith.constant 0 : index
    %c32_76 = arith.constant 32 : index
    %120 = vector.load %arg13[%c0_75, %c32_76] : memref<104x128xf32, #tpu.memory_space<vmem>>, vector<104x32xf32>
    tpu.vector_store %arg13[%c0_75, %c32_76], %119 {strides = array<i32>} : memref<104x128xf32, #tpu.memory_space<vmem>>, vector<104x32xf32>,
    %c0_77 = arith.constant 0 : index
    %c11 = arith.constant 11 : index
    %121 = vector.load %arg2[%c0_77, %c11] : memref<104x13xf32, #tpu.memory_space<vmem>>, vector<104x1xf32>
    %122 = vector.broadcast %121 : vector<104x1xf32> to vector<104x32xf32>
    %123 = arith.mulf %112, %122 : vector<104x32xf32>
    %c0_78 = arith.constant 0 : index
    %c64_79 = arith.constant 64 : index
    %124 = vector.load %arg13[%c0_78, %c64_79] : memref<104x128xf32, #tpu.memory_space<vmem>>, vector<104x32xf32>
    tpu.vector_store %arg13[%c0_78, %c64_79], %123 {strides = array<i32>} : memref<104x128xf32, #tpu.memory_space<vmem>>, vector<104x32xf32>,
    %c0_80 = arith.constant 0 : index
    %c12 = arith.constant 12 : index
    %125 = vector.load %arg2[%c0_80, %c12] : memref<104x13xf32, #tpu.memory_space<vmem>>, vector<104x1xf32>
    %126 = vector.broadcast %125 : vector<104x1xf32> to vector<104x32xf32>
    %127 = arith.mulf %112, %126 : vector<104x32xf32>
    %c0_81 = arith.constant 0 : index
    %c96_82 = arith.constant 96 : index
    %128 = vector.load %arg13[%c0_81, %c96_82] : memref<104x128xf32, #tpu.memory_space<vmem>>, vector<104x32xf32>
    tpu.vector_store %arg13[%c0_81, %c96_82], %127 {strides = array<i32>} : memref<104x128xf32, #tpu.memory_space<vmem>>, vector<104x32xf32>,
    %c0_83 = arith.constant 0 : index
    %c0_84 = arith.constant 0 : index
    %129 = vector.load %arg13[%c0_83, %c0_84] : memref<104x128xf32, #tpu.memory_space<vmem>>, vector<104x128xf32>
    %130 = arith.truncf %129 : vector<104x128xf32> to vector<104x128xbf16>
    %cst_85 = arith.constant 0.000000e+00 : f32
    %131 = vector.broadcast %cst_85 : f32 to vector<8x256xf32>
    %132 = vector.extract_strided_slice %130 {offsets = [0, 0], sizes = [8, 128], strides = [1, 1]} : vector<104x128xbf16> to vector<8x128xbf16>
    %c0_86 = arith.constant 0 : index
    %c0_87 = arith.constant 0 : index
    %133 = vector.load %arg7[%c0_86, %c0_87] : memref<1664x256xbf16, #tpu.memory_space<vmem>>, vector<128x256xbf16>
    %cst_88 = arith.constant dense<0.000000e+00> : vector<8x256xf32>
    %134 = tpu.matmul %132, %133, %cst_88 {dimension_numbers = #tpu.dot_dimension_numbers<[1], [0], [0], [1], [0, 0, 1, 1], [], []>} : vector<8x128xbf16>, vector<128x256xbf16>, vector<8x256xf32> -> vector<8x256xf32>
    %135 = arith.addf %131, %134 : vector<8x256xf32>
    %136 = vector.extract_strided_slice %130 {offsets = [8, 0], sizes = [8, 128], strides = [1, 1]} : vector<104x128xbf16> to vector<8x128xbf16>
    %c128_89 = arith.constant 128 : index
    %c0_90 = arith.constant 0 : index
    %137 = vector.load %arg7[%c128_89, %c0_90] : memref<1664x256xbf16, #tpu.memory_space<vmem>>, vector<128x256xbf16>
    %cst_91 = arith.constant dense<0.000000e+00> : vector<8x256xf32>
    %138 = tpu.matmul %136, %137, %cst_91 {dimension_numbers = #tpu.dot_dimension_numbers<[1], [0], [0], [1], [0, 0, 1, 1], [], []>} : vector<8x128xbf16>, vector<128x256xbf16>, vector<8x256xf32> -> vector<8x256xf32>
    %139 = arith.addf %135, %138 : vector<8x256xf32>
    %140 = vector.extract_strided_slice %130 {offsets = [16, 0], sizes = [8, 128], strides = [1, 1]} : vector<104x128xbf16> to vector<8x128xbf16>
    %c256_92 = arith.constant 256 : index
    %c0_93 = arith.constant 0 : index
    %141 = vector.load %arg7[%c256_92, %c0_93] : memref<1664x256xbf16, #tpu.memory_space<vmem>>, vector<128x256xbf16>
    %cst_94 = arith.constant dense<0.000000e+00> : vector<8x256xf32>
    %142 = tpu.matmul %140, %141, %cst_94 {dimension_numbers = #tpu.dot_dimension_numbers<[1], [0], [0], [1], [0, 0, 1, 1], [], []>} : vector<8x128xbf16>, vector<128x256xbf16>, vector<8x256xf32> -> vector<8x256xf32>
    %143 = arith.addf %139, %142 : vector<8x256xf32>
    %144 = vector.extract_strided_slice %130 {offsets = [24, 0], sizes = [8, 128], strides = [1, 1]} : vector<104x128xbf16> to vector<8x128xbf16>
    %c384 = arith.constant 384 : index
    %c0_95 = arith.constant 0 : index
    %145 = vector.load %arg7[%c384, %c0_95] : memref<1664x256xbf16, #tpu.memory_space<vmem>>, vector<128x256xbf16>
    %cst_96 = arith.constant dense<0.000000e+00> : vector<8x256xf32>
    %146 = tpu.matmul %144, %145, %cst_96 {dimension_numbers = #tpu.dot_dimension_numbers<[1], [0], [0], [1], [0, 0, 1, 1], [], []>} : vector<8x128xbf16>, vector<128x256xbf16>, vector<8x256xf32> -> vector<8x256xf32>
    %147 = arith.addf %143, %146 : vector<8x256xf32>
    %148 = vector.extract_strided_slice %130 {offsets = [32, 0], sizes = [8, 128], strides = [1, 1]} : vector<104x128xbf16> to vector<8x128xbf16>
    %c512 = arith.constant 512 : index
    %c0_97 = arith.constant 0 : index
    %149 = vector.load %arg7[%c512, %c0_97] : memref<1664x256xbf16, #tpu.memory_space<vmem>>, vector<128x256xbf16>
    %cst_98 = arith.constant dense<0.000000e+00> : vector<8x256xf32>
    %150 = tpu.matmul %148, %149, %cst_98 {dimension_numbers = #tpu.dot_dimension_numbers<[1], [0], [0], [1], [0, 0, 1, 1], [], []>} : vector<8x128xbf16>, vector<128x256xbf16>, vector<8x256xf32> -> vector<8x256xf32>
    %151 = arith.addf %147, %150 : vector<8x256xf32>
    %152 = vector.extract_strided_slice %130 {offsets = [40, 0], sizes = [8, 128], strides = [1, 1]} : vector<104x128xbf16> to vector<8x128xbf16>
    %c640 = arith.constant 640 : index
    %c0_99 = arith.constant 0 : index
    %153 = vector.load %arg7[%c640, %c0_99] : memref<1664x256xbf16, #tpu.memory_space<vmem>>, vector<128x256xbf16>
    %cst_100 = arith.constant dense<0.000000e+00> : vector<8x256xf32>
    %154 = tpu.matmul %152, %153, %cst_100 {dimension_numbers = #tpu.dot_dimension_numbers<[1], [0], [0], [1], [0, 0, 1, 1], [], []>} : vector<8x128xbf16>, vector<128x256xbf16>, vector<8x256xf32> -> vector<8x256xf32>
    %155 = arith.addf %151, %154 : vector<8x256xf32>
    %156 = vector.extract_strided_slice %130 {offsets = [48, 0], sizes = [8, 128], strides = [1, 1]} : vector<104x128xbf16> to vector<8x128xbf16>
    %c768 = arith.constant 768 : index
    %c0_101 = arith.constant 0 : index
    %157 = vector.load %arg7[%c768, %c0_101] : memref<1664x256xbf16, #tpu.memory_space<vmem>>, vector<128x256xbf16>
    %cst_102 = arith.constant dense<0.000000e+00> : vector<8x256xf32>
    %158 = tpu.matmul %156, %157, %cst_102 {dimension_numbers = #tpu.dot_dimension_numbers<[1], [0], [0], [1], [0, 0, 1, 1], [], []>} : vector<8x128xbf16>, vector<128x256xbf16>, vector<8x256xf32> -> vector<8x256xf32>
    %159 = arith.addf %155, %158 : vector<8x256xf32>
    %160 = vector.extract_strided_slice %130 {offsets = [56, 0], sizes = [8, 128], strides = [1, 1]} : vector<104x128xbf16> to vector<8x128xbf16>
    %c896 = arith.constant 896 : index
    %c0_103 = arith.constant 0 : index
    %161 = vector.load %arg7[%c896, %c0_103] : memref<1664x256xbf16, #tpu.memory_space<vmem>>, vector<128x256xbf16>
    %cst_104 = arith.constant dense<0.000000e+00> : vector<8x256xf32>
    %162 = tpu.matmul %160, %161, %cst_104 {dimension_numbers = #tpu.dot_dimension_numbers<[1], [0], [0], [1], [0, 0, 1, 1], [], []>} : vector<8x128xbf16>, vector<128x256xbf16>, vector<8x256xf32> -> vector<8x256xf32>
    %163 = arith.addf %159, %162 : vector<8x256xf32>
    %164 = vector.extract_strided_slice %130 {offsets = [64, 0], sizes = [8, 128], strides = [1, 1]} : vector<104x128xbf16> to vector<8x128xbf16>
    %c1024 = arith.constant 1024 : index
    %c0_105 = arith.constant 0 : index
    %165 = vector.load %arg7[%c1024, %c0_105] : memref<1664x256xbf16, #tpu.memory_space<vmem>>, vector<128x256xbf16>
    %cst_106 = arith.constant dense<0.000000e+00> : vector<8x256xf32>
    %166 = tpu.matmul %164, %165, %cst_106 {dimension_numbers = #tpu.dot_dimension_numbers<[1], [0], [0], [1], [0, 0, 1, 1], [], []>} : vector<8x128xbf16>, vector<128x256xbf16>, vector<8x256xf32> -> vector<8x256xf32>
    %167 = arith.addf %163, %166 : vector<8x256xf32>
    %168 = vector.extract_strided_slice %130 {offsets = [72, 0], sizes = [8, 128], strides = [1, 1]} : vector<104x128xbf16> to vector<8x128xbf16>
    %c1152 = arith.constant 1152 : index
    %c0_107 = arith.constant 0 : index
    %169 = vector.load %arg7[%c1152, %c0_107] : memref<1664x256xbf16, #tpu.memory_space<vmem>>, vector<128x256xbf16>
    %cst_108 = arith.constant dense<0.000000e+00> : vector<8x256xf32>
    %170 = tpu.matmul %168, %169, %cst_108 {dimension_numbers = #tpu.dot_dimension_numbers<[1], [0], [0], [1], [0, 0, 1, 1], [], []>} : vector<8x128xbf16>, vector<128x256xbf16>, vector<8x256xf32> -> vector<8x256xf32>
    %171 = arith.addf %167, %170 : vector<8x256xf32>
    %172 = vector.extract_strided_slice %130 {offsets = [80, 0], sizes = [8, 128], strides = [1, 1]} : vector<104x128xbf16> to vector<8x128xbf16>
    %c1280 = arith.constant 1280 : index
    %c0_109 = arith.constant 0 : index
    %173 = vector.load %arg7[%c1280, %c0_109] : memref<1664x256xbf16, #tpu.memory_space<vmem>>, vector<128x256xbf16>
    %cst_110 = arith.constant dense<0.000000e+00> : vector<8x256xf32>
    %174 = tpu.matmul %172, %173, %cst_110 {dimension_numbers = #tpu.dot_dimension_numbers<[1], [0], [0], [1], [0, 0, 1, 1], [], []>} : vector<8x128xbf16>, vector<128x256xbf16>, vector<8x256xf32> -> vector<8x256xf32>
    %175 = arith.addf %171, %174 : vector<8x256xf32>
    %176 = vector.extract_strided_slice %130 {offsets = [88, 0], sizes = [8, 128], strides = [1, 1]} : vector<104x128xbf16> to vector<8x128xbf16>
    %c1408 = arith.constant 1408 : index
    %c0_111 = arith.constant 0 : index
    %177 = vector.load %arg7[%c1408, %c0_111] : memref<1664x256xbf16, #tpu.memory_space<vmem>>, vector<128x256xbf16>
    %cst_112 = arith.constant dense<0.000000e+00> : vector<8x256xf32>
    %178 = tpu.matmul %176, %177, %cst_112 {dimension_numbers = #tpu.dot_dimension_numbers<[1], [0], [0], [1], [0, 0, 1, 1], [], []>} : vector<8x128xbf16>, vector<128x256xbf16>, vector<8x256xf32> -> vector<8x256xf32>
    %179 = arith.addf %175, %178 : vector<8x256xf32>
    %180 = vector.extract_strided_slice %130 {offsets = [96, 0], sizes = [8, 128], strides = [1, 1]} : vector<104x128xbf16> to vector<8x128xbf16>
    %c1536 = arith.constant 1536 : index
    %c0_113 = arith.constant 0 : index
    %181 = vector.load %arg7[%c1536, %c0_113] : memref<1664x256xbf16, #tpu.memory_space<vmem>>, vector<128x256xbf16>
    %cst_114 = arith.constant dense<0.000000e+00> : vector<8x256xf32>
    %182 = tpu.matmul %180, %181, %cst_114 {dimension_numbers = #tpu.dot_dimension_numbers<[1], [0], [0], [1], [0, 0, 1, 1], [], []>} : vector<8x128xbf16>, vector<128x256xbf16>, vector<8x256xf32> -> vector<8x256xf32>
    %183 = arith.addf %179, %182 : vector<8x256xf32>
    %184 = vector.extract_strided_slice %183 {offsets = [0, 0], sizes = [2, 256], strides = [1, 1]} : vector<8x256xf32> to vector<2x256xf32>
    %185 = vector.extract_strided_slice %183 {offsets = [2, 0], sizes = [2, 256], strides = [1, 1]} : vector<8x256xf32> to vector<2x256xf32>
    %186 = arith.addf %184, %185 : vector<2x256xf32>
    %187 = vector.extract_strided_slice %183 {offsets = [4, 0], sizes = [2, 256], strides = [1, 1]} : vector<8x256xf32> to vector<2x256xf32>
    %188 = arith.addf %186, %187 : vector<2x256xf32>
    %189 = vector.extract_strided_slice %183 {offsets = [6, 0], sizes = [2, 256], strides = [1, 1]} : vector<8x256xf32> to vector<2x256xf32>
    %190 = arith.addf %188, %189 : vector<2x256xf32>
    %c0_115 = arith.constant 0 : index
    %c0_116 = arith.constant 0 : index
    %191 = vector.load %arg8[%c0_115, %c0_116] : memref<1x256xf32, #tpu.memory_space<vmem>>, vector<1x256xf32>
    %192 = vector.broadcast %191 : vector<1x256xf32> to vector<2x256xf32>
    %193 = arith.addf %190, %192 : vector<2x256xf32>
    %cst_117 = arith.constant 0.000000e+00 : f32
    %194 = vector.broadcast %cst_117 : f32 to vector<2x256xf32>
    %195 = arith.maximumf %193, %194 : vector<2x256xf32>
    %196 = arith.truncf %195 : vector<2x256xf32> to vector<2x256xbf16>
    %c0_118 = arith.constant 0 : index
    %c0_119 = arith.constant 0 : index
    %197 = vector.load %arg9[%c0_118, %c0_119] : memref<256x128xbf16, #tpu.memory_space<vmem>>, vector<256x128xbf16>
    %cst_120 = arith.constant dense<0.000000e+00> : vector<2x128xf32>
    %198 = tpu.matmul %196, %197, %cst_120 {dimension_numbers = #tpu.dot_dimension_numbers<[1], [0], [0], [1], [0, 0, 1, 1], [], []>} : vector<2x256xbf16>, vector<256x128xbf16>, vector<2x128xf32> -> vector<2x128xf32>
    %c0_121 = arith.constant 0 : index
    %c0_122 = arith.constant 0 : index
    %199 = vector.load %arg10[%c0_121, %c0_122] : memref<1x128xf32, #tpu.memory_space<vmem>>, vector<1x128xf32>
    %200 = vector.broadcast %199 : vector<1x128xf32> to vector<2x128xf32>
    %201 = arith.addf %198, %200 : vector<2x128xf32>
    %c0_123 = arith.constant 0 : index
    %c0_124 = arith.constant 0 : index
    %202 = vector.load %arg11[%c0_123, %c0_124] : memref<2x128xf32, #tpu.memory_space<vmem>>, vector<2x128xf32>
    tpu.vector_store %arg11[%c0_123, %c0_124], %201 {strides = array<i32>} : memref<2x128xf32, #tpu.memory_space<vmem>>, vector<2x128xf32>,
    return
  }
  func.func @transform_0(%arg0: i32) -> (i32, i32) {
    %c0_i32 = arith.constant 0 : i32
    %c0_i32_0 = arith.constant 0 : i32
    %c0_i32_1 = arith.constant 0 : i32
    return %c0_i32, %c0_i32_0 : i32, i32
  }
  func.func @transform_1(%arg0: i32) -> (i32, i32) {
    %c0_i32 = arith.constant 0 : i32
    %c0_i32_0 = arith.constant 0 : i32
    %c0_i32_1 = arith.constant 0 : i32
    return %c0_i32, %c0_i32_0 : i32, i32
  }
  func.func @transform_2(%arg0: i32) -> (i32, i32) {
    %c0_i32 = arith.constant 0 : i32
    %c0_i32_0 = arith.constant 0 : i32
    %c0_i32_1 = arith.constant 0 : i32
    return %c0_i32, %c0_i32_0 : i32, i32
  }
  func.func @transform_3(%arg0: i32) -> (i32, i32) {
    %c0_i32 = arith.constant 0 : i32
    %c0_i32_0 = arith.constant 0 : i32
    %c0_i32_1 = arith.constant 0 : i32
    return %c0_i32, %c0_i32_0 : i32, i32
  }
  func.func @transform_4(%arg0: i32) -> (i32, i32) {
    %c0_i32 = arith.constant 0 : i32
    %c0_i32_0 = arith.constant 0 : i32
    %c0_i32_1 = arith.constant 0 : i32
    return %c0_i32, %c0_i32_0 : i32, i32
  }
  func.func @transform_5(%arg0: i32) -> (i32, i32) {
    %c0_i32 = arith.constant 0 : i32
    %c0_i32_0 = arith.constant 0 : i32
    %c0_i32_1 = arith.constant 0 : i32
    return %c0_i32, %c0_i32_0 : i32, i32
  }
  func.func @transform_6(%arg0: i32) -> (i32, i32) {
    %c0_i32 = arith.constant 0 : i32
    %c0_i32_0 = arith.constant 0 : i32
    %c0_i32_1 = arith.constant 0 : i32
    return %c0_i32, %c0_i32_0 : i32, i32
  }
  func.func @transform_7(%arg0: i32) -> (i32, i32) {
    %c0_i32 = arith.constant 0 : i32
    %c0_i32_0 = arith.constant 0 : i32
    %c0_i32_1 = arith.constant 0 : i32
    return %c0_i32, %c0_i32_0 : i32, i32
  }
  func.func @transform_8(%arg0: i32) -> (i32, i32) {
    %c0_i32 = arith.constant 0 : i32
    %c0_i32_0 = arith.constant 0 : i32
    %c0_i32_1 = arith.constant 0 : i32
    return %c0_i32, %c0_i32_0 : i32, i32
  }
  func.func @transform_9(%arg0: i32) -> (i32, i32) {
    %c0_i32 = arith.constant 0 : i32
    %c0_i32_0 = arith.constant 0 : i32
    %c0_i32_1 = arith.constant 0 : i32
    return %c0_i32, %c0_i32_0 : i32, i32
  }
  func.func @transform_10(%arg0: i32) -> (i32, i32) {
    %c0_i32 = arith.constant 0 : i32
    %c0_i32_0 = arith.constant 0 : i32
    %c0_i32_1 = arith.constant 0 : i32
    return %c0_i32, %c0_i32_0 : i32, i32
  }
}

</mosaic_0001>

<llo_original>
// kernel: actor_critic_forward.1
$region0: #{actor_critic_forward.1}
  #allocation0 [shape = 'u32[]', space=smem, size = 0x4, offset = 0x4, fixed_abs, tag = 'smem constant byte address 0x4 - core index']
  #allocation1 [shape = 'u32[144,128]{1,0:T(1,128)}', space=vmem, size = 0x12000, scoped, tag = 'internal scratch']
  #allocation2 [shape = 'f32[136,288]{1,0:T(8,128)}', space=vmem, size = 0x33000, scoped, tag = 'scratch operand']
  #allocation3 [shape = 'f32[104,128]{1,0:T(8,128)}', space=vmem, size = 0xd000, scoped, tag = 'scratch operand']
  %s0 = inlined_call_operand.vmem [shape: f32[104,3], index: 0, kind: input, shape index: {}]
  %s1 = inlined_call_operand.vmem [shape: f32[104,13], index: 1, kind: input, shape index: {}]
  %s2 = inlined_call_operand.vmem [shape: f32[3,144], index: 2, kind: input, shape index: {}]
  %s3 = inlined_call_operand.vmem [shape: f32[1,16], index: 3, kind: input, shape index: {}]
  %s4 = inlined_call_operand.vmem [shape: f32[16,288], index: 4, kind: input, shape index: {}]
  %s5 = inlined_call_operand.vmem [shape: f32[1,32], index: 5, kind: input, shape index: {}]
  %s6 = inlined_call_operand.hbm [shape: bf16[1664,256], index: 6, kind: input, shape index: {}]
  %s7 = inlined_call_operand.vmem [shape: f32[1,256], index: 7, kind: input, shape index: {}]
  %s8 = inlined_call_operand.vmem [shape: bf16[256,128], index: 8, kind: input, shape index: {}]
  %s9 = inlined_call_operand.vmem [shape: f32[1,128], index: 9, kind: input, shape index: {}]
  %s10 = inlined_call_operand.vmem [shape: f32[2,128], index: 10, kind: output, shape index: {}]
  %s11 = sld [smem:[#allocation0]]
  $region54: #{actor_critic_forward.1} parent=0
    _
  %s13 = ssub.s32 1, %s11
  %s14 = scalar_select 0, %s13, %s11
  $region1: #{actor_critic_forward.1} parent=0
    #allocation4 [shape = 'u8[851968]{0}', space=vmem, size = 0xd0000, scoped, tag = 'input window, operand 6, single buffered']
    #allocation5 [shape = 's32[1]{0}', space=sflag, size = 0x4, scoped, tag = 'scoped memory for actor_critic_forward.1']
    %15 = vsyncpa [#allocation5], 0
    // Predicated region
    $region2: #{actor_critic_forward.1} parent=1 // pred_check
      _
    $region3: #{actor_critic_forward.1} parent=1 // pred_check_branch
      %17 = sbr.rel (0) target = $region5
    $region4: #{actor_critic_forward.1} parent=1 // pred_region
      _
    $region5: #{actor_critic_forward.1} parent=1 // pred_fallthru
      _
    // Predicated region
    $region6: #{actor_critic_forward.1} parent=1 // pred_check
      _
    $region7: #{actor_critic_forward.1} parent=1 // pred_check_branch
      %19 = sbr.rel (0) target = $region9
    $region8: #{actor_critic_forward.1} parent=1 // pred_region
      _
    $region9: #{actor_critic_forward.1} parent=1 // pred_fallthru
      _
    // Predicated region
    $region10: #{actor_critic_forward.1} parent=1 // pred_check
      _
    $region11: #{actor_critic_forward.1} parent=1 // pred_check_branch
      %21 = sbr.rel (0) target = $region13
    $region12: #{actor_critic_forward.1} parent=1 // pred_region
      _
    $region13: #{actor_critic_forward.1} parent=1 // pred_fallthru
      _
    // Predicated region
    $region14: #{actor_critic_forward.1} parent=1 // pred_check
      _
    $region15: #{actor_critic_forward.1} parent=1 // pred_check_branch
      %23 = sbr.rel (0) target = $region17
    $region16: #{actor_critic_forward.1} parent=1 // pred_region
      _
    $region17: #{actor_critic_forward.1} parent=1 // pred_fallthru
      _
    // Predicated region
    $region18: #{actor_critic_forward.1} parent=1 // pred_check
      _
    $region19: #{actor_critic_forward.1} parent=1 // pred_check_branch
      %25 = sbr.rel (0) target = $region21
    $region20: #{actor_critic_forward.1} parent=1 // pred_region
      _
    $region21: #{actor_critic_forward.1} parent=1 // pred_fallthru
      _
    // Predicated region
    $region22: #{actor_critic_forward.1} parent=1 // pred_check
      _
    $region23: #{actor_critic_forward.1} parent=1 // pred_check_branch
      %27 = sbr.rel (0) target = $region25
    $region24: #{actor_critic_forward.1} parent=1 // pred_region
      _
    $region25: #{actor_critic_forward.1} parent=1 // pred_fallthru
      _
    // Predicated region
    $region26: #{actor_critic_forward.1} parent=1 // pred_check
      _
    $region27: #{actor_critic_forward.1} parent=1 // pred_check_branch
      %29 = sbr.rel (0) target = $region29
    $region28: #{actor_critic_forward.1} parent=1 // pred_region
      %s31 = ssub.s32 26624, 26624
      %32 = vsyncadd [#allocation5], %s31
      %s33 = sshll.u32 [#allocation4], 4
      %s34 = int_to_ptr.vmem [resolvable:$true] %s33
      %39 = dma.hbm_to_vmem [thread:$0]  %s6, 26624, %s34, [#allocation5], 128, 128, 8
    $region29: #{actor_critic_forward.1} parent=1 // pred_fallthru
      _
    // Predicated region
    $region30: #{actor_critic_forward.1} parent=1 // pred_check
      _
    $region31: #{actor_critic_forward.1} parent=1 // pred_check_branch
      %41 = sbr.rel (0) target = $region33
    $region32: #{actor_critic_forward.1} parent=1 // pred_region
      _
    $region33: #{actor_critic_forward.1} parent=1 // pred_fallthru
      _
    // Predicated region
    $region34: #{actor_critic_forward.1} parent=1 // pred_check
      _
    $region35: #{actor_critic_forward.1} parent=1 // pred_check_branch
      %43 = sbr.rel (0) target = $region37
    $region36: #{actor_critic_forward.1} parent=1 // pred_region
      _
    $region37: #{actor_critic_forward.1} parent=1 // pred_fallthru
      _
    // Predicated region
    $region38: #{actor_critic_forward.1} parent=1 // pred_check
      _
    $region39: #{actor_critic_forward.1} parent=1 // pred_check_branch
      %45 = sbr.rel (0) target = $region41
    $region40: #{actor_critic_forward.1} parent=1 // pred_region
      _
    $region41: #{actor_critic_forward.1} parent=1 // pred_fallthru
      _
    // Predicated region
    $region42: #{actor_critic_forward.1} parent=1 // pred_check
      _
    $region43: #{actor_critic_forward.1} parent=1 // pred_check_branch
      %47 = sbr.rel (0) target = $region45
    $region44: #{actor_critic_forward.1} parent=1 // pred_region
      %48 = dma.done [#allocation5], 26624
    $region45: #{actor_critic_forward.1} parent=1 // pred_fallthru
      _
    %50 = vst [vmem:[#allocation2] sm:$0xff] 0.0
    %51 = vst [vmem:[#allocation2 + $0x8] sm:$0xff] 0.0
    %vm52 = vcmask 261120
    %53 = vst.msk [vmem:[#allocation2 + $0x10] sm:$0xff] %vm52, 0.0
    %54 = vst [vmem:[#allocation2 + $0x18] sm:$0xff] 0.0
    %55 = vst [vmem:[#allocation2 + $0x20] sm:$0xff] 0.0
    %56 = vst.msk [vmem:[#allocation2 + $0x28] sm:$0xff] %vm52, 0.0
    %57 = vst [vmem:[#allocation2 + $0x168] sm:$0xff] 0.0
    %58 = vst [vmem:[#allocation2 + $0x170] sm:$0xff] 0.0
    %59 = vst.msk [vmem:[#allocation2 + $0x178] sm:$0xff] %vm52, 0.0
    %60 = vst [vmem:[#allocation2 + $0x180] sm:$0xff] 0.0
    %61 = vst [vmem:[#allocation2 + $0x188] sm:$0xff] 0.0
    %62 = vst.msk [vmem:[#allocation2 + $0x190] sm:$0xff] %vm52, 0.0
    %v63 = vld [vmem:[%s0] sm:$0xff]
    %v64 = vld [vmem:[%s0 + $0x8] sm:$0xff]
    %v65 = vld [vmem:[%s0 + $0x10] sm:$0xff]
    %v66 = vld [vmem:[%s0 + $0x18] sm:$0xff]
    %v67 = vld [vmem:[%s0 + $0x20] sm:$0xff]
    %v68 = vld [vmem:[%s0 + $0x28] sm:$0xff]
    %v69 = vld [vmem:[%s0 + $0x30] sm:$0xff]
    %v70 = vld [vmem:[%s0 + $0x38] sm:$0xff]
    %v71 = vld [vmem:[%s0 + $0x40] sm:$0xff]
    %v72 = vld [vmem:[%s0 + $0x48] sm:$0xff]
    %v73 = vld [vmem:[%s0 + $0x50] sm:$0xff]
    %v74 = vld [vmem:[%s0 + $0x58] sm:$0xff]
    %v75 = vld [vmem:[%s0 + $0x60] sm:$0xff]
    %v76 = vld [vmem:[%s2] sm:$0x77]
    %v78 = vcombine.high %v76, %v76
    %vm79 = vcmask 23552
    %v81 = vsel %vm79, %v63, 0
    %v84 = vsel %vm79, %v64, 0
    %v87 = vsel %vm79, %v65, 0
    %v90 = vsel %vm79, %v66, 0
    %v93 = vsel %vm79, %v67, 0
    %v96 = vsel %vm79, %v68, 0
    %v99 = vsel %vm79, %v69, 0
    %v102 = vsel %vm79, %v70, 0
    %v105 = vsel %vm79, %v71, 0
    %v108 = vsel %vm79, %v72, 0
    %v111 = vsel %vm79, %v73, 0
    %v114 = vsel %vm79, %v74, 0
    %v117 = vsel %vm79, %v75, 0
    %vm119 = vcmask 1042432
    %v120 = vsel %vm119, %v76, 0
    %v122 = vsel %vm119, %v78, 0
    %124 = vmatprep.subr.mxu0 %v122
    %125 = vmatpush1.msra.mxu0 %v120
    %126 = vmatprep.subr.mxu0 0.0
    %127 = vmatpush1.msra.mxu0 0.0
    %128 = vmatprep.subr.mxu0 0.0
    %129 = vmatpush1.msra.mxu0 0.0
    %130 = vmatprep.subr.mxu0 0.0
    %131 = vmatpush1.msra.mxu0 0.0
    %132 = vmatprep.subr.mxu0 0.0
    %133 = vmatpush1.msra.mxu0 0.0
    %134 = vmatprep.subr.mxu0 0.0
    %135 = vmatpush1.msra.mxu0 0.0
    %136 = vmatprep.subr.mxu0 0.0
    %137 = vmatpush1.msra.mxu0 0.0
    %138 = vmatprep.subr.mxu0 0.0
    %139 = vmatpush1.msra.mxu0 0.0
    %140 = vmatprep.subr.mxu0 0.0
    %141 = vmatpush1.msra.mxu0 0.0
    %142 = vmatprep.subr.mxu0 0.0
    %143 = vmatpush1.msra.mxu0 0.0
    %144 = vmatprep.subr.mxu0 0.0
    %145 = vmatpush1.msra.mxu0 0.0
    %146 = vmatprep.subr.mxu0 0.0
    %147 = vmatpush1.msra.mxu0 0.0
    %148 = vmatprep.subr.mxu0 0.0
    %149 = vmatpush1.msra.mxu0 0.0
    %150 = vmatprep.subr.mxu0 0.0
    %151 = vmatpush1.msra.mxu0 0.0
    %152 = vmatprep.subr.mxu0 0.0
    %153 = vmatpush1.msra.mxu0 0.0
    %154 = vmatprep.subr.mxu0 0.0
    %155 = vmatpush1.msra.mxu0 0.0
    %156 = vmatprep.subr.mxu0 0.0
    %157 = vmatpush1.msra.mxu0 0.0
    %158 = vmatprep.subr.mxu0 0.0
    %159 = vmatpush1.msra.mxu0 0.0
    %160 = vmatprep.subr.mxu0 0.0
    %161 = vmatpush1.msra.mxu0 0.0
    %162 = vmatprep.subr.mxu0 0.0
    %163 = vmatpush1.msra.mxu0 0.0
    %164 = vmatprep.subr.mxu0 0.0
    %165 = vmatpush1.msra.mxu0 0.0
    %166 = vmatprep.subr.mxu0 0.0
    %167 = vmatpush1.msra.mxu0 0.0
    %168 = vmatprep.subr.mxu0 0.0
    %169 = vmatpush1.msra.mxu0 0.0
    %170 = vmatprep.subr.mxu0 0.0
    %171 = vmatpush1.msra.mxu0 0.0
    %172 = vmatprep.subr.mxu0 0.0
    %173 = vmatpush1.msra.mxu0 0.0
    %174 = vmatprep.subr.mxu0 0.0
    %175 = vmatpush1.msra.mxu0 0.0
    %176 = vmatprep.subr.mxu0 0.0
    %177 = vmatpush1.msra.mxu0 0.0
    %178 = vmatprep.subr.mxu0 0.0
    %179 = vmatpush1.msra.mxu0 0.0
    %180 = vmatprep.subr.mxu0 0.0
    %181 = vmatpush1.msra.mxu0 0.0
    %182 = vmatprep.subr.mxu0 0.0
    %183 = vmatpush1.msra.mxu0 0.0
    %184 = vmatprep.subr.mxu0 0.0
    %185 = vmatpush1.msra.mxu0 0.0
    %186 = vmatprep.subr.mxu0 0.0
    %187 = vmatpush1.msra.mxu0 0.0
    %188 = vmatprep.mubr.f32.mxu0 0.0
    %189 = vmatmul.mubr.f32.gmra.mrb[0].mxu0 %v81
    %v190 = vpop.f32.mrb[0].mxu0
    %v191 = vadd.f32 0.0, %v190
    %v192 = vpop.f32.mrb[0].mxu0
    %v193 = vadd.f32 0.0, %v192
    %194 = vmatprep.mubr.f32.mxu0 0.0
    %195 = vmatmul.mubr.f32.gmra.mrb[0].mxu0 %v84
    %v196 = vpop.f32.mrb[0].mxu0
    %v197 = vadd.f32 0.0, %v196
    %v198 = vpop.f32.mrb[0].mxu0
    %v199 = vadd.f32 0.0, %v198
    %200 = vmatprep.mubr.f32.mxu0 0.0
    %201 = vmatmul.mubr.f32.gmra.mrb[0].mxu0 %v87
    %v202 = vpop.f32.mrb[0].mxu0
    %v203 = vadd.f32 0.0, %v202
    %v204 = vpop.f32.mrb[0].mxu0
    %v205 = vadd.f32 0.0, %v204
    %206 = vmatprep.mubr.f32.mxu0 0.0
    %207 = vmatmul.mubr.f32.gmra.mrb[0].mxu0 %v90
    %v208 = vpop.f32.mrb[0].mxu0
    %v209 = vadd.f32 0.0, %v208
    %v210 = vpop.f32.mrb[0].mxu0
    %v211 = vadd.f32 0.0, %v210
    %212 = vmatprep.mubr.f32.mxu0 0.0
    %213 = vmatmul.mubr.f32.gmra.mrb[0].mxu0 %v93
    %v214 = vpop.f32.mrb[0].mxu0
    %v215 = vadd.f32 0.0, %v214
    %v216 = vpop.f32.mrb[0].mxu0
    %v217 = vadd.f32 0.0, %v216
    %218 = vmatprep.mubr.f32.mxu0 0.0
    %219 = vmatmul.mubr.f32.gmra.mrb[0].mxu0 %v96
    %v220 = vpop.f32.mrb[0].mxu0
    %v221 = vadd.f32 0.0, %v220
    %v222 = vpop.f32.mrb[0].mxu0
    %v223 = vadd.f32 0.0, %v222
    %224 = vmatprep.mubr.f32.mxu0 0.0
    %225 = vmatmul.mubr.f32.gmra.mrb[0].mxu0 %v99
    %v226 = vpop.f32.mrb[0].mxu0
    %v227 = vadd.f32 0.0, %v226
    %v228 = vpop.f32.mrb[0].mxu0
    %v229 = vadd.f32 0.0, %v228
    %230 = vmatprep.mubr.f32.mxu0 0.0
    %231 = vmatmul.mubr.f32.gmra.mrb[0].mxu0 %v102
    %v232 = vpop.f32.mrb[0].mxu0
    %v233 = vadd.f32 0.0, %v232
    %v234 = vpop.f32.mrb[0].mxu0
    %v235 = vadd.f32 0.0, %v234
    %236 = vmatprep.mubr.f32.mxu0 0.0
    %237 = vmatmul.mubr.f32.gmra.mrb[0].mxu0 %v105
    %v238 = vpop.f32.mrb[0].mxu0
    %v239 = vadd.f32 0.0, %v238
    %v240 = vpop.f32.mrb[0].mxu0
    %v241 = vadd.f32 0.0, %v240
    %242 = vmatprep.mubr.f32.mxu0 0.0
    %243 = vmatmul.mubr.f32.gmra.mrb[0].mxu0 %v108
    %v244 = vpop.f32.mrb[0].mxu0
    %v245 = vadd.f32 0.0, %v244
    %v246 = vpop.f32.mrb[0].mxu0
    %v247 = vadd.f32 0.0, %v246
    %248 = vmatprep.mubr.f32.mxu0 0.0
    %249 = vmatmul.mubr.f32.gmra.mrb[0].mxu0 %v111
    %v250 = vpop.f32.mrb[0].mxu0
    %v251 = vadd.f32 0.0, %v250
    %v252 = vpop.f32.mrb[0].mxu0
    %v253 = vadd.f32 0.0, %v252
    %254 = vmatprep.mubr.f32.mxu0 0.0
    %255 = vmatmul.mubr.f32.gmra.mrb[0].mxu0 %v114
    %v256 = vpop.f32.mrb[0].mxu0
    %v257 = vadd.f32 0.0, %v256
    %v258 = vpop.f32.mrb[0].mxu0
    %v259 = vadd.f32 0.0, %v258
    %260 = vmatprep.mubr.f32.mxu0 0.0
    %261 = vmatmul.mubr.f32.gmra.mrb[0].mxu0 %v117
    %v262 = vpop.f32.mrb[0].mxu0
    %v263 = vadd.f32 0.0, %v262
    %v264 = vpop.f32.mrb[0].mxu0
    %v265 = vadd.f32 0.0, %v264
    %266 = vdwg.mxu0
    %267 = vst [vmem:[#allocation2 + $0x30] sm:$0xff] %v191
    %vm268 = vcmask 130048
    %269 = vst.msk [vmem:[#allocation2 + $0x38] sm:$0xff] %vm268, %v193
    %270 = vst [vmem:[#allocation2 + $0x48] sm:$0xff] %v197
    %271 = vst.msk [vmem:[#allocation2 + $0x50] sm:$0xff] %vm268, %v199
    %272 = vst [vmem:[#allocation2 + $0x60] sm:$0xff] %v203
    %273 = vst.msk [vmem:[#allocation2 + $0x68] sm:$0xff] %vm268, %v205
    %274 = vst [vmem:[#allocation2 + $0x78] sm:$0xff] %v209
    %275 = vst.msk [vmem:[#allocation2 + $0x80] sm:$0xff] %vm268, %v211
    %276 = vst [vmem:[#allocation2 + $0x90] sm:$0xff] %v215
    %277 = vst.msk [vmem:[#allocation2 + $0x98] sm:$0xff] %vm268, %v217
    %278 = vst [vmem:[#allocation2 + $0xa8] sm:$0xff] %v221
    %279 = vst.msk [vmem:[#allocation2 + $0xb0] sm:$0xff] %vm268, %v223
    %280 = vst [vmem:[#allocation2 + $0xc0] sm:$0xff] %v227
    %281 = vst.msk [vmem:[#allocation2 + $0xc8] sm:$0xff] %vm268, %v229
    %282 = vst [vmem:[#allocation2 + $0xd8] sm:$0xff] %v233
    %283 = vst.msk [vmem:[#allocation2 + $0xe0] sm:$0xff] %vm268, %v235
    %284 = vst [vmem:[#allocation2 + $0xf0] sm:$0xff] %v239
    %285 = vst.msk [vmem:[#allocation2 + $0xf8] sm:$0xff] %vm268, %v241
    %286 = vst [vmem:[#allocation2 + $0x108] sm:$0xff] %v245
    %287 = vst.msk [vmem:[#allocation2 + $0x110] sm:$0xff] %vm268, %v247
    %288 = vst [vmem:[#allocation2 + $0x120] sm:$0xff] %v251
    %289 = vst.msk [vmem:[#allocation2 + $0x128] sm:$0xff] %vm268, %v253
    %290 = vst [vmem:[#allocation2 + $0x138] sm:$0xff] %v257
    %291 = vst.msk [vmem:[#allocation2 + $0x140] sm:$0xff] %vm268, %v259
    %292 = vst [vmem:[#allocation2 + $0x150] sm:$0xff] %v263
    %293 = vst.msk [vmem:[#allocation2 + $0x158] sm:$0xff] %vm268, %v265
    %v294 = vld [vmem:[#allocation2] sm:$0xff]
    %v295 = vld [vmem:[#allocation2 + $0x18] sm:$0xff]
    %v296 = vld [vmem:[#allocation2 + $0x30] sm:$0xff]
    %v297 = vld [vmem:[#allocation2 + $0x48] sm:$0xff]
    %v298 = vld [vmem:[#allocation2 + $0x60] sm:$0xff]
    %v299 = vld [vmem:[#allocation2 + $0x78] sm:$0xff]
    %v300 = vld [vmem:[#allocation2 + $0x90] sm:$0xff]
    %v301 = vld [vmem:[#allocation2 + $0xa8] sm:$0xff]
    %v302 = vld [vmem:[#allocation2 + $0xc0] sm:$0xff]
    %v303 = vld [vmem:[#allocation2 + $0xd8] sm:$0xff]
    %v304 = vld [vmem:[#allocation2 + $0xf0] sm:$0xff]
    %v305 = vld [vmem:[#allocation2 + $0x108] sm:$0xff]
    %v306 = vld [vmem:[#allocation2 + $0x120] sm:$0xff]
    %v307 = vld [vmem:[%s1] sm:$0xff]
    %v308 = vld [vmem:[%s1 + $0x8] sm:$0xff]
    %v309 = vld [vmem:[%s1 + $0x10] sm:$0xff]
    %v310 = vld [vmem:[%s1 + $0x18] sm:$0xff]
    %v311 = vld [vmem:[%s1 + $0x20] sm:$0xff]
    %v312 = vld [vmem:[%s1 + $0x28] sm:$0xff]
    %v313 = vld [vmem:[%s1 + $0x30] sm:$0xff]
    %v314 = vld [vmem:[%s1 + $0x38] sm:$0xff]
    %v315 = vld [vmem:[%s1 + $0x40] sm:$0xff]
    %v316 = vld [vmem:[%s1 + $0x48] sm:$0xff]
    %v317 = vld [vmem:[%s1 + $0x50] sm:$0xff]
    %v318 = vld [vmem:[%s1 + $0x58] sm:$0xff]
    %v319 = vld [vmem:[%s1 + $0x60] sm:$0xff]
    %321 = vset.pattern.permute.xlu0 0
    %322 = vperm.xlu0 %321, %v307
    %v323 = vpop.permute.xlu0 %322
    %326 = vset.pattern.permute.xlu0 0
    %327 = vperm.xlu0 %326, %v308
    %v328 = vpop.permute.xlu0 %327
    %331 = vset.pattern.permute.xlu0 0
    %332 = vperm.xlu0 %331, %v309
    %v333 = vpop.permute.xlu0 %332
    %336 = vset.pattern.permute.xlu0 0
    %337 = vperm.xlu0 %336, %v310
    %v338 = vpop.permute.xlu0 %337
    %341 = vset.pattern.permute.xlu0 0
    %342 = vperm.xlu0 %341, %v311
    %v343 = vpop.permute.xlu0 %342
    %346 = vset.pattern.permute.xlu0 0
    %347 = vperm.xlu0 %346, %v312
    %v348 = vpop.permute.xlu0 %347
    %351 = vset.pattern.permute.xlu0 0
    %352 = vperm.xlu0 %351, %v313
    %v353 = vpop.permute.xlu0 %352
    %356 = vset.pattern.permute.xlu0 0
    %357 = vperm.xlu0 %356, %v314
    %v358 = vpop.permute.xlu0 %357
    %361 = vset.pattern.permute.xlu0 0
    %362 = vperm.xlu0 %361, %v315
    %v363 = vpop.permute.xlu0 %362
    %366 = vset.pattern.permute.xlu0 0
    %367 = vperm.xlu0 %366, %v316
    %v368 = vpop.permute.xlu0 %367
    %371 = vset.pattern.permute.xlu0 0
    %372 = vperm.xlu0 %371, %v317
    %v373 = vpop.permute.xlu0 %372
    %376 = vset.pattern.permute.xlu0 0
    %377 = vperm.xlu0 %376, %v318
    %v378 = vpop.permute.xlu0 %377
    %381 = vset.pattern.permute.xlu0 0
    %382 = vperm.xlu0 %381, %v319
    %v383 = vpop.permute.xlu0 %382
    %v385 = vmul.f32 %v323, %v294
    %v386 = vmul.f32 %v328, %v295
    %v387 = vmul.f32 %v333, %v296
    %v388 = vmul.f32 %v338, %v297
    %v389 = vmul.f32 %v343, %v298
    %v390 = vmul.f32 %v348, %v299
    %v391 = vmul.f32 %v353, %v300
    %v392 = vmul.f32 %v358, %v301
    %v393 = vmul.f32 %v363, %v302
    %v394 = vmul.f32 %v368, %v303
    %v395 = vmul.f32 %v373, %v304
    %v396 = vmul.f32 %v378, %v305
    %v397 = vmul.f32 %v383, %v306
    %v398 = vadd.f32 %v385, 0.0
    %v399 = vadd.f32 %v386, 0.0
    %v400 = vadd.f32 %v387, 0.0
    %v401 = vadd.f32 %v388, 0.0
    %v402 = vadd.f32 %v389, 0.0
    %v403 = vadd.f32 %v390, 0.0
    %v404 = vadd.f32 %v391, 0.0
    %v405 = vadd.f32 %v392, 0.0
    %v406 = vadd.f32 %v393, 0.0
    %v407 = vadd.f32 %v394, 0.0
    %v408 = vadd.f32 %v395, 0.0
    %v409 = vadd.f32 %v396, 0.0
    %v410 = vadd.f32 %v397, 0.0
    %v411 = vld [vmem:[#allocation2] sm:$0xfc]
    %v412 = vld [vmem:[#allocation2 + $0x18] sm:$0xff]
    %v413 = vld [vmem:[#allocation2 + $0x30] sm:$0xff]
    %v414 = vld [vmem:[#allocation2 + $0x48] sm:$0xff]
    %v415 = vld [vmem:[#allocation2 + $0x60] sm:$0xff]
    %v416 = vld [vmem:[#allocation2 + $0x78] sm:$0xff]
    %v417 = vld [vmem:[#allocation2 + $0x90] sm:$0xff]
    %v418 = vld [vmem:[#allocation2 + $0xa8] sm:$0xff]
    %v419 = vld [vmem:[#allocation2 + $0xc0] sm:$0xff]
    %v420 = vld [vmem:[#allocation2 + $0xd8] sm:$0xff]
    %v421 = vld [vmem:[#allocation2 + $0xf0] sm:$0xff]
    %v422 = vld [vmem:[#allocation2 + $0x108] sm:$0xff]
    %v423 = vld [vmem:[#allocation2 + $0x120] sm:$0xff]
    %v424 = vld [vmem:[#allocation2 + $0x138] sm:$0x3]
    %425 = vset.pattern.permute.xlu0 1
    %426 = vperm.xlu0 %425, %v307
    %v427 = vpop.permute.xlu0 %426
    %429 = vset.pattern.permute.xlu0 1
    %430 = vperm.xlu0 %429, %v308
    %v431 = vpop.permute.xlu0 %430
    %433 = vset.pattern.permute.xlu0 1
    %434 = vperm.xlu0 %433, %v309
    %v435 = vpop.permute.xlu0 %434
    %437 = vset.pattern.permute.xlu0 1
    %438 = vperm.xlu0 %437, %v310
    %v439 = vpop.permute.xlu0 %438
    %441 = vset.pattern.permute.xlu0 1
    %442 = vperm.xlu0 %441, %v311
    %v443 = vpop.permute.xlu0 %442
    %445 = vset.pattern.permute.xlu0 1
    %446 = vperm.xlu0 %445, %v312
    %v447 = vpop.permute.xlu0 %446
    %449 = vset.pattern.permute.xlu0 1
    %450 = vperm.xlu0 %449, %v313
    %v451 = vpop.permute.xlu0 %450
    %453 = vset.pattern.permute.xlu0 1
    %454 = vperm.xlu0 %453, %v314
    %v455 = vpop.permute.xlu0 %454
    %457 = vset.pattern.permute.xlu0 1
    %458 = vperm.xlu0 %457, %v315
    %v459 = vpop.permute.xlu0 %458
    %461 = vset.pattern.permute.xlu0 1
    %462 = vperm.xlu0 %461, %v316
    %v463 = vpop.permute.xlu0 %462
    %465 = vset.pattern.permute.xlu0 1
    %466 = vperm.xlu0 %465, %v317
    %v467 = vpop.permute.xlu0 %466
    %469 = vset.pattern.permute.xlu0 1
    %470 = vperm.xlu0 %469, %v318
    %v471 = vpop.permute.xlu0 %470
    %473 = vset.pattern.permute.xlu0 1
    %474 = vperm.xlu0 %473, %v319
    %v475 = vpop.permute.xlu0 %474
    %vm491 = vcmask 1045504
    %v492 = vrot.slane %v411, 2
    %v493 = vrot.slane %v412, 2
    %v494 = vsel %vm491, %v492, %v493
    %v495 = vrot.slane %v413, 2
    %v496 = vsel %vm491, %v493, %v495
    %v497 = vrot.slane %v414, 2
    %v498 = vsel %vm491, %v495, %v497
    %v499 = vrot.slane %v415, 2
    %v500 = vsel %vm491, %v497, %v499
    %v501 = vrot.slane %v416, 2
    %v502 = vsel %vm491, %v499, %v501
    %v503 = vrot.slane %v417, 2
    %v504 = vsel %vm491, %v501, %v503
    %v505 = vrot.slane %v418, 2
    %v506 = vsel %vm491, %v503, %v505
    %v507 = vrot.slane %v419, 2
    %v508 = vsel %vm491, %v505, %v507
    %v509 = vrot.slane %v420, 2
    %v510 = vsel %vm491, %v507, %v509
    %v511 = vrot.slane %v421, 2
    %v512 = vsel %vm491, %v509, %v511
    %v513 = vrot.slane %v422, 2
    %v514 = vsel %vm491, %v511, %v513
    %v515 = vrot.slane %v423, 2
    %v516 = vsel %vm491, %v513, %v515
    %v517 = vrot.slane %v424, 2
    %v518 = vsel %vm491, %v515, %v517
    %519 = vrot.lane.b32.xlu0 %v494, 112
    %v520 = vpop.permute.xlu0 %519
    %521 = vrot.lane.b32.xlu0 %v496, 112
    %v522 = vpop.permute.xlu0 %521
    %523 = vrot.lane.b32.xlu0 %v498, 112
    %v524 = vpop.permute.xlu0 %523
    %525 = vrot.lane.b32.xlu0 %v500, 112
    %v526 = vpop.permute.xlu0 %525
    %527 = vrot.lane.b32.xlu0 %v502, 112
    %v528 = vpop.permute.xlu0 %527
    %529 = vrot.lane.b32.xlu0 %v504, 112
    %v530 = vpop.permute.xlu0 %529
    %531 = vrot.lane.b32.xlu0 %v506, 112
    %v532 = vpop.permute.xlu0 %531
    %533 = vrot.lane.b32.xlu0 %v508, 112
    %v534 = vpop.permute.xlu0 %533
    %535 = vrot.lane.b32.xlu0 %v510, 112
    %v536 = vpop.permute.xlu0 %535
    %537 = vrot.lane.b32.xlu0 %v512, 112
    %v538 = vpop.permute.xlu0 %537
    %539 = vrot.lane.b32.xlu0 %v514, 112
    %v540 = vpop.permute.xlu0 %539
    %541 = vrot.lane.b32.xlu0 %v516, 112
    %v542 = vpop.permute.xlu0 %541
    %543 = vrot.lane.b32.xlu0 %v518, 112
    %v544 = vpop.permute.xlu0 %543
    %v558 = vmul.f32 %v427, %v520
    %v559 = vmul.f32 %v431, %v522
    %v560 = vmul.f32 %v435, %v524
    %v561 = vmul.f32 %v439, %v526
    %v562 = vmul.f32 %v443, %v528
    %v563 = vmul.f32 %v447, %v530
    %v564 = vmul.f32 %v451, %v532
    %v565 = vmul.f32 %v455, %v534
    %v566 = vmul.f32 %v459, %v536
    %v567 = vmul.f32 %v463, %v538
    %v568 = vmul.f32 %v467, %v540
    %v569 = vmul.f32 %v471, %v542
    %v570 = vmul.f32 %v475, %v544
    %v571 = vadd.f32 %v398, %v558
    %v572 = vadd.f32 %v399, %v559
    %v573 = vadd.f32 %v400, %v560
    %v574 = vadd.f32 %v401, %v561
    %v575 = vadd.f32 %v402, %v562
    %v576 = vadd.f32 %v403, %v563
    %v577 = vadd.f32 %v404, %v564
    %v578 = vadd.f32 %v405, %v565
    %v579 = vadd.f32 %v406, %v566
    %v580 = vadd.f32 %v407, %v567
    %v581 = vadd.f32 %v408, %v568
    %v582 = vadd.f32 %v409, %v569
    %v583 = vadd.f32 %v410, %v570
    %v584 = vld [vmem:[#allocation2] sm:$0xf0]
    %v585 = vld [vmem:[#allocation2 + $0x138] sm:$0xf]
    %586 = vset.pattern.permute.xlu0 2
    %587 = vperm.xlu0 %586, %v307
    %v588 = vpop.permute.xlu0 %587
    %590 = vset.pattern.permute.xlu0 2
    %591 = vperm.xlu0 %590, %v308
    %v592 = vpop.permute.xlu0 %591
    %594 = vset.pattern.permute.xlu0 2
    %595 = vperm.xlu0 %594, %v309
    %v596 = vpop.permute.xlu0 %595
    %598 = vset.pattern.permute.xlu0 2
    %599 = vperm.xlu0 %598, %v310
    %v600 = vpop.permute.xlu0 %599
    %602 = vset.pattern.permute.xlu0 2
    %603 = vperm.xlu0 %602, %v311
    %v604 = vpop.permute.xlu0 %603
    %606 = vset.pattern.permute.xlu0 2
    %607 = vperm.xlu0 %606, %v312
    %v608 = vpop.permute.xlu0 %607
    %610 = vset.pattern.permute.xlu0 2
    %611 = vperm.xlu0 %610, %v313
    %v612 = vpop.permute.xlu0 %611
    %614 = vset.pattern.permute.xlu0 2
    %615 = vperm.xlu0 %614, %v314
    %v616 = vpop.permute.xlu0 %615
    %618 = vset.pattern.permute.xlu0 2
    %619 = vperm.xlu0 %618, %v315
    %v620 = vpop.permute.xlu0 %619
    %622 = vset.pattern.permute.xlu0 2
    %623 = vperm.xlu0 %622, %v316
    %v624 = vpop.permute.xlu0 %623
    %626 = vset.pattern.permute.xlu0 2
    %627 = vperm.xlu0 %626, %v317
    %v628 = vpop.permute.xlu0 %627
    %630 = vset.pattern.permute.xlu0 2
    %631 = vperm.xlu0 %630, %v318
    %v632 = vpop.permute.xlu0 %631
    %634 = vset.pattern.permute.xlu0 2
    %635 = vperm.xlu0 %634, %v319
    %v636 = vpop.permute.xlu0 %635
    %vm640 = vcmask 1043456
    %v641 = vrot.slane %v584, 4
    %v642 = vrot.slane %v412, 4
    %v643 = vsel %vm640, %v641, %v642
    %v644 = vrot.slane %v413, 4
    %v645 = vsel %vm640, %v642, %v644
    %v646 = vrot.slane %v414, 4
    %v647 = vsel %vm640, %v644, %v646
    %v648 = vrot.slane %v415, 4
    %v649 = vsel %vm640, %v646, %v648
    %v650 = vrot.slane %v416, 4
    %v651 = vsel %vm640, %v648, %v650
    %v652 = vrot.slane %v417, 4
    %v653 = vsel %vm640, %v650, %v652
    %v654 = vrot.slane %v418, 4
    %v655 = vsel %vm640, %v652, %v654
    %v656 = vrot.slane %v419, 4
    %v657 = vsel %vm640, %v654, %v656
    %v658 = vrot.slane %v420, 4
    %v659 = vsel %vm640, %v656, %v658
    %v660 = vrot.slane %v421, 4
    %v661 = vsel %vm640, %v658, %v660
    %v662 = vrot.slane %v422, 4
    %v663 = vsel %vm640, %v660, %v662
    %v664 = vrot.slane %v423, 4
    %v665 = vsel %vm640, %v662, %v664
    %v666 = vrot.slane %v585, 4
    %v667 = vsel %vm640, %v664, %v666
    %668 = vrot.lane.b32.xlu0 %v643, 96
    %v669 = vpop.permute.xlu0 %668
    %670 = vrot.lane.b32.xlu0 %v645, 96
    %v671 = vpop.permute.xlu0 %670
    %672 = vrot.lane.b32.xlu0 %v647, 96
    %v673 = vpop.permute.xlu0 %672
    %674 = vrot.lane.b32.xlu0 %v649, 96
    %v675 = vpop.permute.xlu0 %674
    %676 = vrot.lane.b32.xlu0 %v651, 96
    %v677 = vpop.permute.xlu0 %676
    %678 = vrot.lane.b32.xlu0 %v653, 96
    %v679 = vpop.permute.xlu0 %678
    %680 = vrot.lane.b32.xlu0 %v655, 96
    %v681 = vpop.permute.xlu0 %680
    %682 = vrot.lane.b32.xlu0 %v657, 96
    %v683 = vpop.permute.xlu0 %682
    %684 = vrot.lane.b32.xlu0 %v659, 96
    %v685 = vpop.permute.xlu0 %684
    %686 = vrot.lane.b32.xlu0 %v661, 96
    %v687 = vpop.permute.xlu0 %686
    %688 = vrot.lane.b32.xlu0 %v663, 96
    %v689 = vpop.permute.xlu0 %688
    %690 = vrot.lane.b32.xlu0 %v665, 96
    %v691 = vpop.permute.xlu0 %690
    %692 = vrot.lane.b32.xlu0 %v667, 96
    %v693 = vpop.permute.xlu0 %692
    %v707 = vmul.f32 %v588, %v669
    %v708 = vmul.f32 %v592, %v671
    %v709 = vmul.f32 %v596, %v673
    %v710 = vmul.f32 %v600, %v675
    %v711 = vmul.f32 %v604, %v677
    %v712 = vmul.f32 %v608, %v679
    %v713 = vmul.f32 %v612, %v681
    %v714 = vmul.f32 %v616, %v683
    %v715 = vmul.f32 %v620, %v685
    %v716 = vmul.f32 %v624, %v687
    %v717 = vmul.f32 %v628, %v689
    %v718 = vmul.f32 %v632, %v691
    %v719 = vmul.f32 %v636, %v693
    %v720 = vadd.f32 %v571, %v707
    %v721 = vadd.f32 %v572, %v708
    %v722 = vadd.f32 %v573, %v709
    %v723 = vadd.f32 %v574, %v710
    %v724 = vadd.f32 %v575, %v711
    %v725 = vadd.f32 %v576, %v712
    %v726 = vadd.f32 %v577, %v713
    %v727 = vadd.f32 %v578, %v714
    %v728 = vadd.f32 %v579, %v715
    %v729 = vadd.f32 %v580, %v716
    %v730 = vadd.f32 %v581, %v717
    %v731 = vadd.f32 %v582, %v718
    %v732 = vadd.f32 %v583, %v719
    %v733 = vld [vmem:[#allocation2 + $0x18] sm:$0xc0]
    %v734 = vld [vmem:[#allocation2 + $0x30] sm:$0xff]
    %v735 = vld [vmem:[#allocation2 + $0x48] sm:$0xff]
    %v736 = vld [vmem:[#allocation2 + $0x60] sm:$0xff]
    %v737 = vld [vmem:[#allocation2 + $0x78] sm:$0xff]
    %v738 = vld [vmem:[#allocation2 + $0x90] sm:$0xff]
    %v739 = vld [vmem:[#allocation2 + $0xa8] sm:$0xff]
    %v740 = vld [vmem:[#allocation2 + $0xc0] sm:$0xff]
    %v741 = vld [vmem:[#allocation2 + $0xd8] sm:$0xff]
    %v742 = vld [vmem:[#allocation2 + $0xf0] sm:$0xff]
    %v743 = vld [vmem:[#allocation2 + $0x108] sm:$0xff]
    %v744 = vld [vmem:[#allocation2 + $0x120] sm:$0xff]
    %v745 = vld [vmem:[#allocation2 + $0x138] sm:$0xff]
    %v746 = vld [vmem:[#allocation2 + $0x150] sm:$0x3f]
    %747 = vset.pattern.permute.xlu0 3
    %748 = vperm.xlu0 %747, %v307
    %v749 = vpop.permute.xlu0 %748
    %751 = vset.pattern.permute.xlu0 3
    %752 = vperm.xlu0 %751, %v308
    %v753 = vpop.permute.xlu0 %752
    %755 = vset.pattern.permute.xlu0 3
    %756 = vperm.xlu0 %755, %v309
    %v757 = vpop.permute.xlu0 %756
    %759 = vset.pattern.permute.xlu0 3
    %760 = vperm.xlu0 %759, %v310
    %v761 = vpop.permute.xlu0 %760
    %763 = vset.pattern.permute.xlu0 3
    %764 = vperm.xlu0 %763, %v311
    %v765 = vpop.permute.xlu0 %764
    %767 = vset.pattern.permute.xlu0 3
    %768 = vperm.xlu0 %767, %v312
    %v769 = vpop.permute.xlu0 %768
    %771 = vset.pattern.permute.xlu0 3
    %772 = vperm.xlu0 %771, %v313
    %v773 = vpop.permute.xlu0 %772
    %775 = vset.pattern.permute.xlu0 3
    %776 = vperm.xlu0 %775, %v314
    %v777 = vpop.permute.xlu0 %776
    %779 = vset.pattern.permute.xlu0 3
    %780 = vperm.xlu0 %779, %v315
    %v781 = vpop.permute.xlu0 %780
    %783 = vset.pattern.permute.xlu0 3
    %784 = vperm.xlu0 %783, %v316
    %v785 = vpop.permute.xlu0 %784
    %787 = vset.pattern.permute.xlu0 3
    %788 = vperm.xlu0 %787, %v317
    %v789 = vpop.permute.xlu0 %788
    %791 = vset.pattern.permute.xlu0 3
    %792 = vperm.xlu0 %791, %v318
    %v793 = vpop.permute.xlu0 %792
    %795 = vset.pattern.permute.xlu0 3
    %796 = vperm.xlu0 %795, %v319
    %v797 = vpop.permute.xlu0 %796
    %vm813 = vcmask 1041408
    %v814 = vrot.slane %v733, 6
    %v815 = vrot.slane %v734, 6
    %v816 = vsel %vm813, %v814, %v815
    %v817 = vrot.slane %v735, 6
    %v818 = vsel %vm813, %v815, %v817
    %v819 = vrot.slane %v736, 6
    %v820 = vsel %vm813, %v817, %v819
    %v821 = vrot.slane %v737, 6
    %v822 = vsel %vm813, %v819, %v821
    %v823 = vrot.slane %v738, 6
    %v824 = vsel %vm813, %v821, %v823
    %v825 = vrot.slane %v739, 6
    %v826 = vsel %vm813, %v823, %v825
    %v827 = vrot.slane %v740, 6
    %v828 = vsel %vm813, %v825, %v827
    %v829 = vrot.slane %v741, 6
    %v830 = vsel %vm813, %v827, %v829
    %v831 = vrot.slane %v742, 6
    %v832 = vsel %vm813, %v829, %v831
    %v833 = vrot.slane %v743, 6
    %v834 = vsel %vm813, %v831, %v833
    %v835 = vrot.slane %v744, 6
    %v836 = vsel %vm813, %v833, %v835
    %v837 = vrot.slane %v745, 6
    %v838 = vsel %vm813, %v835, %v837
    %v839 = vrot.slane %v746, 6
    %v840 = vsel %vm813, %v837, %v839
    %841 = vrot.lane.b32.xlu0 %v816, 80
    %v842 = vpop.permute.xlu0 %841
    %843 = vrot.lane.b32.xlu0 %v818, 80
    %v844 = vpop.permute.xlu0 %843
    %845 = vrot.lane.b32.xlu0 %v820, 80
    %v846 = vpop.permute.xlu0 %845
    %847 = vrot.lane.b32.xlu0 %v822, 80
    %v848 = vpop.permute.xlu0 %847
    %849 = vrot.lane.b32.xlu0 %v824, 80
    %v850 = vpop.permute.xlu0 %849
    %851 = vrot.lane.b32.xlu0 %v826, 80
    %v852 = vpop.permute.xlu0 %851
    %853 = vrot.lane.b32.xlu0 %v828, 80
    %v854 = vpop.permute.xlu0 %853
    %855 = vrot.lane.b32.xlu0 %v830, 80
    %v856 = vpop.permute.xlu0 %855
    %857 = vrot.lane.b32.xlu0 %v832, 80
    %v858 = vpop.permute.xlu0 %857
    %859 = vrot.lane.b32.xlu0 %v834, 80
    %v860 = vpop.permute.xlu0 %859
    %861 = vrot.lane.b32.xlu0 %v836, 80
    %v862 = vpop.permute.xlu0 %861
    %863 = vrot.lane.b32.xlu0 %v838, 80
    %v864 = vpop.permute.xlu0 %863
    %865 = vrot.lane.b32.xlu0 %v840, 80
    %v866 = vpop.permute.xlu0 %865
    %v880 = vmul.f32 %v749, %v842
    %v881 = vmul.f32 %v753, %v844
    %v882 = vmul.f32 %v757, %v846
    %v883 = vmul.f32 %v761, %v848
    %v884 = vmul.f32 %v765, %v850
    %v885 = vmul.f32 %v769, %v852
    %v886 = vmul.f32 %v773, %v854
    %v887 = vmul.f32 %v777, %v856
    %v888 = vmul.f32 %v781, %v858
    %v889 = vmul.f32 %v785, %v860
    %v890 = vmul.f32 %v789, %v862
    %v891 = vmul.f32 %v793, %v864
    %v892 = vmul.f32 %v797, %v866
    %v893 = vadd.f32 %v720, %v880
    %v894 = vadd.f32 %v721, %v881
    %v895 = vadd.f32 %v722, %v882
    %v896 = vadd.f32 %v723, %v883
    %v897 = vadd.f32 %v724, %v884
    %v898 = vadd.f32 %v725, %v885
    %v899 = vadd.f32 %v726, %v886
    %v900 = vadd.f32 %v727, %v887
    %v901 = vadd.f32 %v728, %v888
    %v902 = vadd.f32 %v729, %v889
    %v903 = vadd.f32 %v730, %v890
    %v904 = vadd.f32 %v731, %v891
    %v905 = vadd.f32 %v732, %v892
    %v906 = vld [vmem:[#allocation2 + $0x150] sm:$0xff]
    %907 = vset.pattern.permute.xlu0 4
    %908 = vperm.xlu0 %907, %v307
    %v909 = vpop.permute.xlu0 %908
    %911 = vset.pattern.permute.xlu0 4
    %912 = vperm.xlu0 %911, %v308
    %v913 = vpop.permute.xlu0 %912
    %915 = vset.pattern.permute.xlu0 4
    %916 = vperm.xlu0 %915, %v309
    %v917 = vpop.permute.xlu0 %916
    %919 = vset.pattern.permute.xlu0 4
    %920 = vperm.xlu0 %919, %v310
    %v921 = vpop.permute.xlu0 %920
    %923 = vset.pattern.permute.xlu0 4
    %924 = vperm.xlu0 %923, %v311
    %v925 = vpop.permute.xlu0 %924
    %927 = vset.pattern.permute.xlu0 4
    %928 = vperm.xlu0 %927, %v312
    %v929 = vpop.permute.xlu0 %928
    %931 = vset.pattern.permute.xlu0 4
    %932 = vperm.xlu0 %931, %v313
    %v933 = vpop.permute.xlu0 %932
    %935 = vset.pattern.permute.xlu0 4
    %936 = vperm.xlu0 %935, %v314
    %v937 = vpop.permute.xlu0 %936
    %939 = vset.pattern.permute.xlu0 4
    %940 = vperm.xlu0 %939, %v315
    %v941 = vpop.permute.xlu0 %940
    %943 = vset.pattern.permute.xlu0 4
    %944 = vperm.xlu0 %943, %v316
    %v945 = vpop.permute.xlu0 %944
    %947 = vset.pattern.permute.xlu0 4
    %948 = vperm.xlu0 %947, %v317
    %v949 = vpop.permute.xlu0 %948
    %951 = vset.pattern.permute.xlu0 4
    %952 = vperm.xlu0 %951, %v318
    %v953 = vpop.permute.xlu0 %952
    %955 = vset.pattern.permute.xlu0 4
    %956 = vperm.xlu0 %955, %v319
    %v957 = vpop.permute.xlu0 %956
    %v959 = vmul.f32 %v909, %v734
    %v960 = vmul.f32 %v913, %v735
    %v961 = vmul.f32 %v917, %v736
    %v962 = vmul.f32 %v921, %v737
    %v963 = vmul.f32 %v925, %v738
    %v964 = vmul.f32 %v929, %v739
    %v965 = vmul.f32 %v933, %v740
    %v966 = vmul.f32 %v937, %v741
    %v967 = vmul.f32 %v941, %v742
    %v968 = vmul.f32 %v945, %v743
    %v969 = vmul.f32 %v949, %v744
    %v970 = vmul.f32 %v953, %v745
    %v971 = vmul.f32 %v957, %v906
    %985 = vrot.lane.b32.xlu0 %v959, 64
    %v986 = vpop.permute.xlu0 %985
    %987 = vrot.lane.b32.xlu0 %v960, 64
    %v988 = vpop.permute.xlu0 %987
    %989 = vrot.lane.b32.xlu0 %v961, 64
    %v990 = vpop.permute.xlu0 %989
    %991 = vrot.lane.b32.xlu0 %v962, 64
    %v992 = vpop.permute.xlu0 %991
    %993 = vrot.lane.b32.xlu0 %v963, 64
    %v994 = vpop.permute.xlu0 %993
    %995 = vrot.lane.b32.xlu0 %v964, 64
    %v996 = vpop.permute.xlu0 %995
    %997 = vrot.lane.b32.xlu0 %v965, 64
    %v998 = vpop.permute.xlu0 %997
    %999 = vrot.lane.b32.xlu0 %v966, 64
    %v1000 = vpop.permute.xlu0 %999
    %1001 = vrot.lane.b32.xlu0 %v967, 64
    %v1002 = vpop.permute.xlu0 %1001
    %1003 = vrot.lane.b32.xlu0 %v968, 64
    %v1004 = vpop.permute.xlu0 %1003
    %1005 = vrot.lane.b32.xlu0 %v969, 64
    %v1006 = vpop.permute.xlu0 %1005
    %1007 = vrot.lane.b32.xlu0 %v970, 64
    %v1008 = vpop.permute.xlu0 %1007
    %1009 = vrot.lane.b32.xlu0 %v971, 64
    %v1010 = vpop.permute.xlu0 %1009
    %v1024 = vadd.f32 %v893, %v986
    %v1025 = vadd.f32 %v894, %v988
    %v1026 = vadd.f32 %v895, %v990
    %v1027 = vadd.f32 %v896, %v992
    %v1028 = vadd.f32 %v897, %v994
    %v1029 = vadd.f32 %v898, %v996
    %v1030 = vadd.f32 %v899, %v998
    %v1031 = vadd.f32 %v900, %v1000
    %v1032 = vadd.f32 %v901, %v1002
    %v1033 = vadd.f32 %v902, %v1004
    %v1034 = vadd.f32 %v903, %v1006
    %v1035 = vadd.f32 %v904, %v1008
    %v1036 = vadd.f32 %v905, %v1010
    %v1037 = vld [vmem:[#allocation2 + $0x30] sm:$0xfc]
    %v1038 = vld [vmem:[#allocation2 + $0x48] sm:$0xff]
    %v1039 = vld [vmem:[#allocation2 + $0x60] sm:$0xff]
    %v1040 = vld [vmem:[#allocation2 + $0x78] sm:$0xff]
    %v1041 = vld [vmem:[#allocation2 + $0x90] sm:$0xff]
    %v1042 = vld [vmem:[#allocation2 + $0xa8] sm:$0xff]
    %v1043 = vld [vmem:[#allocation2 + $0xc0] sm:$0xff]
    %v1044 = vld [vmem:[#allocation2 + $0xd8] sm:$0xff]
    %v1045 = vld [vmem:[#allocation2 + $0xf0] sm:$0xff]
    %v1046 = vld [vmem:[#allocation2 + $0x108] sm:$0xff]
    %v1047 = vld [vmem:[#allocation2 + $0x120] sm:$0xff]
    %v1048 = vld [vmem:[#allocation2 + $0x138] sm:$0xff]
    %v1049 = vld [vmem:[#allocation2 + $0x150] sm:$0xff]
    %v1050 = vld [vmem:[#allocation2 + $0x168] sm:$0x3]
    %1051 = vset.pattern.permute.xlu0 5
    %1052 = vperm.xlu0 %1051, %v307
    %v1053 = vpop.permute.xlu0 %1052
    %1055 = vset.pattern.permute.xlu0 5
    %1056 = vperm.xlu0 %1055, %v308
    %v1057 = vpop.permute.xlu0 %1056
    %1059 = vset.pattern.permute.xlu0 5
    %1060 = vperm.xlu0 %1059, %v309
    %v1061 = vpop.permute.xlu0 %1060
    %1063 = vset.pattern.permute.xlu0 5
    %1064 = vperm.xlu0 %1063, %v310
    %v1065 = vpop.permute.xlu0 %1064
    %1067 = vset.pattern.permute.xlu0 5
    %1068 = vperm.xlu0 %1067, %v311
    %v1069 = vpop.permute.xlu0 %1068
    %1071 = vset.pattern.permute.xlu0 5
    %1072 = vperm.xlu0 %1071, %v312
    %v1073 = vpop.permute.xlu0 %1072
    %1075 = vset.pattern.permute.xlu0 5
    %1076 = vperm.xlu0 %1075, %v313
    %v1077 = vpop.permute.xlu0 %1076
    %1079 = vset.pattern.permute.xlu0 5
    %1080 = vperm.xlu0 %1079, %v314
    %v1081 = vpop.permute.xlu0 %1080
    %1083 = vset.pattern.permute.xlu0 5
    %1084 = vperm.xlu0 %1083, %v315
    %v1085 = vpop.permute.xlu0 %1084
    %1087 = vset.pattern.permute.xlu0 5
    %1088 = vperm.xlu0 %1087, %v316
    %v1089 = vpop.permute.xlu0 %1088
    %1091 = vset.pattern.permute.xlu0 5
    %1092 = vperm.xlu0 %1091, %v317
    %v1093 = vpop.permute.xlu0 %1092
    %1095 = vset.pattern.permute.xlu0 5
    %1096 = vperm.xlu0 %1095, %v318
    %v1097 = vpop.permute.xlu0 %1096
    %1099 = vset.pattern.permute.xlu0 5
    %1100 = vperm.xlu0 %1099, %v319
    %v1101 = vpop.permute.xlu0 %1100
    %v1117 = vrot.slane %v1037, 2
    %v1118 = vrot.slane %v1038, 2
    %v1119 = vsel %vm491, %v1117, %v1118
    %v1120 = vrot.slane %v1039, 2
    %v1121 = vsel %vm491, %v1118, %v1120
    %v1122 = vrot.slane %v1040, 2
    %v1123 = vsel %vm491, %v1120, %v1122
    %v1124 = vrot.slane %v1041, 2
    %v1125 = vsel %vm491, %v1122, %v1124
    %v1126 = vrot.slane %v1042, 2
    %v1127 = vsel %vm491, %v1124, %v1126
    %v1128 = vrot.slane %v1043, 2
    %v1129 = vsel %vm491, %v1126, %v1128
    %v1130 = vrot.slane %v1044, 2
    %v1131 = vsel %vm491, %v1128, %v1130
    %v1132 = vrot.slane %v1045, 2
    %v1133 = vsel %vm491, %v1130, %v1132
    %v1134 = vrot.slane %v1046, 2
    %v1135 = vsel %vm491, %v1132, %v1134
    %v1136 = vrot.slane %v1047, 2
    %v1137 = vsel %vm491, %v1134, %v1136
    %v1138 = vrot.slane %v1048, 2
    %v1139 = vsel %vm491, %v1136, %v1138
    %v1140 = vrot.slane %v1049, 2
    %v1141 = vsel %vm491, %v1138, %v1140
    %v1142 = vrot.slane %v1050, 2
    %v1143 = vsel %vm491, %v1140, %v1142
    %1144 = vrot.lane.b32.xlu0 %v1119, 48
    %v1145 = vpop.permute.xlu0 %1144
    %1146 = vrot.lane.b32.xlu0 %v1121, 48
    %v1147 = vpop.permute.xlu0 %1146
    %1148 = vrot.lane.b32.xlu0 %v1123, 48
    %v1149 = vpop.permute.xlu0 %1148
    %1150 = vrot.lane.b32.xlu0 %v1125, 48
    %v1151 = vpop.permute.xlu0 %1150
    %1152 = vrot.lane.b32.xlu0 %v1127, 48
    %v1153 = vpop.permute.xlu0 %1152
    %1154 = vrot.lane.b32.xlu0 %v1129, 48
    %v1155 = vpop.permute.xlu0 %1154
    %1156 = vrot.lane.b32.xlu0 %v1131, 48
    %v1157 = vpop.permute.xlu0 %1156
    %1158 = vrot.lane.b32.xlu0 %v1133, 48
    %v1159 = vpop.permute.xlu0 %1158
    %1160 = vrot.lane.b32.xlu0 %v1135, 48
    %v1161 = vpop.permute.xlu0 %1160
    %1162 = vrot.lane.b32.xlu0 %v1137, 48
    %v1163 = vpop.permute.xlu0 %1162
    %1164 = vrot.lane.b32.xlu0 %v1139, 48
    %v1165 = vpop.permute.xlu0 %1164
    %1166 = vrot.lane.b32.xlu0 %v1141, 48
    %v1167 = vpop.permute.xlu0 %1166
    %1168 = vrot.lane.b32.xlu0 %v1143, 48
    %v1169 = vpop.permute.xlu0 %1168
    %v1183 = vmul.f32 %v1053, %v1145
    %v1184 = vmul.f32 %v1057, %v1147
    %v1185 = vmul.f32 %v1061, %v1149
    %v1186 = vmul.f32 %v1065, %v1151
    %v1187 = vmul.f32 %v1069, %v1153
    %v1188 = vmul.f32 %v1073, %v1155
    %v1189 = vmul.f32 %v1077, %v1157
    %v1190 = vmul.f32 %v1081, %v1159
    %v1191 = vmul.f32 %v1085, %v1161
    %v1192 = vmul.f32 %v1089, %v1163
    %v1193 = vmul.f32 %v1093, %v1165
    %v1194 = vmul.f32 %v1097, %v1167
    %v1195 = vmul.f32 %v1101, %v1169
    %v1196 = vadd.f32 %v1024, %v1183
    %v1197 = vadd.f32 %v1025, %v1184
    %v1198 = vadd.f32 %v1026, %v1185
    %v1199 = vadd.f32 %v1027, %v1186
    %v1200 = vadd.f32 %v1028, %v1187
    %v1201 = vadd.f32 %v1029, %v1188
    %v1202 = vadd.f32 %v1030, %v1189
    %v1203 = vadd.f32 %v1031, %v1190
    %v1204 = vadd.f32 %v1032, %v1191
    %v1205 = vadd.f32 %v1033, %v1192
    %v1206 = vadd.f32 %v1034, %v1193
    %v1207 = vadd.f32 %v1035, %v1194
    %v1208 = vadd.f32 %v1036, %v1195
    %v1209 = vld [vmem:[#allocation2 + $0x48] sm:$0xf0]
    %v1210 = vld [vmem:[#allocation2 + $0x60] sm:$0xff]
    %v1211 = vld [vmem:[#allocation2 + $0x78] sm:$0xff]
    %v1212 = vld [vmem:[#allocation2 + $0x90] sm:$0xff]
    %v1213 = vld [vmem:[#allocation2 + $0xa8] sm:$0xff]
    %v1214 = vld [vmem:[#allocation2 + $0xc0] sm:$0xff]
    %v1215 = vld [vmem:[#allocation2 + $0xd8] sm:$0xff]
    %v1216 = vld [vmem:[#allocation2 + $0xf0] sm:$0xff]
    %v1217 = vld [vmem:[#allocation2 + $0x108] sm:$0xff]
    %v1218 = vld [vmem:[#allocation2 + $0x120] sm:$0xff]
    %v1219 = vld [vmem:[#allocation2 + $0x138] sm:$0xff]
    %v1220 = vld [vmem:[#allocation2 + $0x150] sm:$0xff]
    %v1221 = vld [vmem:[#allocation2 + $0x168] sm:$0xff]
    %v1222 = vld [vmem:[#allocation2 + $0x180] sm:$0xf]
    %1223 = vset.pattern.permute.xlu0 6
    %1224 = vperm.xlu0 %1223, %v307
    %v1225 = vpop.permute.xlu0 %1224
    %1227 = vset.pattern.permute.xlu0 6
    %1228 = vperm.xlu0 %1227, %v308
    %v1229 = vpop.permute.xlu0 %1228
    %1231 = vset.pattern.permute.xlu0 6
    %1232 = vperm.xlu0 %1231, %v309
    %v1233 = vpop.permute.xlu0 %1232
    %1235 = vset.pattern.permute.xlu0 6
    %1236 = vperm.xlu0 %1235, %v310
    %v1237 = vpop.permute.xlu0 %1236
    %1239 = vset.pattern.permute.xlu0 6
    %1240 = vperm.xlu0 %1239, %v311
    %v1241 = vpop.permute.xlu0 %1240
    %1243 = vset.pattern.permute.xlu0 6
    %1244 = vperm.xlu0 %1243, %v312
    %v1245 = vpop.permute.xlu0 %1244
    %1247 = vset.pattern.permute.xlu0 6
    %1248 = vperm.xlu0 %1247, %v313
    %v1249 = vpop.permute.xlu0 %1248
    %1251 = vset.pattern.permute.xlu0 6
    %1252 = vperm.xlu0 %1251, %v314
    %v1253 = vpop.permute.xlu0 %1252
    %1255 = vset.pattern.permute.xlu0 6
    %1256 = vperm.xlu0 %1255, %v315
    %v1257 = vpop.permute.xlu0 %1256
    %1259 = vset.pattern.permute.xlu0 6
    %1260 = vperm.xlu0 %1259, %v316
    %v1261 = vpop.permute.xlu0 %1260
    %1263 = vset.pattern.permute.xlu0 6
    %1264 = vperm.xlu0 %1263, %v317
    %v1265 = vpop.permute.xlu0 %1264
    %1267 = vset.pattern.permute.xlu0 6
    %1268 = vperm.xlu0 %1267, %v318
    %v1269 = vpop.permute.xlu0 %1268
    %1271 = vset.pattern.permute.xlu0 6
    %1272 = vperm.xlu0 %1271, %v319
    %v1273 = vpop.permute.xlu0 %1272
    %v1289 = vrot.slane %v1209, 4
    %v1290 = vrot.slane %v1210, 4
    %v1291 = vsel %vm640, %v1289, %v1290
    %v1292 = vrot.slane %v1211, 4
    %v1293 = vsel %vm640, %v1290, %v1292
    %v1294 = vrot.slane %v1212, 4
    %v1295 = vsel %vm640, %v1292, %v1294
    %v1296 = vrot.slane %v1213, 4
    %v1297 = vsel %vm640, %v1294, %v1296
    %v1298 = vrot.slane %v1214, 4
    %v1299 = vsel %vm640, %v1296, %v1298
    %v1300 = vrot.slane %v1215, 4
    %v1301 = vsel %vm640, %v1298, %v1300
    %v1302 = vrot.slane %v1216, 4
    %v1303 = vsel %vm640, %v1300, %v1302
    %v1304 = vrot.slane %v1217, 4
    %v1305 = vsel %vm640, %v1302, %v1304
    %v1306 = vrot.slane %v1218, 4
    %v1307 = vsel %vm640, %v1304, %v1306
    %v1308 = vrot.slane %v1219, 4
    %v1309 = vsel %vm640, %v1306, %v1308
    %v1310 = vrot.slane %v1220, 4
    %v1311 = vsel %vm640, %v1308, %v1310
    %v1312 = vrot.slane %v1221, 4
    %v1313 = vsel %vm640, %v1310, %v1312
    %v1314 = vrot.slane %v1222, 4
    %v1315 = vsel %vm640, %v1312, %v1314
    %1316 = vrot.lane.b32.xlu0 %v1291, 32
    %v1317 = vpop.permute.xlu0 %1316
    %1318 = vrot.lane.b32.xlu0 %v1293, 32
    %v1319 = vpop.permute.xlu0 %1318
    %1320 = vrot.lane.b32.xlu0 %v1295, 32
    %v1321 = vpop.permute.xlu0 %1320
    %1322 = vrot.lane.b32.xlu0 %v1297, 32
    %v1323 = vpop.permute.xlu0 %1322
    %1324 = vrot.lane.b32.xlu0 %v1299, 32
    %v1325 = vpop.permute.xlu0 %1324
    %1326 = vrot.lane.b32.xlu0 %v1301, 32
    %v1327 = vpop.permute.xlu0 %1326
    %1328 = vrot.lane.b32.xlu0 %v1303, 32
    %v1329 = vpop.permute.xlu0 %1328
    %1330 = vrot.lane.b32.xlu0 %v1305, 32
    %v1331 = vpop.permute.xlu0 %1330
    %1332 = vrot.lane.b32.xlu0 %v1307, 32
    %v1333 = vpop.permute.xlu0 %1332
    %1334 = vrot.lane.b32.xlu0 %v1309, 32
    %v1335 = vpop.permute.xlu0 %1334
    %1336 = vrot.lane.b32.xlu0 %v1311, 32
    %v1337 = vpop.permute.xlu0 %1336
    %1338 = vrot.lane.b32.xlu0 %v1313, 32
    %v1339 = vpop.permute.xlu0 %1338
    %1340 = vrot.lane.b32.xlu0 %v1315, 32
    %v1341 = vpop.permute.xlu0 %1340
    %v1355 = vmul.f32 %v1225, %v1317
    %v1356 = vmul.f32 %v1229, %v1319
    %v1357 = vmul.f32 %v1233, %v1321
    %v1358 = vmul.f32 %v1237, %v1323
    %v1359 = vmul.f32 %v1241, %v1325
    %v1360 = vmul.f32 %v1245, %v1327
    %v1361 = vmul.f32 %v1249, %v1329
    %v1362 = vmul.f32 %v1253, %v1331
    %v1363 = vmul.f32 %v1257, %v1333
    %v1364 = vmul.f32 %v1261, %v1335
    %v1365 = vmul.f32 %v1265, %v1337
    %v1366 = vmul.f32 %v1269, %v1339
    %v1367 = vmul.f32 %v1273, %v1341
    %v1368 = vadd.f32 %v1196, %v1355
    %v1369 = vadd.f32 %v1197, %v1356
    %v1370 = vadd.f32 %v1198, %v1357
    %v1371 = vadd.f32 %v1199, %v1358
    %v1372 = vadd.f32 %v1200, %v1359
    %v1373 = vadd.f32 %v1201, %v1360
    %v1374 = vadd.f32 %v1202, %v1361
    %v1375 = vadd.f32 %v1203, %v1362
    %v1376 = vadd.f32 %v1204, %v1363
    %v1377 = vadd.f32 %v1205, %v1364
    %v1378 = vadd.f32 %v1206, %v1365
    %v1379 = vadd.f32 %v1207, %v1366
    %v1380 = vadd.f32 %v1208, %v1367
    %v1381 = vld [vmem:[#allocation2 + $0x48] sm:$0xc0]
    %v1382 = vld [vmem:[#allocation2 + $0x180] sm:$0x3f]
    %1383 = vset.pattern.permute.xlu0 7
    %1384 = vperm.xlu0 %1383, %v307
    %v1385 = vpop.permute.xlu0 %1384
    %1387 = vset.pattern.permute.xlu0 7
    %1388 = vperm.xlu0 %1387, %v308
    %v1389 = vpop.permute.xlu0 %1388
    %1391 = vset.pattern.permute.xlu0 7
    %1392 = vperm.xlu0 %1391, %v309
    %v1393 = vpop.permute.xlu0 %1392
    %1395 = vset.pattern.permute.xlu0 7
    %1396 = vperm.xlu0 %1395, %v310
    %v1397 = vpop.permute.xlu0 %1396
    %1399 = vset.pattern.permute.xlu0 7
    %1400 = vperm.xlu0 %1399, %v311
    %v1401 = vpop.permute.xlu0 %1400
    %1403 = vset.pattern.permute.xlu0 7
    %1404 = vperm.xlu0 %1403, %v312
    %v1405 = vpop.permute.xlu0 %1404
    %1407 = vset.pattern.permute.xlu0 7
    %1408 = vperm.xlu0 %1407, %v313
    %v1409 = vpop.permute.xlu0 %1408
    %1411 = vset.pattern.permute.xlu0 7
    %1412 = vperm.xlu0 %1411, %v314
    %v1413 = vpop.permute.xlu0 %1412
    %1415 = vset.pattern.permute.xlu0 7
    %1416 = vperm.xlu0 %1415, %v315
    %v1417 = vpop.permute.xlu0 %1416
    %1419 = vset.pattern.permute.xlu0 7
    %1420 = vperm.xlu0 %1419, %v316
    %v1421 = vpop.permute.xlu0 %1420
    %1423 = vset.pattern.permute.xlu0 7
    %1424 = vperm.xlu0 %1423, %v317
    %v1425 = vpop.permute.xlu0 %1424
    %1427 = vset.pattern.permute.xlu0 7
    %1428 = vperm.xlu0 %1427, %v318
    %v1429 = vpop.permute.xlu0 %1428
    %1431 = vset.pattern.permute.xlu0 7
    %1432 = vperm.xlu0 %1431, %v319
    %v1433 = vpop.permute.xlu0 %1432
    %v1437 = vrot.slane %v1381, 6
    %v1438 = vrot.slane %v1210, 6
    %v1439 = vsel %vm813, %v1437, %v1438
    %v1440 = vrot.slane %v1211, 6
    %v1441 = vsel %vm813, %v1438, %v1440
    %v1442 = vrot.slane %v1212, 6
    %v1443 = vsel %vm813, %v1440, %v1442
    %v1444 = vrot.slane %v1213, 6
    %v1445 = vsel %vm813, %v1442, %v1444
    %v1446 = vrot.slane %v1214, 6
    %v1447 = vsel %vm813, %v1444, %v1446
    %v1448 = vrot.slane %v1215, 6
    %v1449 = vsel %vm813, %v1446, %v1448
    %v1450 = vrot.slane %v1216, 6
    %v1451 = vsel %vm813, %v1448, %v1450
    %v1452 = vrot.slane %v1217, 6
    %v1453 = vsel %vm813, %v1450, %v1452
    %v1454 = vrot.slane %v1218, 6
    %v1455 = vsel %vm813, %v1452, %v1454
    %v1456 = vrot.slane %v1219, 6
    %v1457 = vsel %vm813, %v1454, %v1456
    %v1458 = vrot.slane %v1220, 6
    %v1459 = vsel %vm813, %v1456, %v1458
    %v1460 = vrot.slane %v1221, 6
    %v1461 = vsel %vm813, %v1458, %v1460
    %v1462 = vrot.slane %v1382, 6
    %v1463 = vsel %vm813, %v1460, %v1462
    %1464 = vrot.lane.b32.xlu0 %v1439, 16
    %v1465 = vpop.permute.xlu0 %1464
    %1466 = vrot.lane.b32.xlu0 %v1441, 16
    %v1467 = vpop.permute.xlu0 %1466
    %1468 = vrot.lane.b32.xlu0 %v1443, 16
    %v1469 = vpop.permute.xlu0 %1468
    %1470 = vrot.lane.b32.xlu0 %v1445, 16
    %v1471 = vpop.permute.xlu0 %1470
    %1472 = vrot.lane.b32.xlu0 %v1447, 16
    %v1473 = vpop.permute.xlu0 %1472
    %1474 = vrot.lane.b32.xlu0 %v1449, 16
    %v1475 = vpop.permute.xlu0 %1474
    %1476 = vrot.lane.b32.xlu0 %v1451, 16
    %v1477 = vpop.permute.xlu0 %1476
    %1478 = vrot.lane.b32.xlu0 %v1453, 16
    %v1479 = vpop.permute.xlu0 %1478
    %1480 = vrot.lane.b32.xlu0 %v1455, 16
    %v1481 = vpop.permute.xlu0 %1480
    %1482 = vrot.lane.b32.xlu0 %v1457, 16
    %v1483 = vpop.permute.xlu0 %1482
    %1484 = vrot.lane.b32.xlu0 %v1459, 16
    %v1485 = vpop.permute.xlu0 %1484
    %1486 = vrot.lane.b32.xlu0 %v1461, 16
    %v1487 = vpop.permute.xlu0 %1486
    %1488 = vrot.lane.b32.xlu0 %v1463, 16
    %v1489 = vpop.permute.xlu0 %1488
    %v1503 = vmul.f32 %v1385, %v1465
    %v1504 = vmul.f32 %v1389, %v1467
    %v1505 = vmul.f32 %v1393, %v1469
    %v1506 = vmul.f32 %v1397, %v1471
    %v1507 = vmul.f32 %v1401, %v1473
    %v1508 = vmul.f32 %v1405, %v1475
    %v1509 = vmul.f32 %v1409, %v1477
    %v1510 = vmul.f32 %v1413, %v1479
    %v1511 = vmul.f32 %v1417, %v1481
    %v1512 = vmul.f32 %v1421, %v1483
    %v1513 = vmul.f32 %v1425, %v1485
    %v1514 = vmul.f32 %v1429, %v1487
    %v1515 = vmul.f32 %v1433, %v1489
    %v1516 = vadd.f32 %v1368, %v1503
    %v1517 = vadd.f32 %v1369, %v1504
    %v1518 = vadd.f32 %v1370, %v1505
    %v1519 = vadd.f32 %v1371, %v1506
    %v1520 = vadd.f32 %v1372, %v1507
    %v1521 = vadd.f32 %v1373, %v1508
    %v1522 = vadd.f32 %v1374, %v1509
    %v1523 = vadd.f32 %v1375, %v1510
    %v1524 = vadd.f32 %v1376, %v1511
    %v1525 = vadd.f32 %v1377, %v1512
    %v1526 = vadd.f32 %v1378, %v1513
    %v1527 = vadd.f32 %v1379, %v1514
    %v1528 = vadd.f32 %v1380, %v1515
    %v1529 = vld [vmem:[#allocation2 + $0x68] sm:$0xff]
    %v1530 = vld [vmem:[#allocation2 + $0x80] sm:$0xff]
    %v1531 = vld [vmem:[#allocation2 + $0x98] sm:$0xff]
    %v1532 = vld [vmem:[#allocation2 + $0xb0] sm:$0xff]
    %v1533 = vld [vmem:[#allocation2 + $0xc8] sm:$0xff]
    %v1534 = vld [vmem:[#allocation2 + $0xe0] sm:$0xff]
    %v1535 = vld [vmem:[#allocation2 + $0xf8] sm:$0xff]
    %v1536 = vld [vmem:[#allocation2 + $0x110] sm:$0xff]
    %v1537 = vld [vmem:[#allocation2 + $0x128] sm:$0xff]
    %v1538 = vld [vmem:[#allocation2 + $0x140] sm:$0xff]
    %v1539 = vld [vmem:[#allocation2 + $0x158] sm:$0xff]
    %v1540 = vld [vmem:[#allocation2 + $0x170] sm:$0xff]
    %v1541 = vld [vmem:[#allocation2 + $0x188] sm:$0xff]
    %1542 = vset.pattern.permute.xlu0 8
    %1543 = vperm.xlu0 %1542, %v307
    %v1544 = vpop.permute.xlu0 %1543
    %1546 = vset.pattern.permute.xlu0 8
    %1547 = vperm.xlu0 %1546, %v308
    %v1548 = vpop.permute.xlu0 %1547
    %1550 = vset.pattern.permute.xlu0 8
    %1551 = vperm.xlu0 %1550, %v309
    %v1552 = vpop.permute.xlu0 %1551
    %1554 = vset.pattern.permute.xlu0 8
    %1555 = vperm.xlu0 %1554, %v310
    %v1556 = vpop.permute.xlu0 %1555
    %1558 = vset.pattern.permute.xlu0 8
    %1559 = vperm.xlu0 %1558, %v311
    %v1560 = vpop.permute.xlu0 %1559
    %1562 = vset.pattern.permute.xlu0 8
    %1563 = vperm.xlu0 %1562, %v312
    %v1564 = vpop.permute.xlu0 %1563
    %1566 = vset.pattern.permute.xlu0 8
    %1567 = vperm.xlu0 %1566, %v313
    %v1568 = vpop.permute.xlu0 %1567
    %1570 = vset.pattern.permute.xlu0 8
    %1571 = vperm.xlu0 %1570, %v314
    %v1572 = vpop.permute.xlu0 %1571
    %1574 = vset.pattern.permute.xlu0 8
    %1575 = vperm.xlu0 %1574, %v315
    %v1576 = vpop.permute.xlu0 %1575
    %1578 = vset.pattern.permute.xlu0 8
    %1579 = vperm.xlu0 %1578, %v316
    %v1580 = vpop.permute.xlu0 %1579
    %1582 = vset.pattern.permute.xlu0 8
    %1583 = vperm.xlu0 %1582, %v317
    %v1584 = vpop.permute.xlu0 %1583
    %1586 = vset.pattern.permute.xlu0 8
    %1587 = vperm.xlu0 %1586, %v318
    %v1588 = vpop.permute.xlu0 %1587
    %1590 = vset.pattern.permute.xlu0 8
    %1591 = vperm.xlu0 %1590, %v319
    %v1592 = vpop.permute.xlu0 %1591
    %v1594 = vmul.f32 %v1544, %v1529
    %v1595 = vmul.f32 %v1548, %v1530
    %v1596 = vmul.f32 %v1552, %v1531
    %v1597 = vmul.f32 %v1556, %v1532
    %v1598 = vmul.f32 %v1560, %v1533
    %v1599 = vmul.f32 %v1564, %v1534
    %v1600 = vmul.f32 %v1568, %v1535
    %v1601 = vmul.f32 %v1572, %v1536
    %v1602 = vmul.f32 %v1576, %v1537
    %v1603 = vmul.f32 %v1580, %v1538
    %v1604 = vmul.f32 %v1584, %v1539
    %v1605 = vmul.f32 %v1588, %v1540
    %v1606 = vmul.f32 %v1592, %v1541
    %v1607 = vadd.f32 %v1516, %v1594
    %v1608 = vadd.f32 %v1517, %v1595
    %v1609 = vadd.f32 %v1518, %v1596
    %v1610 = vadd.f32 %v1519, %v1597
    %v1611 = vadd.f32 %v1520, %v1598
    %v1612 = vadd.f32 %v1521, %v1599
    %v1613 = vadd.f32 %v1522, %v1600
    %v1614 = vadd.f32 %v1523, %v1601
    %v1615 = vadd.f32 %v1524, %v1602
    %v1616 = vadd.f32 %v1525, %v1603
    %v1617 = vadd.f32 %v1526, %v1604
    %v1618 = vadd.f32 %v1527, %v1605
    %v1619 = vadd.f32 %v1528, %v1606
    %v1620 = vld [vmem:[%s3] sm:$0x1]
    %v1622 = vlaneseq
    %v1623 = vshrl.u32 %v1622, 7
    %v1624 = vsub.s32 0, %v1623
    %v1625 = vrot.slane %v1620, %v1624
    %v1627 = vadd.f32 %v1607, %v1625
    %v1628 = vadd.f32 %v1608, %v1625
    %v1629 = vadd.f32 %v1609, %v1625
    %v1630 = vadd.f32 %v1610, %v1625
    %v1631 = vadd.f32 %v1611, %v1625
    %v1632 = vadd.f32 %v1612, %v1625
    %v1633 = vadd.f32 %v1613, %v1625
    %v1634 = vadd.f32 %v1614, %v1625
    %v1635 = vadd.f32 %v1615, %v1625
    %v1636 = vadd.f32 %v1616, %v1625
    %v1637 = vadd.f32 %v1617, %v1625
    %v1638 = vadd.f32 %v1618, %v1625
    %v1639 = vadd.f32 %v1619, %v1625
    %v1640 = vmax.f32 %v1627, 0.0
    %v1641 = vmax.f32 %v1628, 0.0
    %v1642 = vmax.f32 %v1629, 0.0
    %v1643 = vmax.f32 %v1630, 0.0
    %v1644 = vmax.f32 %v1631, 0.0
    %v1645 = vmax.f32 %v1632, 0.0
    %v1646 = vmax.f32 %v1633, 0.0
    %v1647 = vmax.f32 %v1634, 0.0
    %v1648 = vmax.f32 %v1635, 0.0
    %v1649 = vmax.f32 %v1636, 0.0
    %v1650 = vmax.f32 %v1637, 0.0
    %v1651 = vmax.f32 %v1638, 0.0
    %v1652 = vmax.f32 %v1639, 0.0
    %v1653 = vld [vmem:[%s4] sm:$0xff]
    %v1654 = vld [vmem:[%s4 + $0x8] sm:$0xff]
    %v1655 = vld [vmem:[%s4 + $0x10] sm:$0xff]
    %v1656 = vld [vmem:[%s4 + $0x18] sm:$0xff]
    %v1657 = vld [vmem:[%s4 + $0x20] sm:$0xff]
    %v1658 = vld [vmem:[%s4 + $0x28] sm:$0xff]
    %v1660 = vsel %vm268, %v1640, 0
    %v1663 = vsel %vm268, %v1641, 0
    %v1666 = vsel %vm268, %v1642, 0
    %v1669 = vsel %vm268, %v1643, 0
    %v1672 = vsel %vm268, %v1644, 0
    %v1675 = vsel %vm268, %v1645, 0
    %v1678 = vsel %vm268, %v1646, 0
    %v1681 = vsel %vm268, %v1647, 0
    %v1684 = vsel %vm268, %v1648, 0
    %v1687 = vsel %vm268, %v1649, 0
    %v1690 = vsel %vm268, %v1650, 0
    %v1693 = vsel %vm268, %v1651, 0
    %v1696 = vsel %vm268, %v1652, 0
    %1698 = vmatprep.subr.mxu0 %v1654
    %1699 = vmatpush1.msra.mxu0 %v1653
    %1700 = vmatprep.subr.mxu0 %v1657
    %1701 = vmatpush1.msra.mxu0 %v1656
    %1702 = vmatprep.subr.mxu0 0.0
    %1703 = vmatpush1.msra.mxu0 0.0
    %1704 = vmatprep.subr.mxu0 0.0
    %1705 = vmatpush1.msra.mxu0 0.0
    %1706 = vmatprep.subr.mxu0 0.0
    %1707 = vmatpush1.msra.mxu0 0.0
    %1708 = vmatprep.subr.mxu0 0.0
    %1709 = vmatpush1.msra.mxu0 0.0
    %1710 = vmatprep.subr.mxu0 0.0
    %1711 = vmatpush1.msra.mxu0 0.0
    %1712 = vmatprep.subr.mxu0 0.0
    %1713 = vmatpush1.msra.mxu0 0.0
    %1714 = vmatprep.subr.mxu0 0.0
    %1715 = vmatpush1.msra.mxu0 0.0
    %1716 = vmatprep.subr.mxu0 0.0
    %1717 = vmatpush1.msra.mxu0 0.0
    %1718 = vmatprep.subr.mxu0 0.0
    %1719 = vmatpush1.msra.mxu0 0.0
    %1720 = vmatprep.subr.mxu0 0.0
    %1721 = vmatpush1.msra.mxu0 0.0
    %1722 = vmatprep.subr.mxu0 0.0
    %1723 = vmatpush1.msra.mxu0 0.0
    %1724 = vmatprep.subr.mxu0 0.0
    %1725 = vmatpush1.msra.mxu0 0.0
    %1726 = vmatprep.subr.mxu0 0.0
    %1727 = vmatpush1.msra.mxu0 0.0
    %1728 = vmatprep.subr.mxu0 0.0
    %1729 = vmatpush1.msra.mxu0 0.0
    %1730 = vmatprep.subr.mxu0 0.0
    %1731 = vmatpush1.msra.mxu0 0.0
    %1732 = vmatprep.subr.mxu0 0.0
    %1733 = vmatpush1.msra.mxu0 0.0
    %1734 = vmatprep.subr.mxu0 0.0
    %1735 = vmatpush1.msra.mxu0 0.0
    %1736 = vmatprep.subr.mxu0 0.0
    %1737 = vmatpush1.msra.mxu0 0.0
    %1738 = vmatprep.subr.mxu0 0.0
    %1739 = vmatpush1.msra.mxu0 0.0
    %1740 = vmatprep.subr.mxu0 0.0
    %1741 = vmatpush1.msra.mxu0 0.0
    %1742 = vmatprep.subr.mxu0 0.0
    %1743 = vmatpush1.msra.mxu0 0.0
    %1744 = vmatprep.subr.mxu0 0.0
    %1745 = vmatpush1.msra.mxu0 0.0
    %1746 = vmatprep.subr.mxu0 0.0
    %1747 = vmatpush1.msra.mxu0 0.0
    %1748 = vmatprep.subr.mxu0 0.0
    %1749 = vmatpush1.msra.mxu0 0.0
    %1750 = vmatprep.subr.mxu0 0.0
    %1751 = vmatpush1.msra.mxu0 0.0
    %1752 = vmatprep.subr.mxu0 0.0
    %1753 = vmatpush1.msra.mxu0 0.0
    %1754 = vmatprep.subr.mxu0 0.0
    %1755 = vmatpush1.msra.mxu0 0.0
    %1756 = vmatprep.subr.mxu0 0.0
    %1757 = vmatpush1.msra.mxu0 0.0
    %1758 = vmatprep.subr.mxu0 0.0
    %1759 = vmatpush1.msra.mxu0 0.0
    %1760 = vmatprep.subr.mxu0 0.0
    %1761 = vmatpush1.msra.mxu0 0.0
    %1762 = vmatprep.mubr.f32.mxu0 0.0
    %1763 = vmatmul.mubr.f32.gmra.mrb[0].mxu0 %v1660
    %v1764 = vpop.f32.mrb[0].mxu0
    %v1765 = vadd.f32 0.0, %v1764
    %v1766 = vpop.f32.mrb[0].mxu0
    %v1767 = vadd.f32 0.0, %v1766
    %1768 = vmatprep.mubr.f32.mxu0 0.0
    %1769 = vmatmul.mubr.f32.gmra.mrb[0].mxu0 %v1663
    %v1770 = vpop.f32.mrb[0].mxu0
    %v1771 = vadd.f32 0.0, %v1770
    %v1772 = vpop.f32.mrb[0].mxu0
    %v1773 = vadd.f32 0.0, %v1772
    %1774 = vmatprep.mubr.f32.mxu0 0.0
    %1775 = vmatmul.mubr.f32.gmra.mrb[0].mxu0 %v1666
    %v1776 = vpop.f32.mrb[0].mxu0
    %v1777 = vadd.f32 0.0, %v1776
    %v1778 = vpop.f32.mrb[0].mxu0
    %v1779 = vadd.f32 0.0, %v1778
    %1780 = vmatprep.mubr.f32.mxu0 0.0
    %1781 = vmatmul.mubr.f32.gmra.mrb[0].mxu0 %v1669
    %v1782 = vpop.f32.mrb[0].mxu0
    %v1783 = vadd.f32 0.0, %v1782
    %v1784 = vpop.f32.mrb[0].mxu0
    %v1785 = vadd.f32 0.0, %v1784
    %1786 = vmatprep.mubr.f32.mxu0 0.0
    %1787 = vmatmul.mubr.f32.gmra.mrb[0].mxu0 %v1672
    %v1788 = vpop.f32.mrb[0].mxu0
    %v1789 = vadd.f32 0.0, %v1788
    %v1790 = vpop.f32.mrb[0].mxu0
    %v1791 = vadd.f32 0.0, %v1790
    %1792 = vmatprep.mubr.f32.mxu0 0.0
    %1793 = vmatmul.mubr.f32.gmra.mrb[0].mxu0 %v1675
    %v1794 = vpop.f32.mrb[0].mxu0
    %v1795 = vadd.f32 0.0, %v1794
    %v1796 = vpop.f32.mrb[0].mxu0
    %v1797 = vadd.f32 0.0, %v1796
    %1798 = vmatprep.mubr.f32.mxu0 0.0
    %1799 = vmatmul.mubr.f32.gmra.mrb[0].mxu0 %v1678
    %v1800 = vpop.f32.mrb[0].mxu0
    %v1801 = vadd.f32 0.0, %v1800
    %v1802 = vpop.f32.mrb[0].mxu0
    %v1803 = vadd.f32 0.0, %v1802
    %1804 = vmatprep.mubr.f32.mxu0 0.0
    %1805 = vmatmul.mubr.f32.gmra.mrb[0].mxu0 %v1681
    %v1806 = vpop.f32.mrb[0].mxu0
    %v1807 = vadd.f32 0.0, %v1806
    %v1808 = vpop.f32.mrb[0].mxu0
    %v1809 = vadd.f32 0.0, %v1808
    %1810 = vmatprep.mubr.f32.mxu0 0.0
    %1811 = vmatmul.mubr.f32.gmra.mrb[0].mxu0 %v1684
    %v1812 = vpop.f32.mrb[0].mxu0
    %v1813 = vadd.f32 0.0, %v1812
    %v1814 = vpop.f32.mrb[0].mxu0
    %v1815 = vadd.f32 0.0, %v1814
    %1816 = vmatprep.mubr.f32.mxu0 0.0
    %1817 = vmatmul.mubr.f32.gmra.mrb[0].mxu0 %v1687
    %v1818 = vpop.f32.mrb[0].mxu0
    %v1819 = vadd.f32 0.0, %v1818
    %v1820 = vpop.f32.mrb[0].mxu0
    %v1821 = vadd.f32 0.0, %v1820
    %1822 = vmatprep.mubr.f32.mxu0 0.0
    %1823 = vmatmul.mubr.f32.gmra.mrb[0].mxu0 %v1690
    %v1824 = vpop.f32.mrb[0].mxu0
    %v1825 = vadd.f32 0.0, %v1824
    %v1826 = vpop.f32.mrb[0].mxu0
    %v1827 = vadd.f32 0.0, %v1826
    %1828 = vmatprep.mubr.f32.mxu0 0.0
    %1829 = vmatmul.mubr.f32.gmra.mrb[0].mxu0 %v1693
    %v1830 = vpop.f32.mrb[0].mxu0
    %v1831 = vadd.f32 0.0, %v1830
    %v1832 = vpop.f32.mrb[0].mxu0
    %v1833 = vadd.f32 0.0, %v1832
    %1834 = vmatprep.mubr.f32.mxu0 0.0
    %1835 = vmatmul.mubr.f32.gmra.mrb[0].mxu0 %v1696
    %v1836 = vpop.f32.mrb[0].mxu0
    %v1837 = vadd.f32 0.0, %v1836
    %v1838 = vpop.f32.mrb[0].mxu0
    %v1839 = vadd.f32 0.0, %v1838
    %1840 = vdwg.mxu0
    %1841 = vmatprep.subr.mxu0 0.0
    %1842 = vmatpush1.msra.mxu0 %v1655
    %1843 = vmatprep.subr.mxu0 0.0
    %1844 = vmatpush1.msra.mxu0 %v1658
    %1845 = vmatprep.subr.mxu0 0.0
    %1846 = vmatpush1.msra.mxu0 0.0
    %1847 = vmatprep.subr.mxu0 0.0
    %1848 = vmatpush1.msra.mxu0 0.0
    %1849 = vmatprep.subr.mxu0 0.0
    %1850 = vmatpush1.msra.mxu0 0.0
    %1851 = vmatprep.subr.mxu0 0.0
    %1852 = vmatpush1.msra.mxu0 0.0
    %1853 = vmatprep.subr.mxu0 0.0
    %1854 = vmatpush1.msra.mxu0 0.0
    %1855 = vmatprep.subr.mxu0 0.0
    %1856 = vmatpush1.msra.mxu0 0.0
    %1857 = vmatprep.subr.mxu0 0.0
    %1858 = vmatpush1.msra.mxu0 0.0
    %1859 = vmatprep.subr.mxu0 0.0
    %1860 = vmatpush1.msra.mxu0 0.0
    %1861 = vmatprep.subr.mxu0 0.0
    %1862 = vmatpush1.msra.mxu0 0.0
    %1863 = vmatprep.subr.mxu0 0.0
    %1864 = vmatpush1.msra.mxu0 0.0
    %1865 = vmatprep.subr.mxu0 0.0
    %1866 = vmatpush1.msra.mxu0 0.0
    %1867 = vmatprep.subr.mxu0 0.0
    %1868 = vmatpush1.msra.mxu0 0.0
    %1869 = vmatprep.subr.mxu0 0.0
    %1870 = vmatpush1.msra.mxu0 0.0
    %1871 = vmatprep.subr.mxu0 0.0
    %1872 = vmatpush1.msra.mxu0 0.0
    %1873 = vmatprep.subr.mxu0 0.0
    %1874 = vmatpush1.msra.mxu0 0.0
    %1875 = vmatprep.subr.mxu0 0.0
    %1876 = vmatpush1.msra.mxu0 0.0
    %1877 = vmatprep.subr.mxu0 0.0
    %1878 = vmatpush1.msra.mxu0 0.0
    %1879 = vmatprep.subr.mxu0 0.0
    %1880 = vmatpush1.msra.mxu0 0.0
    %1881 = vmatprep.subr.mxu0 0.0
    %1882 = vmatpush1.msra.mxu0 0.0
    %1883 = vmatprep.subr.mxu0 0.0
    %1884 = vmatpush1.msra.mxu0 0.0
    %1885 = vmatprep.subr.mxu0 0.0
    %1886 = vmatpush1.msra.mxu0 0.0
    %1887 = vmatprep.subr.mxu0 0.0
    %1888 = vmatpush1.msra.mxu0 0.0
    %1889 = vmatprep.subr.mxu0 0.0
    %1890 = vmatpush1.msra.mxu0 0.0
    %1891 = vmatprep.subr.mxu0 0.0
    %1892 = vmatpush1.msra.mxu0 0.0
    %1893 = vmatprep.subr.mxu0 0.0
    %1894 = vmatpush1.msra.mxu0 0.0
    %1895 = vmatprep.subr.mxu0 0.0
    %1896 = vmatpush1.msra.mxu0 0.0
    %1897 = vmatprep.subr.mxu0 0.0
    %1898 = vmatpush1.msra.mxu0 0.0
    %1899 = vmatprep.subr.mxu0 0.0
    %1900 = vmatpush1.msra.mxu0 0.0
    %1901 = vmatprep.subr.mxu0 0.0
    %1902 = vmatpush1.msra.mxu0 0.0
    %1903 = vmatprep.subr.mxu0 0.0
    %1904 = vmatpush1.msra.mxu0 0.0
    %1905 = vmatprep.mubr.f32.mxu0 0.0
    %1906 = vmatmul.mubr.f32.gmra.mrb[0].mxu0 %v1660
    %v1907 = vpop.f32.mrb[0].mxu0
    %v1908 = vadd.f32 0.0, %v1907
    %v1909 = vpop.f32.mrb[0].mxu0
    %1910 = vmatprep.mubr.f32.mxu0 0.0
    %1911 = vmatmul.mubr.f32.gmra.mrb[0].mxu0 %v1663
    %v1912 = vpop.f32.mrb[0].mxu0
    %v1913 = vadd.f32 0.0, %v1912
    %v1914 = vpop.f32.mrb[0].mxu0
    %1915 = vmatprep.mubr.f32.mxu0 0.0
    %1916 = vmatmul.mubr.f32.gmra.mrb[0].mxu0 %v1666
    %v1917 = vpop.f32.mrb[0].mxu0
    %v1918 = vadd.f32 0.0, %v1917
    %v1919 = vpop.f32.mrb[0].mxu0
    %1920 = vmatprep.mubr.f32.mxu0 0.0
    %1921 = vmatmul.mubr.f32.gmra.mrb[0].mxu0 %v1669
    %v1922 = vpop.f32.mrb[0].mxu0
    %v1923 = vadd.f32 0.0, %v1922
    %v1924 = vpop.f32.mrb[0].mxu0
    %1925 = vmatprep.mubr.f32.mxu0 0.0
    %1926 = vmatmul.mubr.f32.gmra.mrb[0].mxu0 %v1672
    %v1927 = vpop.f32.mrb[0].mxu0
    %v1928 = vadd.f32 0.0, %v1927
    %v1929 = vpop.f32.mrb[0].mxu0
    %1930 = vmatprep.mubr.f32.mxu0 0.0
    %1931 = vmatmul.mubr.f32.gmra.mrb[0].mxu0 %v1675
    %v1932 = vpop.f32.mrb[0].mxu0
    %v1933 = vadd.f32 0.0, %v1932
    %v1934 = vpop.f32.mrb[0].mxu0
    %1935 = vmatprep.mubr.f32.mxu0 0.0
    %1936 = vmatmul.mubr.f32.gmra.mrb[0].mxu0 %v1678
    %v1937 = vpop.f32.mrb[0].mxu0
    %v1938 = vadd.f32 0.0, %v1937
    %v1939 = vpop.f32.mrb[0].mxu0
    %1940 = vmatprep.mubr.f32.mxu0 0.0
    %1941 = vmatmul.mubr.f32.gmra.mrb[0].mxu0 %v1681
    %v1942 = vpop.f32.mrb[0].mxu0
    %v1943 = vadd.f32 0.0, %v1942
    %v1944 = vpop.f32.mrb[0].mxu0
    %1945 = vmatprep.mubr.f32.mxu0 0.0
    %1946 = vmatmul.mubr.f32.gmra.mrb[0].mxu0 %v1684
    %v1947 = vpop.f32.mrb[0].mxu0
    %v1948 = vadd.f32 0.0, %v1947
    %v1949 = vpop.f32.mrb[0].mxu0
    %1950 = vmatprep.mubr.f32.mxu0 0.0
    %1951 = vmatmul.mubr.f32.gmra.mrb[0].mxu0 %v1687
    %v1952 = vpop.f32.mrb[0].mxu0
    %v1953 = vadd.f32 0.0, %v1952
    %v1954 = vpop.f32.mrb[0].mxu0
    %1955 = vmatprep.mubr.f32.mxu0 0.0
    %1956 = vmatmul.mubr.f32.gmra.mrb[0].mxu0 %v1690
    %v1957 = vpop.f32.mrb[0].mxu0
    %v1958 = vadd.f32 0.0, %v1957
    %v1959 = vpop.f32.mrb[0].mxu0
    %1960 = vmatprep.mubr.f32.mxu0 0.0
    %1961 = vmatmul.mubr.f32.gmra.mrb[0].mxu0 %v1693
    %v1962 = vpop.f32.mrb[0].mxu0
    %v1963 = vadd.f32 0.0, %v1962
    %v1964 = vpop.f32.mrb[0].mxu0
    %1965 = vmatprep.mubr.f32.mxu0 0.0
    %1966 = vmatmul.mubr.f32.gmra.mrb[0].mxu0 %v1696
    %v1967 = vpop.f32.mrb[0].mxu0
    %v1968 = vadd.f32 0.0, %v1967
    %v1969 = vpop.f32.mrb[0].mxu0
    %1970 = vdwg.mxu0
    %1971 = vst [vmem:[#allocation2 + $0x30] sm:$0xff] %v1765
    %1972 = vst [vmem:[#allocation2 + $0x38] sm:$0xff] %v1767
    %1973 = vst.msk [vmem:[#allocation2 + $0x40] sm:$0xff] %vm52, %v1908
    %1974 = vst [vmem:[#allocation2 + $0x48] sm:$0xff] %v1771
    %1975 = vst [vmem:[#allocation2 + $0x50] sm:$0xff] %v1773
    %1976 = vst.msk [vmem:[#allocation2 + $0x58] sm:$0xff] %vm52, %v1913
    %1977 = vst [vmem:[#allocation2 + $0x60] sm:$0xff] %v1777
    %1978 = vst [vmem:[#allocation2 + $0x68] sm:$0xff] %v1779
    %1979 = vst.msk [vmem:[#allocation2 + $0x70] sm:$0xff] %vm52, %v1918
    %1980 = vst [vmem:[#allocation2 + $0x78] sm:$0xff] %v1783
    %1981 = vst [vmem:[#allocation2 + $0x80] sm:$0xff] %v1785
    %1982 = vst.msk [vmem:[#allocation2 + $0x88] sm:$0xff] %vm52, %v1923
    %1983 = vst [vmem:[#allocation2 + $0x90] sm:$0xff] %v1789
    %1984 = vst [vmem:[#allocation2 + $0x98] sm:$0xff] %v1791
    %1985 = vst.msk [vmem:[#allocation2 + $0xa0] sm:$0xff] %vm52, %v1928
    %1986 = vst [vmem:[#allocation2 + $0xa8] sm:$0xff] %v1795
    %1987 = vst [vmem:[#allocation2 + $0xb0] sm:$0xff] %v1797
    %1988 = vst.msk [vmem:[#allocation2 + $0xb8] sm:$0xff] %vm52, %v1933
    %1989 = vst [vmem:[#allocation2 + $0xc0] sm:$0xff] %v1801
    %1990 = vst [vmem:[#allocation2 + $0xc8] sm:$0xff] %v1803
    %1991 = vst.msk [vmem:[#allocation2 + $0xd0] sm:$0xff] %vm52, %v1938
    %1992 = vst [vmem:[#allocation2 + $0xd8] sm:$0xff] %v1807
    %1993 = vst [vmem:[#allocation2 + $0xe0] sm:$0xff] %v1809
    %1994 = vst.msk [vmem:[#allocation2 + $0xe8] sm:$0xff] %vm52, %v1943
    %1995 = vst [vmem:[#allocation2 + $0xf0] sm:$0xff] %v1813
    %1996 = vst [vmem:[#allocation2 + $0xf8] sm:$0xff] %v1815
    %1997 = vst.msk [vmem:[#allocation2 + $0x100] sm:$0xff] %vm52, %v1948
    %1998 = vst [vmem:[#allocation2 + $0x108] sm:$0xff] %v1819
    %1999 = vst [vmem:[#allocation2 + $0x110] sm:$0xff] %v1821
    %2000 = vst.msk [vmem:[#allocation2 + $0x118] sm:$0xff] %vm52, %v1953
    %2001 = vst [vmem:[#allocation2 + $0x120] sm:$0xff] %v1825
    %2002 = vst [vmem:[#allocation2 + $0x128] sm:$0xff] %v1827
    %2003 = vst.msk [vmem:[#allocation2 + $0x130] sm:$0xff] %vm52, %v1958
    %2004 = vst [vmem:[#allocation2 + $0x138] sm:$0xff] %v1831
    %2005 = vst [vmem:[#allocation2 + $0x140] sm:$0xff] %v1833
    %2006 = vst.msk [vmem:[#allocation2 + $0x148] sm:$0xff] %vm52, %v1963
    %2007 = vst [vmem:[#allocation2 + $0x150] sm:$0xff] %v1837
    %2008 = vst [vmem:[#allocation2 + $0x158] sm:$0xff] %v1839
    %2009 = vst.msk [vmem:[#allocation2 + $0x160] sm:$0xff] %vm52, %v1968
    %v2010 = vld [vmem:[#allocation2] sm:$0xff]
    %v2011 = vld [vmem:[#allocation2 + $0x18] sm:$0xff]
    %v2012 = vld [vmem:[#allocation2 + $0x30] sm:$0xff]
    %v2013 = vld [vmem:[#allocation2 + $0x48] sm:$0xff]
    %v2014 = vld [vmem:[#allocation2 + $0x60] sm:$0xff]
    %v2015 = vld [vmem:[#allocation2 + $0x78] sm:$0xff]
    %v2016 = vld [vmem:[#allocation2 + $0x90] sm:$0xff]
    %v2017 = vld [vmem:[#allocation2 + $0xa8] sm:$0xff]
    %v2018 = vld [vmem:[#allocation2 + $0xc0] sm:$0xff]
    %v2019 = vld [vmem:[#allocation2 + $0xd8] sm:$0xff]
    %v2020 = vld [vmem:[#allocation2 + $0xf0] sm:$0xff]
    %v2021 = vld [vmem:[#allocation2 + $0x108] sm:$0xff]
    %v2022 = vld [vmem:[#allocation2 + $0x120] sm:$0xff]
    %v2023 = vld [vmem:[%s1] sm:$0xff]
    %v2024 = vld [vmem:[%s1 + $0x8] sm:$0xff]
    %v2025 = vld [vmem:[%s1 + $0x10] sm:$0xff]
    %v2026 = vld [vmem:[%s1 + $0x18] sm:$0xff]
    %v2027 = vld [vmem:[%s1 + $0x20] sm:$0xff]
    %v2028 = vld [vmem:[%s1 + $0x28] sm:$0xff]
    %v2029 = vld [vmem:[%s1 + $0x30] sm:$0xff]
    %v2030 = vld [vmem:[%s1 + $0x38] sm:$0xff]
    %v2031 = vld [vmem:[%s1 + $0x40] sm:$0xff]
    %v2032 = vld [vmem:[%s1 + $0x48] sm:$0xff]
    %v2033 = vld [vmem:[%s1 + $0x50] sm:$0xff]
    %v2034 = vld [vmem:[%s1 + $0x58] sm:$0xff]
    %v2035 = vld [vmem:[%s1 + $0x60] sm:$0xff]
    %2037 = vset.pattern.permute.xlu0 0
    %2038 = vperm.xlu0 %2037, %v2023
    %v2039 = vpop.permute.xlu0 %2038
    %2042 = vset.pattern.permute.xlu0 0
    %2043 = vperm.xlu0 %2042, %v2024
    %v2044 = vpop.permute.xlu0 %2043
    %2047 = vset.pattern.permute.xlu0 0
    %2048 = vperm.xlu0 %2047, %v2025
    %v2049 = vpop.permute.xlu0 %2048
    %2052 = vset.pattern.permute.xlu0 0
    %2053 = vperm.xlu0 %2052, %v2026
    %v2054 = vpop.permute.xlu0 %2053
    %2057 = vset.pattern.permute.xlu0 0
    %2058 = vperm.xlu0 %2057, %v2027
    %v2059 = vpop.permute.xlu0 %2058
    %2062 = vset.pattern.permute.xlu0 0
    %2063 = vperm.xlu0 %2062, %v2028
    %v2064 = vpop.permute.xlu0 %2063
    %2067 = vset.pattern.permute.xlu0 0
    %2068 = vperm.xlu0 %2067, %v2029
    %v2069 = vpop.permute.xlu0 %2068
    %2072 = vset.pattern.permute.xlu0 0
    %2073 = vperm.xlu0 %2072, %v2030
    %v2074 = vpop.permute.xlu0 %2073
    %2077 = vset.pattern.permute.xlu0 0
    %2078 = vperm.xlu0 %2077, %v2031
    %v2079 = vpop.permute.xlu0 %2078
    %2082 = vset.pattern.permute.xlu0 0
    %2083 = vperm.xlu0 %2082, %v2032
    %v2084 = vpop.permute.xlu0 %2083
    %2087 = vset.pattern.permute.xlu0 0
    %2088 = vperm.xlu0 %2087, %v2033
    %v2089 = vpop.permute.xlu0 %2088
    %2092 = vset.pattern.permute.xlu0 0
    %2093 = vperm.xlu0 %2092, %v2034
    %v2094 = vpop.permute.xlu0 %2093
    %2097 = vset.pattern.permute.xlu0 0
    %2098 = vperm.xlu0 %2097, %v2035
    %v2099 = vpop.permute.xlu0 %2098
    %v2101 = vmul.f32 %v2039, %v2010
    %v2102 = vmul.f32 %v2044, %v2011
    %v2103 = vmul.f32 %v2049, %v2012
    %v2104 = vmul.f32 %v2054, %v2013
    %v2105 = vmul.f32 %v2059, %v2014
    %v2106 = vmul.f32 %v2064, %v2015
    %v2107 = vmul.f32 %v2069, %v2016
    %v2108 = vmul.f32 %v2074, %v2017
    %v2109 = vmul.f32 %v2079, %v2018
    %v2110 = vmul.f32 %v2084, %v2019
    %v2111 = vmul.f32 %v2089, %v2020
    %v2112 = vmul.f32 %v2094, %v2021
    %v2113 = vmul.f32 %v2099, %v2022
    %v2114 = vadd.f32 %v2101, 0.0
    %v2115 = vadd.f32 %v2102, 0.0
    %v2116 = vadd.f32 %v2103, 0.0
    %v2117 = vadd.f32 %v2104, 0.0
    %v2118 = vadd.f32 %v2105, 0.0
    %v2119 = vadd.f32 %v2106, 0.0
    %v2120 = vadd.f32 %v2107, 0.0
    %v2121 = vadd.f32 %v2108, 0.0
    %v2122 = vadd.f32 %v2109, 0.0
    %v2123 = vadd.f32 %v2110, 0.0
    %v2124 = vadd.f32 %v2111, 0.0
    %v2125 = vadd.f32 %v2112, 0.0
    %v2126 = vadd.f32 %v2113, 0.0
    %v2127 = vld [vmem:[#allocation2] sm:$0xfc]
    %v2128 = vld [vmem:[#allocation2 + $0x18] sm:$0xff]
    %v2129 = vld [vmem:[#allocation2 + $0x30] sm:$0xff]
    %v2130 = vld [vmem:[#allocation2 + $0x48] sm:$0xff]
    %v2131 = vld [vmem:[#allocation2 + $0x60] sm:$0xff]
    %v2132 = vld [vmem:[#allocation2 + $0x78] sm:$0xff]
    %v2133 = vld [vmem:[#allocation2 + $0x90] sm:$0xff]
    %v2134 = vld [vmem:[#allocation2 + $0xa8] sm:$0xff]
    %v2135 = vld [vmem:[#allocation2 + $0xc0] sm:$0xff]
    %v2136 = vld [vmem:[#allocation2 + $0xd8] sm:$0xff]
    %v2137 = vld [vmem:[#allocation2 + $0xf0] sm:$0xff]
    %v2138 = vld [vmem:[#allocation2 + $0x108] sm:$0xff]
    %v2139 = vld [vmem:[#allocation2 + $0x120] sm:$0xff]
    %v2140 = vld [vmem:[#allocation2 + $0x138] sm:$0x3]
    %2141 = vset.pattern.permute.xlu0 1
    %2142 = vperm.xlu0 %2141, %v2023
    %v2143 = vpop.permute.xlu0 %2142
    %2145 = vset.pattern.permute.xlu0 1
    %2146 = vperm.xlu0 %2145, %v2024
    %v2147 = vpop.permute.xlu0 %2146
    %2149 = vset.pattern.permute.xlu0 1
    %2150 = vperm.xlu0 %2149, %v2025
    %v2151 = vpop.permute.xlu0 %2150
    %2153 = vset.pattern.permute.xlu0 1
    %2154 = vperm.xlu0 %2153, %v2026
    %v2155 = vpop.permute.xlu0 %2154
    %2157 = vset.pattern.permute.xlu0 1
    %2158 = vperm.xlu0 %2157, %v2027
    %v2159 = vpop.permute.xlu0 %2158
    %2161 = vset.pattern.permute.xlu0 1
    %2162 = vperm.xlu0 %2161, %v2028
    %v2163 = vpop.permute.xlu0 %2162
    %2165 = vset.pattern.permute.xlu0 1
    %2166 = vperm.xlu0 %2165, %v2029
    %v2167 = vpop.permute.xlu0 %2166
    %2169 = vset.pattern.permute.xlu0 1
    %2170 = vperm.xlu0 %2169, %v2030
    %v2171 = vpop.permute.xlu0 %2170
    %2173 = vset.pattern.permute.xlu0 1
    %2174 = vperm.xlu0 %2173, %v2031
    %v2175 = vpop.permute.xlu0 %2174
    %2177 = vset.pattern.permute.xlu0 1
    %2178 = vperm.xlu0 %2177, %v2032
    %v2179 = vpop.permute.xlu0 %2178
    %2181 = vset.pattern.permute.xlu0 1
    %2182 = vperm.xlu0 %2181, %v2033
    %v2183 = vpop.permute.xlu0 %2182
    %2185 = vset.pattern.permute.xlu0 1
    %2186 = vperm.xlu0 %2185, %v2034
    %v2187 = vpop.permute.xlu0 %2186
    %2189 = vset.pattern.permute.xlu0 1
    %2190 = vperm.xlu0 %2189, %v2035
    %v2191 = vpop.permute.xlu0 %2190
    %v2207 = vrot.slane %v2127, 2
    %v2208 = vrot.slane %v2128, 2
    %v2209 = vsel %vm491, %v2207, %v2208
    %v2210 = vrot.slane %v2129, 2
    %v2211 = vsel %vm491, %v2208, %v2210
    %v2212 = vrot.slane %v2130, 2
    %v2213 = vsel %vm491, %v2210, %v2212
    %v2214 = vrot.slane %v2131, 2
    %v2215 = vsel %vm491, %v2212, %v2214
    %v2216 = vrot.slane %v2132, 2
    %v2217 = vsel %vm491, %v2214, %v2216
    %v2218 = vrot.slane %v2133, 2
    %v2219 = vsel %vm491, %v2216, %v2218
    %v2220 = vrot.slane %v2134, 2
    %v2221 = vsel %vm491, %v2218, %v2220
    %v2222 = vrot.slane %v2135, 2
    %v2223 = vsel %vm491, %v2220, %v2222
    %v2224 = vrot.slane %v2136, 2
    %v2225 = vsel %vm491, %v2222, %v2224
    %v2226 = vrot.slane %v2137, 2
    %v2227 = vsel %vm491, %v2224, %v2226
    %v2228 = vrot.slane %v2138, 2
    %v2229 = vsel %vm491, %v2226, %v2228
    %v2230 = vrot.slane %v2139, 2
    %v2231 = vsel %vm491, %v2228, %v2230
    %v2232 = vrot.slane %v2140, 2
    %v2233 = vsel %vm491, %v2230, %v2232
    %2234 = vrot.lane.b32.xlu0 %v2209, 96
    %v2235 = vpop.permute.xlu0 %2234
    %2236 = vrot.lane.b32.xlu0 %v2211, 96
    %v2237 = vpop.permute.xlu0 %2236
    %2238 = vrot.lane.b32.xlu0 %v2213, 96
    %v2239 = vpop.permute.xlu0 %2238
    %2240 = vrot.lane.b32.xlu0 %v2215, 96
    %v2241 = vpop.permute.xlu0 %2240
    %2242 = vrot.lane.b32.xlu0 %v2217, 96
    %v2243 = vpop.permute.xlu0 %2242
    %2244 = vrot.lane.b32.xlu0 %v2219, 96
    %v2245 = vpop.permute.xlu0 %2244
    %2246 = vrot.lane.b32.xlu0 %v2221, 96
    %v2247 = vpop.permute.xlu0 %2246
    %2248 = vrot.lane.b32.xlu0 %v2223, 96
    %v2249 = vpop.permute.xlu0 %2248
    %2250 = vrot.lane.b32.xlu0 %v2225, 96
    %v2251 = vpop.permute.xlu0 %2250
    %2252 = vrot.lane.b32.xlu0 %v2227, 96
    %v2253 = vpop.permute.xlu0 %2252
    %2254 = vrot.lane.b32.xlu0 %v2229, 96
    %v2255 = vpop.permute.xlu0 %2254
    %2256 = vrot.lane.b32.xlu0 %v2231, 96
    %v2257 = vpop.permute.xlu0 %2256
    %2258 = vrot.lane.b32.xlu0 %v2233, 96
    %v2259 = vpop.permute.xlu0 %2258
    %v2273 = vmul.f32 %v2143, %v2235
    %v2274 = vmul.f32 %v2147, %v2237
    %v2275 = vmul.f32 %v2151, %v2239
    %v2276 = vmul.f32 %v2155, %v2241
    %v2277 = vmul.f32 %v2159, %v2243
    %v2278 = vmul.f32 %v2163, %v2245
    %v2279 = vmul.f32 %v2167, %v2247
    %v2280 = vmul.f32 %v2171, %v2249
    %v2281 = vmul.f32 %v2175, %v2251
    %v2282 = vmul.f32 %v2179, %v2253
    %v2283 = vmul.f32 %v2183, %v2255
    %v2284 = vmul.f32 %v2187, %v2257
    %v2285 = vmul.f32 %v2191, %v2259
    %v2286 = vadd.f32 %v2114, %v2273
    %v2287 = vadd.f32 %v2115, %v2274
    %v2288 = vadd.f32 %v2116, %v2275
    %v2289 = vadd.f32 %v2117, %v2276
    %v2290 = vadd.f32 %v2118, %v2277
    %v2291 = vadd.f32 %v2119, %v2278
    %v2292 = vadd.f32 %v2120, %v2279
    %v2293 = vadd.f32 %v2121, %v2280
    %v2294 = vadd.f32 %v2122, %v2281
    %v2295 = vadd.f32 %v2123, %v2282
    %v2296 = vadd.f32 %v2124, %v2283
    %v2297 = vadd.f32 %v2125, %v2284
    %v2298 = vadd.f32 %v2126, %v2285
    %v2299 = vld [vmem:[#allocation2] sm:$0xf0]
    %v2300 = vld [vmem:[#allocation2 + $0x138] sm:$0xf]
    %2301 = vset.pattern.permute.xlu0 2
    %2302 = vperm.xlu0 %2301, %v2023
    %v2303 = vpop.permute.xlu0 %2302
    %2305 = vset.pattern.permute.xlu0 2
    %2306 = vperm.xlu0 %2305, %v2024
    %v2307 = vpop.permute.xlu0 %2306
    %2309 = vset.pattern.permute.xlu0 2
    %2310 = vperm.xlu0 %2309, %v2025
    %v2311 = vpop.permute.xlu0 %2310
    %2313 = vset.pattern.permute.xlu0 2
    %2314 = vperm.xlu0 %2313, %v2026
    %v2315 = vpop.permute.xlu0 %2314
    %2317 = vset.pattern.permute.xlu0 2
    %2318 = vperm.xlu0 %2317, %v2027
    %v2319 = vpop.permute.xlu0 %2318
    %2321 = vset.pattern.permute.xlu0 2
    %2322 = vperm.xlu0 %2321, %v2028
    %v2323 = vpop.permute.xlu0 %2322
    %2325 = vset.pattern.permute.xlu0 2
    %2326 = vperm.xlu0 %2325, %v2029
    %v2327 = vpop.permute.xlu0 %2326
    %2329 = vset.pattern.permute.xlu0 2
    %2330 = vperm.xlu0 %2329, %v2030
    %v2331 = vpop.permute.xlu0 %2330
    %2333 = vset.pattern.permute.xlu0 2
    %2334 = vperm.xlu0 %2333, %v2031
    %v2335 = vpop.permute.xlu0 %2334
    %2337 = vset.pattern.permute.xlu0 2
    %2338 = vperm.xlu0 %2337, %v2032
    %v2339 = vpop.permute.xlu0 %2338
    %2341 = vset.pattern.permute.xlu0 2
    %2342 = vperm.xlu0 %2341, %v2033
    %v2343 = vpop.permute.xlu0 %2342
    %2345 = vset.pattern.permute.xlu0 2
    %2346 = vperm.xlu0 %2345, %v2034
    %v2347 = vpop.permute.xlu0 %2346
    %2349 = vset.pattern.permute.xlu0 2
    %2350 = vperm.xlu0 %2349, %v2035
    %v2351 = vpop.permute.xlu0 %2350
    %v2355 = vrot.slane %v2299, 4
    %v2356 = vrot.slane %v2128, 4
    %v2357 = vsel %vm640, %v2355, %v2356
    %v2358 = vrot.slane %v2129, 4
    %v2359 = vsel %vm640, %v2356, %v2358
    %v2360 = vrot.slane %v2130, 4
    %v2361 = vsel %vm640, %v2358, %v2360
    %v2362 = vrot.slane %v2131, 4
    %v2363 = vsel %vm640, %v2360, %v2362
    %v2364 = vrot.slane %v2132, 4
    %v2365 = vsel %vm640, %v2362, %v2364
    %v2366 = vrot.slane %v2133, 4
    %v2367 = vsel %vm640, %v2364, %v2366
    %v2368 = vrot.slane %v2134, 4
    %v2369 = vsel %vm640, %v2366, %v2368
    %v2370 = vrot.slane %v2135, 4
    %v2371 = vsel %vm640, %v2368, %v2370
    %v2372 = vrot.slane %v2136, 4
    %v2373 = vsel %vm640, %v2370, %v2372
    %v2374 = vrot.slane %v2137, 4
    %v2375 = vsel %vm640, %v2372, %v2374
    %v2376 = vrot.slane %v2138, 4
    %v2377 = vsel %vm640, %v2374, %v2376
    %v2378 = vrot.slane %v2139, 4
    %v2379 = vsel %vm640, %v2376, %v2378
    %v2380 = vrot.slane %v2300, 4
    %v2381 = vsel %vm640, %v2378, %v2380
    %2382 = vrot.lane.b32.xlu0 %v2357, 64
    %v2383 = vpop.permute.xlu0 %2382
    %2384 = vrot.lane.b32.xlu0 %v2359, 64
    %v2385 = vpop.permute.xlu0 %2384
    %2386 = vrot.lane.b32.xlu0 %v2361, 64
    %v2387 = vpop.permute.xlu0 %2386
    %2388 = vrot.lane.b32.xlu0 %v2363, 64
    %v2389 = vpop.permute.xlu0 %2388
    %2390 = vrot.lane.b32.xlu0 %v2365, 64
    %v2391 = vpop.permute.xlu0 %2390
    %2392 = vrot.lane.b32.xlu0 %v2367, 64
    %v2393 = vpop.permute.xlu0 %2392
    %2394 = vrot.lane.b32.xlu0 %v2369, 64
    %v2395 = vpop.permute.xlu0 %2394
    %2396 = vrot.lane.b32.xlu0 %v2371, 64
    %v2397 = vpop.permute.xlu0 %2396
    %2398 = vrot.lane.b32.xlu0 %v2373, 64
    %v2399 = vpop.permute.xlu0 %2398
    %2400 = vrot.lane.b32.xlu0 %v2375, 64
    %v2401 = vpop.permute.xlu0 %2400
    %2402 = vrot.lane.b32.xlu0 %v2377, 64
    %v2403 = vpop.permute.xlu0 %2402
    %2404 = vrot.lane.b32.xlu0 %v2379, 64
    %v2405 = vpop.permute.xlu0 %2404
    %2406 = vrot.lane.b32.xlu0 %v2381, 64
    %v2407 = vpop.permute.xlu0 %2406
    %v2421 = vmul.f32 %v2303, %v2383
    %v2422 = vmul.f32 %v2307, %v2385
    %v2423 = vmul.f32 %v2311, %v2387
    %v2424 = vmul.f32 %v2315, %v2389
    %v2425 = vmul.f32 %v2319, %v2391
    %v2426 = vmul.f32 %v2323, %v2393
    %v2427 = vmul.f32 %v2327, %v2395
    %v2428 = vmul.f32 %v2331, %v2397
    %v2429 = vmul.f32 %v2335, %v2399
    %v2430 = vmul.f32 %v2339, %v2401
    %v2431 = vmul.f32 %v2343, %v2403
    %v2432 = vmul.f32 %v2347, %v2405
    %v2433 = vmul.f32 %v2351, %v2407
    %v2434 = vadd.f32 %v2286, %v2421
    %v2435 = vadd.f32 %v2287, %v2422
    %v2436 = vadd.f32 %v2288, %v2423
    %v2437 = vadd.f32 %v2289, %v2424
    %v2438 = vadd.f32 %v2290, %v2425
    %v2439 = vadd.f32 %v2291, %v2426
    %v2440 = vadd.f32 %v2292, %v2427
    %v2441 = vadd.f32 %v2293, %v2428
    %v2442 = vadd.f32 %v2294, %v2429
    %v2443 = vadd.f32 %v2295, %v2430
    %v2444 = vadd.f32 %v2296, %v2431
    %v2445 = vadd.f32 %v2297, %v2432
    %v2446 = vadd.f32 %v2298, %v2433
    %v2447 = vld [vmem:[#allocation2 + $0x18] sm:$0xc0]
    %v2448 = vld [vmem:[#allocation2 + $0x30] sm:$0xff]
    %v2449 = vld [vmem:[#allocation2 + $0x48] sm:$0xff]
    %v2450 = vld [vmem:[#allocation2 + $0x60] sm:$0xff]
    %v2451 = vld [vmem:[#allocation2 + $0x78] sm:$0xff]
    %v2452 = vld [vmem:[#allocation2 + $0x90] sm:$0xff]
    %v2453 = vld [vmem:[#allocation2 + $0xa8] sm:$0xff]
    %v2454 = vld [vmem:[#allocation2 + $0xc0] sm:$0xff]
    %v2455 = vld [vmem:[#allocation2 + $0xd8] sm:$0xff]
    %v2456 = vld [vmem:[#allocation2 + $0xf0] sm:$0xff]
    %v2457 = vld [vmem:[#allocation2 + $0x108] sm:$0xff]
    %v2458 = vld [vmem:[#allocation2 + $0x120] sm:$0xff]
    %v2459 = vld [vmem:[#allocation2 + $0x138] sm:$0xff]
    %v2460 = vld [vmem:[#allocation2 + $0x150] sm:$0x3f]
    %2461 = vset.pattern.permute.xlu0 3
    %2462 = vperm.xlu0 %2461, %v2023
    %v2463 = vpop.permute.xlu0 %2462
    %2465 = vset.pattern.permute.xlu0 3
    %2466 = vperm.xlu0 %2465, %v2024
    %v2467 = vpop.permute.xlu0 %2466
    %2469 = vset.pattern.permute.xlu0 3
    %2470 = vperm.xlu0 %2469, %v2025
    %v2471 = vpop.permute.xlu0 %2470
    %2473 = vset.pattern.permute.xlu0 3
    %2474 = vperm.xlu0 %2473, %v2026
    %v2475 = vpop.permute.xlu0 %2474
    %2477 = vset.pattern.permute.xlu0 3
    %2478 = vperm.xlu0 %2477, %v2027
    %v2479 = vpop.permute.xlu0 %2478
    %2481 = vset.pattern.permute.xlu0 3
    %2482 = vperm.xlu0 %2481, %v2028
    %v2483 = vpop.permute.xlu0 %2482
    %2485 = vset.pattern.permute.xlu0 3
    %2486 = vperm.xlu0 %2485, %v2029
    %v2487 = vpop.permute.xlu0 %2486
    %2489 = vset.pattern.permute.xlu0 3
    %2490 = vperm.xlu0 %2489, %v2030
    %v2491 = vpop.permute.xlu0 %2490
    %2493 = vset.pattern.permute.xlu0 3
    %2494 = vperm.xlu0 %2493, %v2031
    %v2495 = vpop.permute.xlu0 %2494
    %2497 = vset.pattern.permute.xlu0 3
    %2498 = vperm.xlu0 %2497, %v2032
    %v2499 = vpop.permute.xlu0 %2498
    %2501 = vset.pattern.permute.xlu0 3
    %2502 = vperm.xlu0 %2501, %v2033
    %v2503 = vpop.permute.xlu0 %2502
    %2505 = vset.pattern.permute.xlu0 3
    %2506 = vperm.xlu0 %2505, %v2034
    %v2507 = vpop.permute.xlu0 %2506
    %2509 = vset.pattern.permute.xlu0 3
    %2510 = vperm.xlu0 %2509, %v2035
    %v2511 = vpop.permute.xlu0 %2510
    %v2527 = vrot.slane %v2447, 6
    %v2528 = vrot.slane %v2448, 6
    %v2529 = vsel %vm813, %v2527, %v2528
    %v2530 = vrot.slane %v2449, 6
    %v2531 = vsel %vm813, %v2528, %v2530
    %v2532 = vrot.slane %v2450, 6
    %v2533 = vsel %vm813, %v2530, %v2532
    %v2534 = vrot.slane %v2451, 6
    %v2535 = vsel %vm813, %v2532, %v2534
    %v2536 = vrot.slane %v2452, 6
    %v2537 = vsel %vm813, %v2534, %v2536
    %v2538 = vrot.slane %v2453, 6
    %v2539 = vsel %vm813, %v2536, %v2538
    %v2540 = vrot.slane %v2454, 6
    %v2541 = vsel %vm813, %v2538, %v2540
    %v2542 = vrot.slane %v2455, 6
    %v2543 = vsel %vm813, %v2540, %v2542
    %v2544 = vrot.slane %v2456, 6
    %v2545 = vsel %vm813, %v2542, %v2544
    %v2546 = vrot.slane %v2457, 6
    %v2547 = vsel %vm813, %v2544, %v2546
    %v2548 = vrot.slane %v2458, 6
    %v2549 = vsel %vm813, %v2546, %v2548
    %v2550 = vrot.slane %v2459, 6
    %v2551 = vsel %vm813, %v2548, %v2550
    %v2552 = vrot.slane %v2460, 6
    %v2553 = vsel %vm813, %v2550, %v2552
    %2554 = vrot.lane.b32.xlu0 %v2529, 32
    %v2555 = vpop.permute.xlu0 %2554
    %2556 = vrot.lane.b32.xlu0 %v2531, 32
    %v2557 = vpop.permute.xlu0 %2556
    %2558 = vrot.lane.b32.xlu0 %v2533, 32
    %v2559 = vpop.permute.xlu0 %2558
    %2560 = vrot.lane.b32.xlu0 %v2535, 32
    %v2561 = vpop.permute.xlu0 %2560
    %2562 = vrot.lane.b32.xlu0 %v2537, 32
    %v2563 = vpop.permute.xlu0 %2562
    %2564 = vrot.lane.b32.xlu0 %v2539, 32
    %v2565 = vpop.permute.xlu0 %2564
    %2566 = vrot.lane.b32.xlu0 %v2541, 32
    %v2567 = vpop.permute.xlu0 %2566
    %2568 = vrot.lane.b32.xlu0 %v2543, 32
    %v2569 = vpop.permute.xlu0 %2568
    %2570 = vrot.lane.b32.xlu0 %v2545, 32
    %v2571 = vpop.permute.xlu0 %2570
    %2572 = vrot.lane.b32.xlu0 %v2547, 32
    %v2573 = vpop.permute.xlu0 %2572
    %2574 = vrot.lane.b32.xlu0 %v2549, 32
    %v2575 = vpop.permute.xlu0 %2574
    %2576 = vrot.lane.b32.xlu0 %v2551, 32
    %v2577 = vpop.permute.xlu0 %2576
    %2578 = vrot.lane.b32.xlu0 %v2553, 32
    %v2579 = vpop.permute.xlu0 %2578
    %v2593 = vmul.f32 %v2463, %v2555
    %v2594 = vmul.f32 %v2467, %v2557
    %v2595 = vmul.f32 %v2471, %v2559
    %v2596 = vmul.f32 %v2475, %v2561
    %v2597 = vmul.f32 %v2479, %v2563
    %v2598 = vmul.f32 %v2483, %v2565
    %v2599 = vmul.f32 %v2487, %v2567
    %v2600 = vmul.f32 %v2491, %v2569
    %v2601 = vmul.f32 %v2495, %v2571
    %v2602 = vmul.f32 %v2499, %v2573
    %v2603 = vmul.f32 %v2503, %v2575
    %v2604 = vmul.f32 %v2507, %v2577
    %v2605 = vmul.f32 %v2511, %v2579
    %v2606 = vadd.f32 %v2434, %v2593
    %v2607 = vadd.f32 %v2435, %v2594
    %v2608 = vadd.f32 %v2436, %v2595
    %v2609 = vadd.f32 %v2437, %v2596
    %v2610 = vadd.f32 %v2438, %v2597
    %v2611 = vadd.f32 %v2439, %v2598
    %v2612 = vadd.f32 %v2440, %v2599
    %v2613 = vadd.f32 %v2441, %v2600
    %v2614 = vadd.f32 %v2442, %v2601
    %v2615 = vadd.f32 %v2443, %v2602
    %v2616 = vadd.f32 %v2444, %v2603
    %v2617 = vadd.f32 %v2445, %v2604
    %v2618 = vadd.f32 %v2446, %v2605
    %v2619 = vld [vmem:[#allocation2 + $0x38] sm:$0xff]
    %v2620 = vld [vmem:[#allocation2 + $0x50] sm:$0xff]
    %v2621 = vld [vmem:[#allocation2 + $0x68] sm:$0xff]
    %v2622 = vld [vmem:[#allocation2 + $0x80] sm:$0xff]
    %v2623 = vld [vmem:[#allocation2 + $0x98] sm:$0xff]
    %v2624 = vld [vmem:[#allocation2 + $0xb0] sm:$0xff]
    %v2625 = vld [vmem:[#allocation2 + $0xc8] sm:$0xff]
    %v2626 = vld [vmem:[#allocation2 + $0xe0] sm:$0xff]
    %v2627 = vld [vmem:[#allocation2 + $0xf8] sm:$0xff]
    %v2628 = vld [vmem:[#allocation2 + $0x110] sm:$0xff]
    %v2629 = vld [vmem:[#allocation2 + $0x128] sm:$0xff]
    %v2630 = vld [vmem:[#allocation2 + $0x140] sm:$0xff]
    %v2631 = vld [vmem:[#allocation2 + $0x158] sm:$0xff]
    %2632 = vset.pattern.permute.xlu0 4
    %2633 = vperm.xlu0 %2632, %v2023
    %v2634 = vpop.permute.xlu0 %2633
    %2636 = vset.pattern.permute.xlu0 4
    %2637 = vperm.xlu0 %2636, %v2024
    %v2638 = vpop.permute.xlu0 %2637
    %2640 = vset.pattern.permute.xlu0 4
    %2641 = vperm.xlu0 %2640, %v2025
    %v2642 = vpop.permute.xlu0 %2641
    %2644 = vset.pattern.permute.xlu0 4
    %2645 = vperm.xlu0 %2644, %v2026
    %v2646 = vpop.permute.xlu0 %2645
    %2648 = vset.pattern.permute.xlu0 4
    %2649 = vperm.xlu0 %2648, %v2027
    %v2650 = vpop.permute.xlu0 %2649
    %2652 = vset.pattern.permute.xlu0 4
    %2653 = vperm.xlu0 %2652, %v2028
    %v2654 = vpop.permute.xlu0 %2653
    %2656 = vset.pattern.permute.xlu0 4
    %2657 = vperm.xlu0 %2656, %v2029
    %v2658 = vpop.permute.xlu0 %2657
    %2660 = vset.pattern.permute.xlu0 4
    %2661 = vperm.xlu0 %2660, %v2030
    %v2662 = vpop.permute.xlu0 %2661
    %2664 = vset.pattern.permute.xlu0 4
    %2665 = vperm.xlu0 %2664, %v2031
    %v2666 = vpop.permute.xlu0 %2665
    %2668 = vset.pattern.permute.xlu0 4
    %2669 = vperm.xlu0 %2668, %v2032
    %v2670 = vpop.permute.xlu0 %2669
    %2672 = vset.pattern.permute.xlu0 4
    %2673 = vperm.xlu0 %2672, %v2033
    %v2674 = vpop.permute.xlu0 %2673
    %2676 = vset.pattern.permute.xlu0 4
    %2677 = vperm.xlu0 %2676, %v2034
    %v2678 = vpop.permute.xlu0 %2677
    %2680 = vset.pattern.permute.xlu0 4
    %2681 = vperm.xlu0 %2680, %v2035
    %v2682 = vpop.permute.xlu0 %2681
    %v2684 = vmul.f32 %v2634, %v2619
    %v2685 = vmul.f32 %v2638, %v2620
    %v2686 = vmul.f32 %v2642, %v2621
    %v2687 = vmul.f32 %v2646, %v2622
    %v2688 = vmul.f32 %v2650, %v2623
    %v2689 = vmul.f32 %v2654, %v2624
    %v2690 = vmul.f32 %v2658, %v2625
    %v2691 = vmul.f32 %v2662, %v2626
    %v2692 = vmul.f32 %v2666, %v2627
    %v2693 = vmul.f32 %v2670, %v2628
    %v2694 = vmul.f32 %v2674, %v2629
    %v2695 = vmul.f32 %v2678, %v2630
    %v2696 = vmul.f32 %v2682, %v2631
    %v2697 = vadd.f32 %v2606, %v2684
    %v2698 = vadd.f32 %v2607, %v2685
    %v2699 = vadd.f32 %v2608, %v2686
    %v2700 = vadd.f32 %v2609, %v2687
    %v2701 = vadd.f32 %v2610, %v2688
    %v2702 = vadd.f32 %v2611, %v2689
    %v2703 = vadd.f32 %v2612, %v2690
    %v2704 = vadd.f32 %v2613, %v2691
    %v2705 = vadd.f32 %v2614, %v2692
    %v2706 = vadd.f32 %v2615, %v2693
    %v2707 = vadd.f32 %v2616, %v2694
    %v2708 = vadd.f32 %v2617, %v2695
    %v2709 = vadd.f32 %v2618, %v2696
    %v2710 = vld [vmem:[#allocation2 + $0x38] sm:$0xfc]
    %v2711 = vld [vmem:[#allocation2 + $0x50] sm:$0xff]
    %v2712 = vld [vmem:[#allocation2 + $0x68] sm:$0xff]
    %v2713 = vld [vmem:[#allocation2 + $0x80] sm:$0xff]
    %v2714 = vld [vmem:[#allocation2 + $0x98] sm:$0xff]
    %v2715 = vld [vmem:[#allocation2 + $0xb0] sm:$0xff]
    %v2716 = vld [vmem:[#allocation2 + $0xc8] sm:$0xff]
    %v2717 = vld [vmem:[#allocation2 + $0xe0] sm:$0xff]
    %v2718 = vld [vmem:[#allocation2 + $0xf8] sm:$0xff]
    %v2719 = vld [vmem:[#allocation2 + $0x110] sm:$0xff]
    %v2720 = vld [vmem:[#allocation2 + $0x128] sm:$0xff]
    %v2721 = vld [vmem:[#allocation2 + $0x140] sm:$0xff]
    %v2722 = vld [vmem:[#allocation2 + $0x158] sm:$0xff]
    %v2723 = vld [vmem:[#allocation2 + $0x170] sm:$0x3]
    %2724 = vset.pattern.permute.xlu0 5
    %2725 = vperm.xlu0 %2724, %v2023
    %v2726 = vpop.permute.xlu0 %2725
    %2728 = vset.pattern.permute.xlu0 5
    %2729 = vperm.xlu0 %2728, %v2024
    %v2730 = vpop.permute.xlu0 %2729
    %2732 = vset.pattern.permute.xlu0 5
    %2733 = vperm.xlu0 %2732, %v2025
    %v2734 = vpop.permute.xlu0 %2733
    %2736 = vset.pattern.permute.xlu0 5
    %2737 = vperm.xlu0 %2736, %v2026
    %v2738 = vpop.permute.xlu0 %2737
    %2740 = vset.pattern.permute.xlu0 5
    %2741 = vperm.xlu0 %2740, %v2027
    %v2742 = vpop.permute.xlu0 %2741
    %2744 = vset.pattern.permute.xlu0 5
    %2745 = vperm.xlu0 %2744, %v2028
    %v2746 = vpop.permute.xlu0 %2745
    %2748 = vset.pattern.permute.xlu0 5
    %2749 = vperm.xlu0 %2748, %v2029
    %v2750 = vpop.permute.xlu0 %2749
    %2752 = vset.pattern.permute.xlu0 5
    %2753 = vperm.xlu0 %2752, %v2030
    %v2754 = vpop.permute.xlu0 %2753
    %2756 = vset.pattern.permute.xlu0 5
    %2757 = vperm.xlu0 %2756, %v2031
    %v2758 = vpop.permute.xlu0 %2757
    %2760 = vset.pattern.permute.xlu0 5
    %2761 = vperm.xlu0 %2760, %v2032
    %v2762 = vpop.permute.xlu0 %2761
    %2764 = vset.pattern.permute.xlu0 5
    %2765 = vperm.xlu0 %2764, %v2033
    %v2766 = vpop.permute.xlu0 %2765
    %2768 = vset.pattern.permute.xlu0 5
    %2769 = vperm.xlu0 %2768, %v2034
    %v2770 = vpop.permute.xlu0 %2769
    %2772 = vset.pattern.permute.xlu0 5
    %2773 = vperm.xlu0 %2772, %v2035
    %v2774 = vpop.permute.xlu0 %2773
    %v2790 = vrot.slane %v2710, 2
    %v2791 = vrot.slane %v2711, 2
    %v2792 = vsel %vm491, %v2790, %v2791
    %v2793 = vrot.slane %v2712, 2
    %v2794 = vsel %vm491, %v2791, %v2793
    %v2795 = vrot.slane %v2713, 2
    %v2796 = vsel %vm491, %v2793, %v2795
    %v2797 = vrot.slane %v2714, 2
    %v2798 = vsel %vm491, %v2795, %v2797
    %v2799 = vrot.slane %v2715, 2
    %v2800 = vsel %vm491, %v2797, %v2799
    %v2801 = vrot.slane %v2716, 2
    %v2802 = vsel %vm491, %v2799, %v2801
    %v2803 = vrot.slane %v2717, 2
    %v2804 = vsel %vm491, %v2801, %v2803
    %v2805 = vrot.slane %v2718, 2
    %v2806 = vsel %vm491, %v2803, %v2805
    %v2807 = vrot.slane %v2719, 2
    %v2808 = vsel %vm491, %v2805, %v2807
    %v2809 = vrot.slane %v2720, 2
    %v2810 = vsel %vm491, %v2807, %v2809
    %v2811 = vrot.slane %v2721, 2
    %v2812 = vsel %vm491, %v2809, %v2811
    %v2813 = vrot.slane %v2722, 2
    %v2814 = vsel %vm491, %v2811, %v2813
    %v2815 = vrot.slane %v2723, 2
    %v2816 = vsel %vm491, %v2813, %v2815
    %2817 = vrot.lane.b32.xlu0 %v2792, 96
    %v2818 = vpop.permute.xlu0 %2817
    %2819 = vrot.lane.b32.xlu0 %v2794, 96
    %v2820 = vpop.permute.xlu0 %2819
    %2821 = vrot.lane.b32.xlu0 %v2796, 96
    %v2822 = vpop.permute.xlu0 %2821
    %2823 = vrot.lane.b32.xlu0 %v2798, 96
    %v2824 = vpop.permute.xlu0 %2823
    %2825 = vrot.lane.b32.xlu0 %v2800, 96
    %v2826 = vpop.permute.xlu0 %2825
    %2827 = vrot.lane.b32.xlu0 %v2802, 96
    %v2828 = vpop.permute.xlu0 %2827
    %2829 = vrot.lane.b32.xlu0 %v2804, 96
    %v2830 = vpop.permute.xlu0 %2829
    %2831 = vrot.lane.b32.xlu0 %v2806, 96
    %v2832 = vpop.permute.xlu0 %2831
    %2833 = vrot.lane.b32.xlu0 %v2808, 96
    %v2834 = vpop.permute.xlu0 %2833
    %2835 = vrot.lane.b32.xlu0 %v2810, 96
    %v2836 = vpop.permute.xlu0 %2835
    %2837 = vrot.lane.b32.xlu0 %v2812, 96
    %v2838 = vpop.permute.xlu0 %2837
    %2839 = vrot.lane.b32.xlu0 %v2814, 96
    %v2840 = vpop.permute.xlu0 %2839
    %2841 = vrot.lane.b32.xlu0 %v2816, 96
    %v2842 = vpop.permute.xlu0 %2841
    %v2856 = vmul.f32 %v2726, %v2818
    %v2857 = vmul.f32 %v2730, %v2820
    %v2858 = vmul.f32 %v2734, %v2822
    %v2859 = vmul.f32 %v2738, %v2824
    %v2860 = vmul.f32 %v2742, %v2826
    %v2861 = vmul.f32 %v2746, %v2828
    %v2862 = vmul.f32 %v2750, %v2830
    %v2863 = vmul.f32 %v2754, %v2832
    %v2864 = vmul.f32 %v2758, %v2834
    %v2865 = vmul.f32 %v2762, %v2836
    %v2866 = vmul.f32 %v2766, %v2838
    %v2867 = vmul.f32 %v2770, %v2840
    %v2868 = vmul.f32 %v2774, %v2842
    %v2869 = vadd.f32 %v2697, %v2856
    %v2870 = vadd.f32 %v2698, %v2857
    %v2871 = vadd.f32 %v2699, %v2858
    %v2872 = vadd.f32 %v2700, %v2859
    %v2873 = vadd.f32 %v2701, %v2860
    %v2874 = vadd.f32 %v2702, %v2861
    %v2875 = vadd.f32 %v2703, %v2862
    %v2876 = vadd.f32 %v2704, %v2863
    %v2877 = vadd.f32 %v2705, %v2864
    %v2878 = vadd.f32 %v2706, %v2865
    %v2879 = vadd.f32 %v2707, %v2866
    %v2880 = vadd.f32 %v2708, %v2867
    %v2881 = vadd.f32 %v2709, %v2868
    %v2882 = vld [vmem:[#allocation2 + $0x50] sm:$0xf0]
    %v2883 = vld [vmem:[#allocation2 + $0x68] sm:$0xff]
    %v2884 = vld [vmem:[#allocation2 + $0x80] sm:$0xff]
    %v2885 = vld [vmem:[#allocation2 + $0x98] sm:$0xff]
    %v2886 = vld [vmem:[#allocation2 + $0xb0] sm:$0xff]
    %v2887 = vld [vmem:[#allocation2 + $0xc8] sm:$0xff]
    %v2888 = vld [vmem:[#allocation2 + $0xe0] sm:$0xff]
    %v2889 = vld [vmem:[#allocation2 + $0xf8] sm:$0xff]
    %v2890 = vld [vmem:[#allocation2 + $0x110] sm:$0xff]
    %v2891 = vld [vmem:[#allocation2 + $0x128] sm:$0xff]
    %v2892 = vld [vmem:[#allocation2 + $0x140] sm:$0xff]
    %v2893 = vld [vmem:[#allocation2 + $0x158] sm:$0xff]
    %v2894 = vld [vmem:[#allocation2 + $0x170] sm:$0xff]
    %v2895 = vld [vmem:[#allocation2 + $0x188] sm:$0xf]
    %2896 = vset.pattern.permute.xlu0 6
    %2897 = vperm.xlu0 %2896, %v2023
    %v2898 = vpop.permute.xlu0 %2897
    %2900 = vset.pattern.permute.xlu0 6
    %2901 = vperm.xlu0 %2900, %v2024
    %v2902 = vpop.permute.xlu0 %2901
    %2904 = vset.pattern.permute.xlu0 6
    %2905 = vperm.xlu0 %2904, %v2025
    %v2906 = vpop.permute.xlu0 %2905
    %2908 = vset.pattern.permute.xlu0 6
    %2909 = vperm.xlu0 %2908, %v2026
    %v2910 = vpop.permute.xlu0 %2909
    %2912 = vset.pattern.permute.xlu0 6
    %2913 = vperm.xlu0 %2912, %v2027
    %v2914 = vpop.permute.xlu0 %2913
    %2916 = vset.pattern.permute.xlu0 6
    %2917 = vperm.xlu0 %2916, %v2028
    %v2918 = vpop.permute.xlu0 %2917
    %2920 = vset.pattern.permute.xlu0 6
    %2921 = vperm.xlu0 %2920, %v2029
    %v2922 = vpop.permute.xlu0 %2921
    %2924 = vset.pattern.permute.xlu0 6
    %2925 = vperm.xlu0 %2924, %v2030
    %v2926 = vpop.permute.xlu0 %2925
    %2928 = vset.pattern.permute.xlu0 6
    %2929 = vperm.xlu0 %2928, %v2031
    %v2930 = vpop.permute.xlu0 %2929
    %2932 = vset.pattern.permute.xlu0 6
    %2933 = vperm.xlu0 %2932, %v2032
    %v2934 = vpop.permute.xlu0 %2933
    %2936 = vset.pattern.permute.xlu0 6
    %2937 = vperm.xlu0 %2936, %v2033
    %v2938 = vpop.permute.xlu0 %2937
    %2940 = vset.pattern.permute.xlu0 6
    %2941 = vperm.xlu0 %2940, %v2034
    %v2942 = vpop.permute.xlu0 %2941
    %2944 = vset.pattern.permute.xlu0 6
    %2945 = vperm.xlu0 %2944, %v2035
    %v2946 = vpop.permute.xlu0 %2945
    %v2962 = vrot.slane %v2882, 4
    %v2963 = vrot.slane %v2883, 4
    %v2964 = vsel %vm640, %v2962, %v2963
    %v2965 = vrot.slane %v2884, 4
    %v2966 = vsel %vm640, %v2963, %v2965
    %v2967 = vrot.slane %v2885, 4
    %v2968 = vsel %vm640, %v2965, %v2967
    %v2969 = vrot.slane %v2886, 4
    %v2970 = vsel %vm640, %v2967, %v2969
    %v2971 = vrot.slane %v2887, 4
    %v2972 = vsel %vm640, %v2969, %v2971
    %v2973 = vrot.slane %v2888, 4
    %v2974 = vsel %vm640, %v2971, %v2973
    %v2975 = vrot.slane %v2889, 4
    %v2976 = vsel %vm640, %v2973, %v2975
    %v2977 = vrot.slane %v2890, 4
    %v2978 = vsel %vm640, %v2975, %v2977
    %v2979 = vrot.slane %v2891, 4
    %v2980 = vsel %vm640, %v2977, %v2979
    %v2981 = vrot.slane %v2892, 4
    %v2982 = vsel %vm640, %v2979, %v2981
    %v2983 = vrot.slane %v2893, 4
    %v2984 = vsel %vm640, %v2981, %v2983
    %v2985 = vrot.slane %v2894, 4
    %v2986 = vsel %vm640, %v2983, %v2985
    %v2987 = vrot.slane %v2895, 4
    %v2988 = vsel %vm640, %v2985, %v2987
    %2989 = vrot.lane.b32.xlu0 %v2964, 64
    %v2990 = vpop.permute.xlu0 %2989
    %2991 = vrot.lane.b32.xlu0 %v2966, 64
    %v2992 = vpop.permute.xlu0 %2991
    %2993 = vrot.lane.b32.xlu0 %v2968, 64
    %v2994 = vpop.permute.xlu0 %2993
    %2995 = vrot.lane.b32.xlu0 %v2970, 64
    %v2996 = vpop.permute.xlu0 %2995
    %2997 = vrot.lane.b32.xlu0 %v2972, 64
    %v2998 = vpop.permute.xlu0 %2997
    %2999 = vrot.lane.b32.xlu0 %v2974, 64
    %v3000 = vpop.permute.xlu0 %2999
    %3001 = vrot.lane.b32.xlu0 %v2976, 64
    %v3002 = vpop.permute.xlu0 %3001
    %3003 = vrot.lane.b32.xlu0 %v2978, 64
    %v3004 = vpop.permute.xlu0 %3003
    %3005 = vrot.lane.b32.xlu0 %v2980, 64
    %v3006 = vpop.permute.xlu0 %3005
    %3007 = vrot.lane.b32.xlu0 %v2982, 64
    %v3008 = vpop.permute.xlu0 %3007
    %3009 = vrot.lane.b32.xlu0 %v2984, 64
    %v3010 = vpop.permute.xlu0 %3009
    %3011 = vrot.lane.b32.xlu0 %v2986, 64
    %v3012 = vpop.permute.xlu0 %3011
    %3013 = vrot.lane.b32.xlu0 %v2988, 64
    %v3014 = vpop.permute.xlu0 %3013
    %v3028 = vmul.f32 %v2898, %v2990
    %v3029 = vmul.f32 %v2902, %v2992
    %v3030 = vmul.f32 %v2906, %v2994
    %v3031 = vmul.f32 %v2910, %v2996
    %v3032 = vmul.f32 %v2914, %v2998
    %v3033 = vmul.f32 %v2918, %v3000
    %v3034 = vmul.f32 %v2922, %v3002
    %v3035 = vmul.f32 %v2926, %v3004
    %v3036 = vmul.f32 %v2930, %v3006
    %v3037 = vmul.f32 %v2934, %v3008
    %v3038 = vmul.f32 %v2938, %v3010
    %v3039 = vmul.f32 %v2942, %v3012
    %v3040 = vmul.f32 %v2946, %v3014
    %v3041 = vadd.f32 %v2869, %v3028
    %v3042 = vadd.f32 %v2870, %v3029
    %v3043 = vadd.f32 %v2871, %v3030
    %v3044 = vadd.f32 %v2872, %v3031
    %v3045 = vadd.f32 %v2873, %v3032
    %v3046 = vadd.f32 %v2874, %v3033
    %v3047 = vadd.f32 %v2875, %v3034
    %v3048 = vadd.f32 %v2876, %v3035
    %v3049 = vadd.f32 %v2877, %v3036
    %v3050 = vadd.f32 %v2878, %v3037
    %v3051 = vadd.f32 %v2879, %v3038
    %v3052 = vadd.f32 %v2880, %v3039
    %v3053 = vadd.f32 %v2881, %v3040
    %v3054 = vld [vmem:[#allocation2 + $0x50] sm:$0xc0]
    %v3055 = vld [vmem:[#allocation2 + $0x188] sm:$0x3f]
    %3056 = vset.pattern.permute.xlu0 7
    %3057 = vperm.xlu0 %3056, %v2023
    %v3058 = vpop.permute.xlu0 %3057
    %3060 = vset.pattern.permute.xlu0 7
    %3061 = vperm.xlu0 %3060, %v2024
    %v3062 = vpop.permute.xlu0 %3061
    %3064 = vset.pattern.permute.xlu0 7
    %3065 = vperm.xlu0 %3064, %v2025
    %v3066 = vpop.permute.xlu0 %3065
    %3068 = vset.pattern.permute.xlu0 7
    %3069 = vperm.xlu0 %3068, %v2026
    %v3070 = vpop.permute.xlu0 %3069
    %3072 = vset.pattern.permute.xlu0 7
    %3073 = vperm.xlu0 %3072, %v2027
    %v3074 = vpop.permute.xlu0 %3073
    %3076 = vset.pattern.permute.xlu0 7
    %3077 = vperm.xlu0 %3076, %v2028
    %v3078 = vpop.permute.xlu0 %3077
    %3080 = vset.pattern.permute.xlu0 7
    %3081 = vperm.xlu0 %3080, %v2029
    %v3082 = vpop.permute.xlu0 %3081
    %3084 = vset.pattern.permute.xlu0 7
    %3085 = vperm.xlu0 %3084, %v2030
    %v3086 = vpop.permute.xlu0 %3085
    %3088 = vset.pattern.permute.xlu0 7
    %3089 = vperm.xlu0 %3088, %v2031
    %v3090 = vpop.permute.xlu0 %3089
    %3092 = vset.pattern.permute.xlu0 7
    %3093 = vperm.xlu0 %3092, %v2032
    %v3094 = vpop.permute.xlu0 %3093
    %3096 = vset.pattern.permute.xlu0 7
    %3097 = vperm.xlu0 %3096, %v2033
    %v3098 = vpop.permute.xlu0 %3097
    %3100 = vset.pattern.permute.xlu0 7
    %3101 = vperm.xlu0 %3100, %v2034
    %v3102 = vpop.permute.xlu0 %3101
    %3104 = vset.pattern.permute.xlu0 7
    %3105 = vperm.xlu0 %3104, %v2035
    %v3106 = vpop.permute.xlu0 %3105
    %v3110 = vrot.slane %v3054, 6
    %v3111 = vrot.slane %v2883, 6
    %v3112 = vsel %vm813, %v3110, %v3111
    %v3113 = vrot.slane %v2884, 6
    %v3114 = vsel %vm813, %v3111, %v3113
    %v3115 = vrot.slane %v2885, 6
    %v3116 = vsel %vm813, %v3113, %v3115
    %v3117 = vrot.slane %v2886, 6
    %v3118 = vsel %vm813, %v3115, %v3117
    %v3119 = vrot.slane %v2887, 6
    %v3120 = vsel %vm813, %v3117, %v3119
    %v3121 = vrot.slane %v2888, 6
    %v3122 = vsel %vm813, %v3119, %v3121
    %v3123 = vrot.slane %v2889, 6
    %v3124 = vsel %vm813, %v3121, %v3123
    %v3125 = vrot.slane %v2890, 6
    %v3126 = vsel %vm813, %v3123, %v3125
    %v3127 = vrot.slane %v2891, 6
    %v3128 = vsel %vm813, %v3125, %v3127
    %v3129 = vrot.slane %v2892, 6
    %v3130 = vsel %vm813, %v3127, %v3129
    %v3131 = vrot.slane %v2893, 6
    %v3132 = vsel %vm813, %v3129, %v3131
    %v3133 = vrot.slane %v2894, 6
    %v3134 = vsel %vm813, %v3131, %v3133
    %v3135 = vrot.slane %v3055, 6
    %v3136 = vsel %vm813, %v3133, %v3135
    %3137 = vrot.lane.b32.xlu0 %v3112, 32
    %v3138 = vpop.permute.xlu0 %3137
    %3139 = vrot.lane.b32.xlu0 %v3114, 32
    %v3140 = vpop.permute.xlu0 %3139
    %3141 = vrot.lane.b32.xlu0 %v3116, 32
    %v3142 = vpop.permute.xlu0 %3141
    %3143 = vrot.lane.b32.xlu0 %v3118, 32
    %v3144 = vpop.permute.xlu0 %3143
    %3145 = vrot.lane.b32.xlu0 %v3120, 32
    %v3146 = vpop.permute.xlu0 %3145
    %3147 = vrot.lane.b32.xlu0 %v3122, 32
    %v3148 = vpop.permute.xlu0 %3147
    %3149 = vrot.lane.b32.xlu0 %v3124, 32
    %v3150 = vpop.permute.xlu0 %3149
    %3151 = vrot.lane.b32.xlu0 %v3126, 32
    %v3152 = vpop.permute.xlu0 %3151
    %3153 = vrot.lane.b32.xlu0 %v3128, 32
    %v3154 = vpop.permute.xlu0 %3153
    %3155 = vrot.lane.b32.xlu0 %v3130, 32
    %v3156 = vpop.permute.xlu0 %3155
    %3157 = vrot.lane.b32.xlu0 %v3132, 32
    %v3158 = vpop.permute.xlu0 %3157
    %3159 = vrot.lane.b32.xlu0 %v3134, 32
    %v3160 = vpop.permute.xlu0 %3159
    %3161 = vrot.lane.b32.xlu0 %v3136, 32
    %v3162 = vpop.permute.xlu0 %3161
    %v3176 = vmul.f32 %v3058, %v3138
    %v3177 = vmul.f32 %v3062, %v3140
    %v3178 = vmul.f32 %v3066, %v3142
    %v3179 = vmul.f32 %v3070, %v3144
    %v3180 = vmul.f32 %v3074, %v3146
    %v3181 = vmul.f32 %v3078, %v3148
    %v3182 = vmul.f32 %v3082, %v3150
    %v3183 = vmul.f32 %v3086, %v3152
    %v3184 = vmul.f32 %v3090, %v3154
    %v3185 = vmul.f32 %v3094, %v3156
    %v3186 = vmul.f32 %v3098, %v3158
    %v3187 = vmul.f32 %v3102, %v3160
    %v3188 = vmul.f32 %v3106, %v3162
    %v3189 = vadd.f32 %v3041, %v3176
    %v3190 = vadd.f32 %v3042, %v3177
    %v3191 = vadd.f32 %v3043, %v3178
    %v3192 = vadd.f32 %v3044, %v3179
    %v3193 = vadd.f32 %v3045, %v3180
    %v3194 = vadd.f32 %v3046, %v3181
    %v3195 = vadd.f32 %v3047, %v3182
    %v3196 = vadd.f32 %v3048, %v3183
    %v3197 = vadd.f32 %v3049, %v3184
    %v3198 = vadd.f32 %v3050, %v3185
    %v3199 = vadd.f32 %v3051, %v3186
    %v3200 = vadd.f32 %v3052, %v3187
    %v3201 = vadd.f32 %v3053, %v3188
    %v3202 = vld [vmem:[#allocation2 + $0x70] sm:$0xff]
    %v3203 = vld [vmem:[#allocation2 + $0x88] sm:$0xff]
    %v3204 = vld [vmem:[#allocation2 + $0xa0] sm:$0xff]
    %v3205 = vld [vmem:[#allocation2 + $0xb8] sm:$0xff]
    %v3206 = vld [vmem:[#allocation2 + $0xd0] sm:$0xff]
    %v3207 = vld [vmem:[#allocation2 + $0xe8] sm:$0xff]
    %v3208 = vld [vmem:[#allocation2 + $0x100] sm:$0xff]
    %v3209 = vld [vmem:[#allocation2 + $0x118] sm:$0xff]
    %v3210 = vld [vmem:[#allocation2 + $0x130] sm:$0xff]
    %v3211 = vld [vmem:[#allocation2 + $0x148] sm:$0xff]
    %v3212 = vld [vmem:[#allocation2 + $0x160] sm:$0xff]
    %v3213 = vld [vmem:[#allocation2 + $0x178] sm:$0xff]
    %v3214 = vld [vmem:[#allocation2 + $0x190] sm:$0xff]
    %3215 = vset.pattern.permute.xlu0 8
    %3216 = vperm.xlu0 %3215, %v2023
    %v3217 = vpop.permute.xlu0 %3216
    %3219 = vset.pattern.permute.xlu0 8
    %3220 = vperm.xlu0 %3219, %v2024
    %v3221 = vpop.permute.xlu0 %3220
    %3223 = vset.pattern.permute.xlu0 8
    %3224 = vperm.xlu0 %3223, %v2025
    %v3225 = vpop.permute.xlu0 %3224
    %3227 = vset.pattern.permute.xlu0 8
    %3228 = vperm.xlu0 %3227, %v2026
    %v3229 = vpop.permute.xlu0 %3228
    %3231 = vset.pattern.permute.xlu0 8
    %3232 = vperm.xlu0 %3231, %v2027
    %v3233 = vpop.permute.xlu0 %3232
    %3235 = vset.pattern.permute.xlu0 8
    %3236 = vperm.xlu0 %3235, %v2028
    %v3237 = vpop.permute.xlu0 %3236
    %3239 = vset.pattern.permute.xlu0 8
    %3240 = vperm.xlu0 %3239, %v2029
    %v3241 = vpop.permute.xlu0 %3240
    %3243 = vset.pattern.permute.xlu0 8
    %3244 = vperm.xlu0 %3243, %v2030
    %v3245 = vpop.permute.xlu0 %3244
    %3247 = vset.pattern.permute.xlu0 8
    %3248 = vperm.xlu0 %3247, %v2031
    %v3249 = vpop.permute.xlu0 %3248
    %3251 = vset.pattern.permute.xlu0 8
    %3252 = vperm.xlu0 %3251, %v2032
    %v3253 = vpop.permute.xlu0 %3252
    %3255 = vset.pattern.permute.xlu0 8
    %3256 = vperm.xlu0 %3255, %v2033
    %v3257 = vpop.permute.xlu0 %3256
    %3259 = vset.pattern.permute.xlu0 8
    %3260 = vperm.xlu0 %3259, %v2034
    %v3261 = vpop.permute.xlu0 %3260
    %3263 = vset.pattern.permute.xlu0 8
    %3264 = vperm.xlu0 %3263, %v2035
    %v3265 = vpop.permute.xlu0 %3264
    %v3267 = vmul.f32 %v3217, %v3202
    %v3268 = vmul.f32 %v3221, %v3203
    %v3269 = vmul.f32 %v3225, %v3204
    %v3270 = vmul.f32 %v3229, %v3205
    %v3271 = vmul.f32 %v3233, %v3206
    %v3272 = vmul.f32 %v3237, %v3207
    %v3273 = vmul.f32 %v3241, %v3208
    %v3274 = vmul.f32 %v3245, %v3209
    %v3275 = vmul.f32 %v3249, %v3210
    %v3276 = vmul.f32 %v3253, %v3211
    %v3277 = vmul.f32 %v3257, %v3212
    %v3278 = vmul.f32 %v3261, %v3213
    %v3279 = vmul.f32 %v3265, %v3214
    %v3280 = vadd.f32 %v3189, %v3267
    %v3281 = vadd.f32 %v3190, %v3268
    %v3282 = vadd.f32 %v3191, %v3269
    %v3283 = vadd.f32 %v3192, %v3270
    %v3284 = vadd.f32 %v3193, %v3271
    %v3285 = vadd.f32 %v3194, %v3272
    %v3286 = vadd.f32 %v3195, %v3273
    %v3287 = vadd.f32 %v3196, %v3274
    %v3288 = vadd.f32 %v3197, %v3275
    %v3289 = vadd.f32 %v3198, %v3276
    %v3290 = vadd.f32 %v3199, %v3277
    %v3291 = vadd.f32 %v3200, %v3278
    %v3292 = vadd.f32 %v3201, %v3279
    %v3293 = vld [vmem:[%s5] sm:$0x1]
    %v3295 = vlaneseq
    %v3296 = vshrl.u32 %v3295, 7
    %v3297 = vsub.s32 0, %v3296
    %v3298 = vrot.slane %v3293, %v3297
    %v3300 = vadd.f32 %v3280, %v3298
    %v3301 = vadd.f32 %v3281, %v3298
    %v3302 = vadd.f32 %v3282, %v3298
    %v3303 = vadd.f32 %v3283, %v3298
    %v3304 = vadd.f32 %v3284, %v3298
    %v3305 = vadd.f32 %v3285, %v3298
    %v3306 = vadd.f32 %v3286, %v3298
    %v3307 = vadd.f32 %v3287, %v3298
    %v3308 = vadd.f32 %v3288, %v3298
    %v3309 = vadd.f32 %v3289, %v3298
    %v3310 = vadd.f32 %v3290, %v3298
    %v3311 = vadd.f32 %v3291, %v3298
    %v3312 = vadd.f32 %v3292, %v3298
    %v3313 = vmax.f32 %v3300, 0.0
    %v3314 = vmax.f32 %v3301, 0.0
    %v3315 = vmax.f32 %v3302, 0.0
    %v3316 = vmax.f32 %v3303, 0.0
    %v3317 = vmax.f32 %v3304, 0.0
    %v3318 = vmax.f32 %v3305, 0.0
    %v3319 = vmax.f32 %v3306, 0.0
    %v3320 = vmax.f32 %v3307, 0.0
    %v3321 = vmax.f32 %v3308, 0.0
    %v3322 = vmax.f32 %v3309, 0.0
    %v3323 = vmax.f32 %v3310, 0.0
    %v3324 = vmax.f32 %v3311, 0.0
    %v3325 = vmax.f32 %v3312, 0.0
    %3326 = vset.pattern.permute.xlu0 9
    %3327 = vperm.xlu0 %3326, %v2023
    %v3328 = vpop.permute.xlu0 %3327
    %3330 = vset.pattern.permute.xlu0 9
    %3331 = vperm.xlu0 %3330, %v2024
    %v3332 = vpop.permute.xlu0 %3331
    %3334 = vset.pattern.permute.xlu0 9
    %3335 = vperm.xlu0 %3334, %v2025
    %v3336 = vpop.permute.xlu0 %3335
    %3338 = vset.pattern.permute.xlu0 9
    %3339 = vperm.xlu0 %3338, %v2026
    %v3340 = vpop.permute.xlu0 %3339
    %3342 = vset.pattern.permute.xlu0 9
    %3343 = vperm.xlu0 %3342, %v2027
    %v3344 = vpop.permute.xlu0 %3343
    %3346 = vset.pattern.permute.xlu0 9
    %3347 = vperm.xlu0 %3346, %v2028
    %v3348 = vpop.permute.xlu0 %3347
    %3350 = vset.pattern.permute.xlu0 9
    %3351 = vperm.xlu0 %3350, %v2029
    %v3352 = vpop.permute.xlu0 %3351
    %3354 = vset.pattern.permute.xlu0 9
    %3355 = vperm.xlu0 %3354, %v2030
    %v3356 = vpop.permute.xlu0 %3355
    %3358 = vset.pattern.permute.xlu0 9
    %3359 = vperm.xlu0 %3358, %v2031
    %v3360 = vpop.permute.xlu0 %3359
    %3362 = vset.pattern.permute.xlu0 9
    %3363 = vperm.xlu0 %3362, %v2032
    %v3364 = vpop.permute.xlu0 %3363
    %3366 = vset.pattern.permute.xlu0 9
    %3367 = vperm.xlu0 %3366, %v2033
    %v3368 = vpop.permute.xlu0 %3367
    %3370 = vset.pattern.permute.xlu0 9
    %3371 = vperm.xlu0 %3370, %v2034
    %v3372 = vpop.permute.xlu0 %3371
    %3374 = vset.pattern.permute.xlu0 9
    %3375 = vperm.xlu0 %3374, %v2035
    %v3376 = vpop.permute.xlu0 %3375
    %v3378 = vmul.f32 %v3313, %v3328
    %v3379 = vmul.f32 %v3314, %v3332
    %v3380 = vmul.f32 %v3315, %v3336
    %v3381 = vmul.f32 %v3316, %v3340
    %v3382 = vmul.f32 %v3317, %v3344
    %v3383 = vmul.f32 %v3318, %v3348
    %v3384 = vmul.f32 %v3319, %v3352
    %v3385 = vmul.f32 %v3320, %v3356
    %v3386 = vmul.f32 %v3321, %v3360
    %v3387 = vmul.f32 %v3322, %v3364
    %v3388 = vmul.f32 %v3323, %v3368
    %v3389 = vmul.f32 %v3324, %v3372
    %v3390 = vmul.f32 %v3325, %v3376
    %3391 = vst.msk [vmem:[#allocation3] sm:$0xff] %vm52, %v3378
    %3392 = vst.msk [vmem:[#allocation3 + $0x8] sm:$0xff] %vm52, %v3379
    %3393 = vst.msk [vmem:[#allocation3 + $0x10] sm:$0xff] %vm52, %v3380
    %3394 = vst.msk [vmem:[#allocation3 + $0x18] sm:$0xff] %vm52, %v3381
    %3395 = vst.msk [vmem:[#allocation3 + $0x20] sm:$0xff] %vm52, %v3382
    %3396 = vst.msk [vmem:[#allocation3 + $0x28] sm:$0xff] %vm52, %v3383
    %3397 = vst.msk [vmem:[#allocation3 + $0x30] sm:$0xff] %vm52, %v3384
    %3398 = vst.msk [vmem:[#allocation3 + $0x38] sm:$0xff] %vm52, %v3385
    %3399 = vst.msk [vmem:[#allocation3 + $0x40] sm:$0xff] %vm52, %v3386
    %3400 = vst.msk [vmem:[#allocation3 + $0x48] sm:$0xff] %vm52, %v3387
    %3401 = vst.msk [vmem:[#allocation3 + $0x50] sm:$0xff] %vm52, %v3388
    %3402 = vst.msk [vmem:[#allocation3 + $0x58] sm:$0xff] %vm52, %v3389
    %3403 = vst.msk [vmem:[#allocation3 + $0x60] sm:$0xff] %vm52, %v3390
    %v3404 = vld [vmem:[%s1] sm:$0xff]
    %v3405 = vld [vmem:[%s1 + $0x8] sm:$0xff]
    %v3406 = vld [vmem:[%s1 + $0x10] sm:$0xff]
    %v3407 = vld [vmem:[%s1 + $0x18] sm:$0xff]
    %v3408 = vld [vmem:[%s1 + $0x20] sm:$0xff]
    %v3409 = vld [vmem:[%s1 + $0x28] sm:$0xff]
    %v3410 = vld [vmem:[%s1 + $0x30] sm:$0xff]
    %v3411 = vld [vmem:[%s1 + $0x38] sm:$0xff]
    %v3412 = vld [vmem:[%s1 + $0x40] sm:$0xff]
    %v3413 = vld [vmem:[%s1 + $0x48] sm:$0xff]
    %v3414 = vld [vmem:[%s1 + $0x50] sm:$0xff]
    %v3415 = vld [vmem:[%s1 + $0x58] sm:$0xff]
    %v3416 = vld [vmem:[%s1 + $0x60] sm:$0xff]
    %3418 = vset.pattern.permute.xlu0 10
    %3419 = vperm.xlu0 %3418, %v3404
    %v3420 = vpop.permute.xlu0 %3419
    %3423 = vset.pattern.permute.xlu0 10
    %3424 = vperm.xlu0 %3423, %v3405
    %v3425 = vpop.permute.xlu0 %3424
    %3428 = vset.pattern.permute.xlu0 10
    %3429 = vperm.xlu0 %3428, %v3406
    %v3430 = vpop.permute.xlu0 %3429
    %3433 = vset.pattern.permute.xlu0 10
    %3434 = vperm.xlu0 %3433, %v3407
    %v3435 = vpop.permute.xlu0 %3434
    %3438 = vset.pattern.permute.xlu0 10
    %3439 = vperm.xlu0 %3438, %v3408
    %v3440 = vpop.permute.xlu0 %3439
    %3443 = vset.pattern.permute.xlu0 10
    %3444 = vperm.xlu0 %3443, %v3409
    %v3445 = vpop.permute.xlu0 %3444
    %3448 = vset.pattern.permute.xlu0 10
    %3449 = vperm.xlu0 %3448, %v3410
    %v3450 = vpop.permute.xlu0 %3449
    %3453 = vset.pattern.permute.xlu0 10
    %3454 = vperm.xlu0 %3453, %v3411
    %v3455 = vpop.permute.xlu0 %3454
    %3458 = vset.pattern.permute.xlu0 10
    %3459 = vperm.xlu0 %3458, %v3412
    %v3460 = vpop.permute.xlu0 %3459
    %3463 = vset.pattern.permute.xlu0 10
    %3464 = vperm.xlu0 %3463, %v3413
    %v3465 = vpop.permute.xlu0 %3464
    %3468 = vset.pattern.permute.xlu0 10
    %3469 = vperm.xlu0 %3468, %v3414
    %v3470 = vpop.permute.xlu0 %3469
    %3473 = vset.pattern.permute.xlu0 10
    %3474 = vperm.xlu0 %3473, %v3415
    %v3475 = vpop.permute.xlu0 %3474
    %3478 = vset.pattern.permute.xlu0 10
    %3479 = vperm.xlu0 %3478, %v3416
    %v3480 = vpop.permute.xlu0 %3479
    %v3482 = vmul.f32 %v3313, %v3420
    %v3483 = vmul.f32 %v3314, %v3425
    %v3484 = vmul.f32 %v3315, %v3430
    %v3485 = vmul.f32 %v3316, %v3435
    %v3486 = vmul.f32 %v3317, %v3440
    %v3487 = vmul.f32 %v3318, %v3445
    %v3488 = vmul.f32 %v3319, %v3450
    %v3489 = vmul.f32 %v3320, %v3455
    %v3490 = vmul.f32 %v3321, %v3460
    %v3491 = vmul.f32 %v3322, %v3465
    %v3492 = vmul.f32 %v3323, %v3470
    %v3493 = vmul.f32 %v3324, %v3475
    %v3494 = vmul.f32 %v3325, %v3480
    %3508 = vrot.lane.b32.xlu0 %v3482, 32
    %v3509 = vpop.permute.xlu0 %3508
    %3510 = vrot.lane.b32.xlu0 %v3483, 32
    %v3511 = vpop.permute.xlu0 %3510
    %3512 = vrot.lane.b32.xlu0 %v3484, 32
    %v3513 = vpop.permute.xlu0 %3512
    %3514 = vrot.lane.b32.xlu0 %v3485, 32
    %v3515 = vpop.permute.xlu0 %3514
    %3516 = vrot.lane.b32.xlu0 %v3486, 32
    %v3517 = vpop.permute.xlu0 %3516
    %3518 = vrot.lane.b32.xlu0 %v3487, 32
    %v3519 = vpop.permute.xlu0 %3518
    %3520 = vrot.lane.b32.xlu0 %v3488, 32
    %v3521 = vpop.permute.xlu0 %3520
    %3522 = vrot.lane.b32.xlu0 %v3489, 32
    %v3523 = vpop.permute.xlu0 %3522
    %3524 = vrot.lane.b32.xlu0 %v3490, 32
    %v3525 = vpop.permute.xlu0 %3524
    %3526 = vrot.lane.b32.xlu0 %v3491, 32
    %v3527 = vpop.permute.xlu0 %3526
    %3528 = vrot.lane.b32.xlu0 %v3492, 32
    %v3529 = vpop.permute.xlu0 %3528
    %3530 = vrot.lane.b32.xlu0 %v3493, 32
    %v3531 = vpop.permute.xlu0 %3530
    %3532 = vrot.lane.b32.xlu0 %v3494, 32
    %v3533 = vpop.permute.xlu0 %3532
    %vm3547 = vcmask 523520
    %3548 = vst.msk [vmem:[#allocation3] sm:$0xff] %vm3547, %v3509
    %3549 = vst.msk [vmem:[#allocation3 + $0x8] sm:$0xff] %vm3547, %v3511
    %3550 = vst.msk [vmem:[#allocation3 + $0x10] sm:$0xff] %vm3547, %v3513
    %3551 = vst.msk [vmem:[#allocation3 + $0x18] sm:$0xff] %vm3547, %v3515
    %3552 = vst.msk [vmem:[#allocation3 + $0x20] sm:$0xff] %vm3547, %v3517
    %3553 = vst.msk [vmem:[#allocation3 + $0x28] sm:$0xff] %vm3547, %v3519
    %3554 = vst.msk [vmem:[#allocation3 + $0x30] sm:$0xff] %vm3547, %v3521
    %3555 = vst.msk [vmem:[#allocation3 + $0x38] sm:$0xff] %vm3547, %v3523
    %3556 = vst.msk [vmem:[#allocation3 + $0x40] sm:$0xff] %vm3547, %v3525
    %3557 = vst.msk [vmem:[#allocation3 + $0x48] sm:$0xff] %vm3547, %v3527
    %3558 = vst.msk [vmem:[#allocation3 + $0x50] sm:$0xff] %vm3547, %v3529
    %3559 = vst.msk [vmem:[#allocation3 + $0x58] sm:$0xff] %vm3547, %v3531
    %3560 = vst.msk [vmem:[#allocation3 + $0x60] sm:$0xff] %vm3547, %v3533
    %v3561 = vld [vmem:[%s1] sm:$0xff]
    %v3562 = vld [vmem:[%s1 + $0x8] sm:$0xff]
    %v3563 = vld [vmem:[%s1 + $0x10] sm:$0xff]
    %v3564 = vld [vmem:[%s1 + $0x18] sm:$0xff]
    %v3565 = vld [vmem:[%s1 + $0x20] sm:$0xff]
    %v3566 = vld [vmem:[%s1 + $0x28] sm:$0xff]
    %v3567 = vld [vmem:[%s1 + $0x30] sm:$0xff]
    %v3568 = vld [vmem:[%s1 + $0x38] sm:$0xff]
    %v3569 = vld [vmem:[%s1 + $0x40] sm:$0xff]
    %v3570 = vld [vmem:[%s1 + $0x48] sm:$0xff]
    %v3571 = vld [vmem:[%s1 + $0x50] sm:$0xff]
    %v3572 = vld [vmem:[%s1 + $0x58] sm:$0xff]
    %v3573 = vld [vmem:[%s1 + $0x60] sm:$0xff]
    %3575 = vset.pattern.permute.xlu0 11
    %3576 = vperm.xlu0 %3575, %v3561
    %v3577 = vpop.permute.xlu0 %3576
    %3580 = vset.pattern.permute.xlu0 11
    %3581 = vperm.xlu0 %3580, %v3562
    %v3582 = vpop.permute.xlu0 %3581
    %3585 = vset.pattern.permute.xlu0 11
    %3586 = vperm.xlu0 %3585, %v3563
    %v3587 = vpop.permute.xlu0 %3586
    %3590 = vset.pattern.permute.xlu0 11
    %3591 = vperm.xlu0 %3590, %v3564
    %v3592 = vpop.permute.xlu0 %3591
    %3595 = vset.pattern.permute.xlu0 11
    %3596 = vperm.xlu0 %3595, %v3565
    %v3597 = vpop.permute.xlu0 %3596
    %3600 = vset.pattern.permute.xlu0 11
    %3601 = vperm.xlu0 %3600, %v3566
    %v3602 = vpop.permute.xlu0 %3601
    %3605 = vset.pattern.permute.xlu0 11
    %3606 = vperm.xlu0 %3605, %v3567
    %v3607 = vpop.permute.xlu0 %3606
    %3610 = vset.pattern.permute.xlu0 11
    %3611 = vperm.xlu0 %3610, %v3568
    %v3612 = vpop.permute.xlu0 %3611
    %3615 = vset.pattern.permute.xlu0 11
    %3616 = vperm.xlu0 %3615, %v3569
    %v3617 = vpop.permute.xlu0 %3616
    %3620 = vset.pattern.permute.xlu0 11
    %3621 = vperm.xlu0 %3620, %v3570
    %v3622 = vpop.permute.xlu0 %3621
    %3625 = vset.pattern.permute.xlu0 11
    %3626 = vperm.xlu0 %3625, %v3571
    %v3627 = vpop.permute.xlu0 %3626
    %3630 = vset.pattern.permute.xlu0 11
    %3631 = vperm.xlu0 %3630, %v3572
    %v3632 = vpop.permute.xlu0 %3631
    %3635 = vset.pattern.permute.xlu0 11
    %3636 = vperm.xlu0 %3635, %v3573
    %v3637 = vpop.permute.xlu0 %3636
    %v3639 = vmul.f32 %v3313, %v3577
    %v3640 = vmul.f32 %v3314, %v3582
    %v3641 = vmul.f32 %v3315, %v3587
    %v3642 = vmul.f32 %v3316, %v3592
    %v3643 = vmul.f32 %v3317, %v3597
    %v3644 = vmul.f32 %v3318, %v3602
    %v3645 = vmul.f32 %v3319, %v3607
    %v3646 = vmul.f32 %v3320, %v3612
    %v3647 = vmul.f32 %v3321, %v3617
    %v3648 = vmul.f32 %v3322, %v3622
    %v3649 = vmul.f32 %v3323, %v3627
    %v3650 = vmul.f32 %v3324, %v3632
    %v3651 = vmul.f32 %v3325, %v3637
    %3665 = vrot.lane.b32.xlu0 %v3639, 64
    %v3666 = vpop.permute.xlu0 %3665
    %3667 = vrot.lane.b32.xlu0 %v3640, 64
    %v3668 = vpop.permute.xlu0 %3667
    %3669 = vrot.lane.b32.xlu0 %v3641, 64
    %v3670 = vpop.permute.xlu0 %3669
    %3671 = vrot.lane.b32.xlu0 %v3642, 64
    %v3672 = vpop.permute.xlu0 %3671
    %3673 = vrot.lane.b32.xlu0 %v3643, 64
    %v3674 = vpop.permute.xlu0 %3673
    %3675 = vrot.lane.b32.xlu0 %v3644, 64
    %v3676 = vpop.permute.xlu0 %3675
    %3677 = vrot.lane.b32.xlu0 %v3645, 64
    %v3678 = vpop.permute.xlu0 %3677
    %3679 = vrot.lane.b32.xlu0 %v3646, 64
    %v3680 = vpop.permute.xlu0 %3679
    %3681 = vrot.lane.b32.xlu0 %v3647, 64
    %v3682 = vpop.permute.xlu0 %3681
    %3683 = vrot.lane.b32.xlu0 %v3648, 64
    %v3684 = vpop.permute.xlu0 %3683
    %3685 = vrot.lane.b32.xlu0 %v3649, 64
    %v3686 = vpop.permute.xlu0 %3685
    %3687 = vrot.lane.b32.xlu0 %v3650, 64
    %v3688 = vpop.permute.xlu0 %3687
    %3689 = vrot.lane.b32.xlu0 %v3651, 64
    %v3690 = vpop.permute.xlu0 %3689
    %vm3704 = vcmask 785920
    %3705 = vst.msk [vmem:[#allocation3] sm:$0xff] %vm3704, %v3666
    %3706 = vst.msk [vmem:[#allocation3 + $0x8] sm:$0xff] %vm3704, %v3668
    %3707 = vst.msk [vmem:[#allocation3 + $0x10] sm:$0xff] %vm3704, %v3670
    %3708 = vst.msk [vmem:[#allocation3 + $0x18] sm:$0xff] %vm3704, %v3672
    %3709 = vst.msk [vmem:[#allocation3 + $0x20] sm:$0xff] %vm3704, %v3674
    %3710 = vst.msk [vmem:[#allocation3 + $0x28] sm:$0xff] %vm3704, %v3676
    %3711 = vst.msk [vmem:[#allocation3 + $0x30] sm:$0xff] %vm3704, %v3678
    %3712 = vst.msk [vmem:[#allocation3 + $0x38] sm:$0xff] %vm3704, %v3680
    %3713 = vst.msk [vmem:[#allocation3 + $0x40] sm:$0xff] %vm3704, %v3682
    %3714 = vst.msk [vmem:[#allocation3 + $0x48] sm:$0xff] %vm3704, %v3684
    %3715 = vst.msk [vmem:[#allocation3 + $0x50] sm:$0xff] %vm3704, %v3686
    %3716 = vst.msk [vmem:[#allocation3 + $0x58] sm:$0xff] %vm3704, %v3688
    %3717 = vst.msk [vmem:[#allocation3 + $0x60] sm:$0xff] %vm3704, %v3690
    %v3718 = vld [vmem:[%s1] sm:$0xff]
    %v3719 = vld [vmem:[%s1 + $0x8] sm:$0xff]
    %v3720 = vld [vmem:[%s1 + $0x10] sm:$0xff]
    %v3721 = vld [vmem:[%s1 + $0x18] sm:$0xff]
    %v3722 = vld [vmem:[%s1 + $0x20] sm:$0xff]
    %v3723 = vld [vmem:[%s1 + $0x28] sm:$0xff]
    %v3724 = vld [vmem:[%s1 + $0x30] sm:$0xff]
    %v3725 = vld [vmem:[%s1 + $0x38] sm:$0xff]
    %v3726 = vld [vmem:[%s1 + $0x40] sm:$0xff]
    %v3727 = vld [vmem:[%s1 + $0x48] sm:$0xff]
    %v3728 = vld [vmem:[%s1 + $0x50] sm:$0xff]
    %v3729 = vld [vmem:[%s1 + $0x58] sm:$0xff]
    %v3730 = vld [vmem:[%s1 + $0x60] sm:$0xff]
    %3732 = vset.pattern.permute.xlu0 12
    %3733 = vperm.xlu0 %3732, %v3718
    %v3734 = vpop.permute.xlu0 %3733
    %3737 = vset.pattern.permute.xlu0 12
    %3738 = vperm.xlu0 %3737, %v3719
    %v3739 = vpop.permute.xlu0 %3738
    %3742 = vset.pattern.permute.xlu0 12
    %3743 = vperm.xlu0 %3742, %v3720
    %v3744 = vpop.permute.xlu0 %3743
    %3747 = vset.pattern.permute.xlu0 12
    %3748 = vperm.xlu0 %3747, %v3721
    %v3749 = vpop.permute.xlu0 %3748
    %3752 = vset.pattern.permute.xlu0 12
    %3753 = vperm.xlu0 %3752, %v3722
    %v3754 = vpop.permute.xlu0 %3753
    %3757 = vset.pattern.permute.xlu0 12
    %3758 = vperm.xlu0 %3757, %v3723
    %v3759 = vpop.permute.xlu0 %3758
    %3762 = vset.pattern.permute.xlu0 12
    %3763 = vperm.xlu0 %3762, %v3724
    %v3764 = vpop.permute.xlu0 %3763
    %3767 = vset.pattern.permute.xlu0 12
    %3768 = vperm.xlu0 %3767, %v3725
    %v3769 = vpop.permute.xlu0 %3768
    %3772 = vset.pattern.permute.xlu0 12
    %3773 = vperm.xlu0 %3772, %v3726
    %v3774 = vpop.permute.xlu0 %3773
    %3777 = vset.pattern.permute.xlu0 12
    %3778 = vperm.xlu0 %3777, %v3727
    %v3779 = vpop.permute.xlu0 %3778
    %3782 = vset.pattern.permute.xlu0 12
    %3783 = vperm.xlu0 %3782, %v3728
    %v3784 = vpop.permute.xlu0 %3783
    %3787 = vset.pattern.permute.xlu0 12
    %3788 = vperm.xlu0 %3787, %v3729
    %v3789 = vpop.permute.xlu0 %3788
    %3792 = vset.pattern.permute.xlu0 12
    %3793 = vperm.xlu0 %3792, %v3730
    %v3794 = vpop.permute.xlu0 %3793
    %v3796 = vmul.f32 %v3313, %v3734
    %v3797 = vmul.f32 %v3314, %v3739
    %v3798 = vmul.f32 %v3315, %v3744
    %v3799 = vmul.f32 %v3316, %v3749
    %v3800 = vmul.f32 %v3317, %v3754
    %v3801 = vmul.f32 %v3318, %v3759
    %v3802 = vmul.f32 %v3319, %v3764
    %v3803 = vmul.f32 %v3320, %v3769
    %v3804 = vmul.f32 %v3321, %v3774
    %v3805 = vmul.f32 %v3322, %v3779
    %v3806 = vmul.f32 %v3323, %v3784
    %v3807 = vmul.f32 %v3324, %v3789
    %v3808 = vmul.f32 %v3325, %v3794
    %3822 = vrot.lane.b32.xlu0 %v3796, 96
    %v3823 = vpop.permute.xlu0 %3822
    %3824 = vrot.lane.b32.xlu0 %v3797, 96
    %v3825 = vpop.permute.xlu0 %3824
    %3826 = vrot.lane.b32.xlu0 %v3798, 96
    %v3827 = vpop.permute.xlu0 %3826
    %3828 = vrot.lane.b32.xlu0 %v3799, 96
    %v3829 = vpop.permute.xlu0 %3828
    %3830 = vrot.lane.b32.xlu0 %v3800, 96
    %v3831 = vpop.permute.xlu0 %3830
    %3832 = vrot.lane.b32.xlu0 %v3801, 96
    %v3833 = vpop.permute.xlu0 %3832
    %3834 = vrot.lane.b32.xlu0 %v3802, 96
    %v3835 = vpop.permute.xlu0 %3834
    %3836 = vrot.lane.b32.xlu0 %v3803, 96
    %v3837 = vpop.permute.xlu0 %3836
    %3838 = vrot.lane.b32.xlu0 %v3804, 96
    %v3839 = vpop.permute.xlu0 %3838
    %3840 = vrot.lane.b32.xlu0 %v3805, 96
    %v3841 = vpop.permute.xlu0 %3840
    %3842 = vrot.lane.b32.xlu0 %v3806, 96
    %v3843 = vpop.permute.xlu0 %3842
    %3844 = vrot.lane.b32.xlu0 %v3807, 96
    %v3845 = vpop.permute.xlu0 %3844
    %3846 = vrot.lane.b32.xlu0 %v3808, 96
    %v3847 = vpop.permute.xlu0 %3846
    %vm3861 = vcmask 1048320
    %3862 = vst.msk [vmem:[#allocation3] sm:$0xff] %vm3861, %v3823
    %3863 = vst.msk [vmem:[#allocation3 + $0x8] sm:$0xff] %vm3861, %v3825
    %3864 = vst.msk [vmem:[#allocation3 + $0x10] sm:$0xff] %vm3861, %v3827
    %3865 = vst.msk [vmem:[#allocation3 + $0x18] sm:$0xff] %vm3861, %v3829
    %3866 = vst.msk [vmem:[#allocation3 + $0x20] sm:$0xff] %vm3861, %v3831
    %3867 = vst.msk [vmem:[#allocation3 + $0x28] sm:$0xff] %vm3861, %v3833
    %3868 = vst.msk [vmem:[#allocation3 + $0x30] sm:$0xff] %vm3861, %v3835
    %3869 = vst.msk [vmem:[#allocation3 + $0x38] sm:$0xff] %vm3861, %v3837
    %3870 = vst.msk [vmem:[#allocation3 + $0x40] sm:$0xff] %vm3861, %v3839
    %3871 = vst.msk [vmem:[#allocation3 + $0x48] sm:$0xff] %vm3861, %v3841
    %3872 = vst.msk [vmem:[#allocation3 + $0x50] sm:$0xff] %vm3861, %v3843
    %3873 = vst.msk [vmem:[#allocation3 + $0x58] sm:$0xff] %vm3861, %v3845
    %3874 = vst.msk [vmem:[#allocation3 + $0x60] sm:$0xff] %vm3861, %v3847
    %v3875 = vld [vmem:[#allocation3] sm:$0xff]
    %v3876 = vld [vmem:[#allocation3 + $0x8] sm:$0xff]
    %v3877 = vld [vmem:[#allocation3 + $0x10] sm:$0xff]
    %v3878 = vld [vmem:[#allocation3 + $0x18] sm:$0xff]
    %v3879 = vld [vmem:[#allocation3 + $0x20] sm:$0xff]
    %v3880 = vld [vmem:[#allocation3 + $0x28] sm:$0xff]
    %v3881 = vld [vmem:[#allocation3 + $0x30] sm:$0xff]
    %v3882 = vld [vmem:[#allocation3 + $0x38] sm:$0xff]
    %v3883 = vld [vmem:[#allocation3 + $0x40] sm:$0xff]
    %v3884 = vld [vmem:[#allocation3 + $0x48] sm:$0xff]
    %v3885 = vld [vmem:[#allocation3 + $0x50] sm:$0xff]
    %v3886 = vld [vmem:[#allocation3 + $0x58] sm:$0xff]
    %v3887 = vld [vmem:[#allocation3 + $0x60] sm:$0xff]
    %v3888 = vpack.c.bf16 %v3876, %v3875
    %v3889 = vpack.c.bf16 %v3878, %v3877
    %v3890 = vpack.c.bf16 %v3880, %v3879
    %v3891 = vpack.c.bf16 %v3882, %v3881
    %v3892 = vpack.c.bf16 %v3884, %v3883
    %v3893 = vpack.c.bf16 %v3886, %v3885
    %v3894 = vpack.c.bf16 %v3887, %v3887
    %v3895 = vld [vmem:[#allocation4] sm:$0xff]
    %v3896 = vld [vmem:[#allocation4 + $0x8] sm:$0xff]
    %v3897 = vld [vmem:[#allocation4 + $0x10] sm:$0xff]
    %v3898 = vld [vmem:[#allocation4 + $0x18] sm:$0xff]
    %v3899 = vld [vmem:[#allocation4 + $0x20] sm:$0xff]
    %v3900 = vld [vmem:[#allocation4 + $0x28] sm:$0xff]
    %v3901 = vld [vmem:[#allocation4 + $0x30] sm:$0xff]
    %v3902 = vld [vmem:[#allocation4 + $0x38] sm:$0xff]
    %v3903 = vld [vmem:[#allocation4 + $0x40] sm:$0xff]
    %v3904 = vld [vmem:[#allocation4 + $0x48] sm:$0xff]
    %v3905 = vld [vmem:[#allocation4 + $0x50] sm:$0xff]
    %v3906 = vld [vmem:[#allocation4 + $0x58] sm:$0xff]
    %v3907 = vld [vmem:[#allocation4 + $0x60] sm:$0xff]
    %v3908 = vld [vmem:[#allocation4 + $0x68] sm:$0xff]
    %v3909 = vld [vmem:[#allocation4 + $0x70] sm:$0xff]
    %v3910 = vld [vmem:[#allocation4 + $0x78] sm:$0xff]
    %v3911 = vld [vmem:[#allocation4 + $0x80] sm:$0xff]
    %v3912 = vld [vmem:[#allocation4 + $0x88] sm:$0xff]
    %v3913 = vld [vmem:[#allocation4 + $0x90] sm:$0xff]
    %v3914 = vld [vmem:[#allocation4 + $0x98] sm:$0xff]
    %v3915 = vld [vmem:[#allocation4 + $0xa0] sm:$0xff]
    %v3916 = vld [vmem:[#allocation4 + $0xa8] sm:$0xff]
    %v3917 = vld [vmem:[#allocation4 + $0xb0] sm:$0xff]
    %v3918 = vld [vmem:[#allocation4 + $0xb8] sm:$0xff]
    %v3919 = vld [vmem:[#allocation4 + $0xc0] sm:$0xff]
    %v3920 = vld [vmem:[#allocation4 + $0xc8] sm:$0xff]
    %v3921 = vld [vmem:[#allocation4 + $0xd0] sm:$0xff]
    %v3922 = vld [vmem:[#allocation4 + $0xd8] sm:$0xff]
    %v3923 = vld [vmem:[#allocation4 + $0xe0] sm:$0xff]
    %v3924 = vld [vmem:[#allocation4 + $0xe8] sm:$0xff]
    %v3925 = vld [vmem:[#allocation4 + $0xf0] sm:$0xff]
    %v3926 = vld [vmem:[#allocation4 + $0xf8] sm:$0xff]
    %v3928 = vrot.slane %v3888, 4
    %v3946 = vunpack.c.l.b16 %v3911
    %v3947 = vunpack.c.h.b16 %v3911
    %v3948 = vunpack.c.l.b16 %v3912
    %v3949 = vunpack.c.h.b16 %v3912
    %v3950 = vunpack.c.l.b16 %v3913
    %v3951 = vunpack.c.h.b16 %v3913
    %v3952 = vunpack.c.l.b16 %v3914
    %v3953 = vunpack.c.h.b16 %v3914
    %v3954 = vunpack.c.l.b16 %v3915
    %v3955 = vunpack.c.h.b16 %v3915
    %v3956 = vunpack.c.l.b16 %v3916
    %v3957 = vunpack.c.h.b16 %v3916
    %v3958 = vunpack.c.l.b16 %v3917
    %v3959 = vunpack.c.h.b16 %v3917
    %v3960 = vunpack.c.l.b16 %v3918
    %v3961 = vunpack.c.h.b16 %v3918
    %v3962 = vunpack.c.l.b16 %v3919
    %v3963 = vunpack.c.h.b16 %v3919
    %v3964 = vunpack.c.l.b16 %v3920
    %v3965 = vunpack.c.h.b16 %v3920
    %v3966 = vunpack.c.l.b16 %v3921
    %v3967 = vunpack.c.h.b16 %v3921
    %v3968 = vunpack.c.l.b16 %v3922
    %v3969 = vunpack.c.h.b16 %v3922
    %v3970 = vunpack.c.l.b16 %v3923
    %v3971 = vunpack.c.h.b16 %v3923
    %v3972 = vunpack.c.l.b16 %v3924
    %v3973 = vunpack.c.h.b16 %v3924
    %v3974 = vunpack.c.l.b16 %v3925
    %v3975 = vunpack.c.h.b16 %v3925
    %v3976 = vunpack.c.l.b16 %v3926
    %v3977 = vunpack.c.h.b16 %v3926
    %v3978 = vpack.c.b16 %v3948, %v3946
    %v3979 = vpack.c.b16 %v3949, %v3947
    %v3980 = vpack.c.b16 %v3952, %v3950
    %v3981 = vpack.c.b16 %v3953, %v3951
    %v3982 = vpack.c.b16 %v3956, %v3954
    %v3983 = vpack.c.b16 %v3957, %v3955
    %v3984 = vpack.c.b16 %v3960, %v3958
    %v3985 = vpack.c.b16 %v3961, %v3959
    %v3986 = vpack.c.b16 %v3964, %v3962
    %v3987 = vpack.c.b16 %v3965, %v3963
    %v3988 = vpack.c.b16 %v3968, %v3966
    %v3989 = vpack.c.b16 %v3969, %v3967
    %v3990 = vpack.c.b16 %v3972, %v3970
    %v3991 = vpack.c.b16 %v3973, %v3971
    %v3992 = vpack.c.b16 %v3976, %v3974
    %v3993 = vpack.c.b16 %v3977, %v3975
    %4010 = vmatprep.subr.bf16.mxu0 %v3979
    %4011 = vmatpush1.bf16.msra.mxu0 %v3978
    %4012 = vmatprep.subr.bf16.mxu0 %v3981
    %4013 = vmatpush1.bf16.msra.mxu0 %v3980
    %4014 = vmatprep.subr.bf16.mxu0 %v3983
    %4015 = vmatpush1.bf16.msra.mxu0 %v3982
    %4016 = vmatprep.subr.bf16.mxu0 %v3985
    %4017 = vmatpush1.bf16.msra.mxu0 %v3984
    %4018 = vmatprep.subr.bf16.mxu0 %v3987
    %4019 = vmatpush1.bf16.msra.mxu0 %v3986
    %4020 = vmatprep.subr.bf16.mxu0 %v3989
    %4021 = vmatpush1.bf16.msra.mxu0 %v3988
    %4022 = vmatprep.subr.bf16.mxu0 %v3991
    %4023 = vmatpush1.bf16.msra.mxu0 %v3990
    %4024 = vmatprep.subr.bf16.mxu0 %v3993
    %4025 = vmatpush1.bf16.msra.mxu0 %v3992
    %4026 = vmatprep.subr.bf16.mxu0 0
    %4027 = vmatpush1.bf16.msra.mxu0 0
    %4028 = vmatprep.subr.bf16.mxu0 0
    %4029 = vmatpush1.bf16.msra.mxu0 0
    %4030 = vmatprep.subr.bf16.mxu0 0
    %4031 = vmatpush1.bf16.msra.mxu0 0
    %4032 = vmatprep.subr.bf16.mxu0 0
    %4033 = vmatpush1.bf16.msra.mxu0 0
    %4034 = vmatprep.subr.bf16.mxu0 0
    %4035 = vmatpush1.bf16.msra.mxu0 0
    %4036 = vmatprep.subr.bf16.mxu0 0
    %4037 = vmatpush1.bf16.msra.mxu0 0
    %4038 = vmatprep.subr.bf16.mxu0 0
    %4039 = vmatpush1.bf16.msra.mxu0 0
    %4040 = vmatprep.subr.bf16.mxu0 0
    %4041 = vmatpush1.bf16.msra.mxu0 0
    %4042 = vmatprep.mubr.bf16.mxu0 0
    %4043 = vmatmul.mubr.bf16.gmra.mrb[0].mxu0 %v3928
    %v4044 = vpop.f32.mrb[0].mxu0
    %v4045 = vadd.f32 0.0, %v4044
    %v4046 = vpop.f32.mrb[0].mxu0
    %v4047 = vadd.f32 0.0, %v4046
    %v4048 = vpop.f32.mrb[0].mxu0
    %v4049 = vpop.f32.mrb[0].mxu0
    %4050 = vdwg.mxu0
    %v4067 = vunpack.c.l.b16 %v3895
    %v4068 = vunpack.c.h.b16 %v3895
    %v4069 = vunpack.c.l.b16 %v3896
    %v4070 = vunpack.c.h.b16 %v3896
    %v4071 = vunpack.c.l.b16 %v3897
    %v4072 = vunpack.c.h.b16 %v3897
    %v4073 = vunpack.c.l.b16 %v3898
    %v4074 = vunpack.c.h.b16 %v3898
    %v4075 = vunpack.c.l.b16 %v3899
    %v4076 = vunpack.c.h.b16 %v3899
    %v4077 = vunpack.c.l.b16 %v3900
    %v4078 = vunpack.c.h.b16 %v3900
    %v4079 = vunpack.c.l.b16 %v3901
    %v4080 = vunpack.c.h.b16 %v3901
    %v4081 = vunpack.c.l.b16 %v3902
    %v4082 = vunpack.c.h.b16 %v3902
    %v4083 = vunpack.c.l.b16 %v3903
    %v4084 = vunpack.c.h.b16 %v3903
    %v4085 = vunpack.c.l.b16 %v3904
    %v4086 = vunpack.c.h.b16 %v3904
    %v4087 = vunpack.c.l.b16 %v3905
    %v4088 = vunpack.c.h.b16 %v3905
    %v4089 = vunpack.c.l.b16 %v3906
    %v4090 = vunpack.c.h.b16 %v3906
    %v4091 = vunpack.c.l.b16 %v3907
    %v4092 = vunpack.c.h.b16 %v3907
    %v4093 = vunpack.c.l.b16 %v3908
    %v4094 = vunpack.c.h.b16 %v3908
    %v4095 = vunpack.c.l.b16 %v3909
    %v4096 = vunpack.c.h.b16 %v3909
    %v4097 = vunpack.c.l.b16 %v3910
    %v4098 = vunpack.c.h.b16 %v3910
    %v4099 = vpack.c.b16 %v4069, %v4067
    %v4100 = vpack.c.b16 %v4070, %v4068
    %v4101 = vpack.c.b16 %v4073, %v4071
    %v4102 = vpack.c.b16 %v4074, %v4072
    %v4103 = vpack.c.b16 %v4077, %v4075
    %v4104 = vpack.c.b16 %v4078, %v4076
    %v4105 = vpack.c.b16 %v4081, %v4079
    %v4106 = vpack.c.b16 %v4082, %v4080
    %v4107 = vpack.c.b16 %v4085, %v4083
    %v4108 = vpack.c.b16 %v4086, %v4084
    %v4109 = vpack.c.b16 %v4089, %v4087
    %v4110 = vpack.c.b16 %v4090, %v4088
    %v4111 = vpack.c.b16 %v4093, %v4091
    %v4112 = vpack.c.b16 %v4094, %v4092
    %v4113 = vpack.c.b16 %v4097, %v4095
    %v4114 = vpack.c.b16 %v4098, %v4096
    %4131 = vmatprep.subr.bf16.mxu0 %v4100
    %4132 = vmatpush1.bf16.msra.mxu0 %v4099
    %4133 = vmatprep.subr.bf16.mxu0 %v4102
    %4134 = vmatpush1.bf16.msra.mxu0 %v4101
    %4135 = vmatprep.subr.bf16.mxu0 %v4104
    %4136 = vmatpush1.bf16.msra.mxu0 %v4103
    %4137 = vmatprep.subr.bf16.mxu0 %v4106
    %4138 = vmatpush1.bf16.msra.mxu0 %v4105
    %4139 = vmatprep.subr.bf16.mxu0 %v4108
    %4140 = vmatpush1.bf16.msra.mxu0 %v4107
    %4141 = vmatprep.subr.bf16.mxu0 %v4110
    %4142 = vmatpush1.bf16.msra.mxu0 %v4109
    %4143 = vmatprep.subr.bf16.mxu0 %v4112
    %4144 = vmatpush1.bf16.msra.mxu0 %v4111
    %4145 = vmatprep.subr.bf16.mxu0 %v4114
    %4146 = vmatpush1.bf16.msra.mxu0 %v4113
    %4147 = vmatprep.subr.bf16.mxu0 0
    %4148 = vmatpush1.bf16.msra.mxu0 0
    %4149 = vmatprep.subr.bf16.mxu0 0
    %4150 = vmatpush1.bf16.msra.mxu0 0
    %4151 = vmatprep.subr.bf16.mxu0 0
    %4152 = vmatpush1.bf16.msra.mxu0 0
    %4153 = vmatprep.subr.bf16.mxu0 0
    %4154 = vmatpush1.bf16.msra.mxu0 0
    %4155 = vmatprep.subr.bf16.mxu0 0
    %4156 = vmatpush1.bf16.msra.mxu0 0
    %4157 = vmatprep.subr.bf16.mxu0 0
    %4158 = vmatpush1.bf16.msra.mxu0 0
    %4159 = vmatprep.subr.bf16.mxu0 0
    %4160 = vmatpush1.bf16.msra.mxu0 0
    %4161 = vmatprep.subr.bf16.mxu0 0
    %4162 = vmatpush1.bf16.msra.mxu0 0
    %4163 = vmatprep.mubr.bf16.mxu0 0
    %4164 = vmatmul.mubr.bf16.gmra.mrb[0].mxu0 %v3888
    %v4165 = vpop.f32.mrb[0].mxu0
    %v4166 = vadd.f32 %v4045, %v4165
    %v4167 = vpop.f32.mrb[0].mxu0
    %v4168 = vadd.f32 %v4047, %v4167
    %v4169 = vpop.f32.mrb[0].mxu0
    %v4170 = vpop.f32.mrb[0].mxu0
    %4171 = vdwg.mxu0
    %v4172 = vld [vmem:[#allocation4 + $0x100] sm:$0xff]
    %v4173 = vld [vmem:[#allocation4 + $0x108] sm:$0xff]
    %v4174 = vld [vmem:[#allocation4 + $0x110] sm:$0xff]
    %v4175 = vld [vmem:[#allocation4 + $0x118] sm:$0xff]
    %v4176 = vld [vmem:[#allocation4 + $0x120] sm:$0xff]
    %v4177 = vld [vmem:[#allocation4 + $0x128] sm:$0xff]
    %v4178 = vld [vmem:[#allocation4 + $0x130] sm:$0xff]
    %v4179 = vld [vmem:[#allocation4 + $0x138] sm:$0xff]
    %v4180 = vld [vmem:[#allocation4 + $0x140] sm:$0xff]
    %v4181 = vld [vmem:[#allocation4 + $0x148] sm:$0xff]
    %v4182 = vld [vmem:[#allocation4 + $0x150] sm:$0xff]
    %v4183 = vld [vmem:[#allocation4 + $0x158] sm:$0xff]
    %v4184 = vld [vmem:[#allocation4 + $0x160] sm:$0xff]
    %v4185 = vld [vmem:[#allocation4 + $0x168] sm:$0xff]
    %v4186 = vld [vmem:[#allocation4 + $0x170] sm:$0xff]
    %v4187 = vld [vmem:[#allocation4 + $0x178] sm:$0xff]
    %v4204 = vunpack.c.l.b16 %v4172
    %v4205 = vunpack.c.h.b16 %v4172
    %v4206 = vunpack.c.l.b16 %v4173
    %v4207 = vunpack.c.h.b16 %v4173
    %v4208 = vunpack.c.l.b16 %v4174
    %v4209 = vunpack.c.h.b16 %v4174
    %v4210 = vunpack.c.l.b16 %v4175
    %v4211 = vunpack.c.h.b16 %v4175
    %v4212 = vunpack.c.l.b16 %v4176
    %v4213 = vunpack.c.h.b16 %v4176
    %v4214 = vunpack.c.l.b16 %v4177
    %v4215 = vunpack.c.h.b16 %v4177
    %v4216 = vunpack.c.l.b16 %v4178
    %v4217 = vunpack.c.h.b16 %v4178
    %v4218 = vunpack.c.l.b16 %v4179
    %v4219 = vunpack.c.h.b16 %v4179
    %v4220 = vunpack.c.l.b16 %v4180
    %v4221 = vunpack.c.h.b16 %v4180
    %v4222 = vunpack.c.l.b16 %v4181
    %v4223 = vunpack.c.h.b16 %v4181
    %v4224 = vunpack.c.l.b16 %v4182
    %v4225 = vunpack.c.h.b16 %v4182
    %v4226 = vunpack.c.l.b16 %v4183
    %v4227 = vunpack.c.h.b16 %v4183
    %v4228 = vunpack.c.l.b16 %v4184
    %v4229 = vunpack.c.h.b16 %v4184
    %v4230 = vunpack.c.l.b16 %v4185
    %v4231 = vunpack.c.h.b16 %v4185
    %v4232 = vunpack.c.l.b16 %v4186
    %v4233 = vunpack.c.h.b16 %v4186
    %v4234 = vunpack.c.l.b16 %v4187
    %v4235 = vunpack.c.h.b16 %v4187
    %v4236 = vpack.c.b16 %v4206, %v4204
    %v4237 = vpack.c.b16 %v4207, %v4205
    %v4238 = vpack.c.b16 %v4210, %v4208
    %v4239 = vpack.c.b16 %v4211, %v4209
    %v4240 = vpack.c.b16 %v4214, %v4212
    %v4241 = vpack.c.b16 %v4215, %v4213
    %v4242 = vpack.c.b16 %v4218, %v4216
    %v4243 = vpack.c.b16 %v4219, %v4217
    %v4244 = vpack.c.b16 %v4222, %v4220
    %v4245 = vpack.c.b16 %v4223, %v4221
    %v4246 = vpack.c.b16 %v4226, %v4224
    %v4247 = vpack.c.b16 %v4227, %v4225
    %v4248 = vpack.c.b16 %v4230, %v4228
    %v4249 = vpack.c.b16 %v4231, %v4229
    %v4250 = vpack.c.b16 %v4234, %v4232
    %v4251 = vpack.c.b16 %v4235, %v4233
    %4268 = vmatprep.subr.bf16.mxu0 %v4237
    %4269 = vmatpush1.bf16.msra.mxu0 %v4236
    %4270 = vmatprep.subr.bf16.mxu0 %v4239
    %4271 = vmatpush1.bf16.msra.mxu0 %v4238
    %4272 = vmatprep.subr.bf16.mxu0 %v4241
    %4273 = vmatpush1.bf16.msra.mxu0 %v4240
    %4274 = vmatprep.subr.bf16.mxu0 %v4243
    %4275 = vmatpush1.bf16.msra.mxu0 %v4242
    %4276 = vmatprep.subr.bf16.mxu0 %v4245
    %4277 = vmatpush1.bf16.msra.mxu0 %v4244
    %4278 = vmatprep.subr.bf16.mxu0 %v4247
    %4279 = vmatpush1.bf16.msra.mxu0 %v4246
    %4280 = vmatprep.subr.bf16.mxu0 %v4249
    %4281 = vmatpush1.bf16.msra.mxu0 %v4248
    %4282 = vmatprep.subr.bf16.mxu0 %v4251
    %4283 = vmatpush1.bf16.msra.mxu0 %v4250
    %4284 = vmatprep.subr.bf16.mxu0 0
    %4285 = vmatpush1.bf16.msra.mxu0 0
    %4286 = vmatprep.subr.bf16.mxu0 0
    %4287 = vmatpush1.bf16.msra.mxu0 0
    %4288 = vmatprep.subr.bf16.mxu0 0
    %4289 = vmatpush1.bf16.msra.mxu0 0
    %4290 = vmatprep.subr.bf16.mxu0 0
    %4291 = vmatpush1.bf16.msra.mxu0 0
    %4292 = vmatprep.subr.bf16.mxu0 0
    %4293 = vmatpush1.bf16.msra.mxu0 0
    %4294 = vmatprep.subr.bf16.mxu0 0
    %4295 = vmatpush1.bf16.msra.mxu0 0
    %4296 = vmatprep.subr.bf16.mxu0 0
    %4297 = vmatpush1.bf16.msra.mxu0 0
    %4298 = vmatprep.subr.bf16.mxu0 0
    %4299 = vmatpush1.bf16.msra.mxu0 0
    %4300 = vmatprep.mubr.bf16.mxu0 0
    %4301 = vmatmul.mubr.bf16.gmra.mrb[0].mxu0 %v3889
    %v4302 = vpop.f32.mrb[0].mxu0
    %v4303 = vadd.f32 0.0, %v4302
    %v4304 = vpop.f32.mrb[0].mxu0
    %v4305 = vadd.f32 0.0, %v4304
    %v4306 = vpop.f32.mrb[0].mxu0
    %v4307 = vpop.f32.mrb[0].mxu0
    %4308 = vdwg.mxu0
    %v4309 = vadd.f32 %v4166, %v4303
    %v4310 = vadd.f32 %v4168, %v4305
    %v4311 = vld [vmem:[#allocation4 + $0x180] sm:$0xff]
    %v4312 = vld [vmem:[#allocation4 + $0x188] sm:$0xff]
    %v4313 = vld [vmem:[#allocation4 + $0x190] sm:$0xff]
    %v4314 = vld [vmem:[#allocation4 + $0x198] sm:$0xff]
    %v4315 = vld [vmem:[#allocation4 + $0x1a0] sm:$0xff]
    %v4316 = vld [vmem:[#allocation4 + $0x1a8] sm:$0xff]
    %v4317 = vld [vmem:[#allocation4 + $0x1b0] sm:$0xff]
    %v4318 = vld [vmem:[#allocation4 + $0x1b8] sm:$0xff]
    %v4319 = vld [vmem:[#allocation4 + $0x1c0] sm:$0xff]
    %v4320 = vld [vmem:[#allocation4 + $0x1c8] sm:$0xff]
    %v4321 = vld [vmem:[#allocation4 + $0x1d0] sm:$0xff]
    %v4322 = vld [vmem:[#allocation4 + $0x1d8] sm:$0xff]
    %v4323 = vld [vmem:[#allocation4 + $0x1e0] sm:$0xff]
    %v4324 = vld [vmem:[#allocation4 + $0x1e8] sm:$0xff]
    %v4325 = vld [vmem:[#allocation4 + $0x1f0] sm:$0xff]
    %v4326 = vld [vmem:[#allocation4 + $0x1f8] sm:$0xff]
    %v4328 = vrot.slane %v3889, 4
    %v4346 = vunpack.c.l.b16 %v4311
    %v4347 = vunpack.c.h.b16 %v4311
    %v4348 = vunpack.c.l.b16 %v4312
    %v4349 = vunpack.c.h.b16 %v4312
    %v4350 = vunpack.c.l.b16 %v4313
    %v4351 = vunpack.c.h.b16 %v4313
    %v4352 = vunpack.c.l.b16 %v4314
    %v4353 = vunpack.c.h.b16 %v4314
    %v4354 = vunpack.c.l.b16 %v4315
    %v4355 = vunpack.c.h.b16 %v4315
    %v4356 = vunpack.c.l.b16 %v4316
    %v4357 = vunpack.c.h.b16 %v4316
    %v4358 = vunpack.c.l.b16 %v4317
    %v4359 = vunpack.c.h.b16 %v4317
    %v4360 = vunpack.c.l.b16 %v4318
    %v4361 = vunpack.c.h.b16 %v4318
    %v4362 = vunpack.c.l.b16 %v4319
    %v4363 = vunpack.c.h.b16 %v4319
    %v4364 = vunpack.c.l.b16 %v4320
    %v4365 = vunpack.c.h.b16 %v4320
    %v4366 = vunpack.c.l.b16 %v4321
    %v4367 = vunpack.c.h.b16 %v4321
    %v4368 = vunpack.c.l.b16 %v4322
    %v4369 = vunpack.c.h.b16 %v4322
    %v4370 = vunpack.c.l.b16 %v4323
    %v4371 = vunpack.c.h.b16 %v4323
    %v4372 = vunpack.c.l.b16 %v4324
    %v4373 = vunpack.c.h.b16 %v4324
    %v4374 = vunpack.c.l.b16 %v4325
    %v4375 = vunpack.c.h.b16 %v4325
    %v4376 = vunpack.c.l.b16 %v4326
    %v4377 = vunpack.c.h.b16 %v4326
    %v4378 = vpack.c.b16 %v4348, %v4346
    %v4379 = vpack.c.b16 %v4349, %v4347
    %v4380 = vpack.c.b16 %v4352, %v4350
    %v4381 = vpack.c.b16 %v4353, %v4351
    %v4382 = vpack.c.b16 %v4356, %v4354
    %v4383 = vpack.c.b16 %v4357, %v4355
    %v4384 = vpack.c.b16 %v4360, %v4358
    %v4385 = vpack.c.b16 %v4361, %v4359
    %v4386 = vpack.c.b16 %v4364, %v4362
    %v4387 = vpack.c.b16 %v4365, %v4363
    %v4388 = vpack.c.b16 %v4368, %v4366
    %v4389 = vpack.c.b16 %v4369, %v4367
    %v4390 = vpack.c.b16 %v4372, %v4370
    %v4391 = vpack.c.b16 %v4373, %v4371
    %v4392 = vpack.c.b16 %v4376, %v4374
    %v4393 = vpack.c.b16 %v4377, %v4375
    %4410 = vmatprep.subr.bf16.mxu0 %v4379
    %4411 = vmatpush1.bf16.msra.mxu0 %v4378
    %4412 = vmatprep.subr.bf16.mxu0 %v4381
    %4413 = vmatpush1.bf16.msra.mxu0 %v4380
    %4414 = vmatprep.subr.bf16.mxu0 %v4383
    %4415 = vmatpush1.bf16.msra.mxu0 %v4382
    %4416 = vmatprep.subr.bf16.mxu0 %v4385
    %4417 = vmatpush1.bf16.msra.mxu0 %v4384
    %4418 = vmatprep.subr.bf16.mxu0 %v4387
    %4419 = vmatpush1.bf16.msra.mxu0 %v4386
    %4420 = vmatprep.subr.bf16.mxu0 %v4389
    %4421 = vmatpush1.bf16.msra.mxu0 %v4388
    %4422 = vmatprep.subr.bf16.mxu0 %v4391
    %4423 = vmatpush1.bf16.msra.mxu0 %v4390
    %4424 = vmatprep.subr.bf16.mxu0 %v4393
    %4425 = vmatpush1.bf16.msra.mxu0 %v4392
    %4426 = vmatprep.subr.bf16.mxu0 0
    %4427 = vmatpush1.bf16.msra.mxu0 0
    %4428 = vmatprep.subr.bf16.mxu0 0
    %4429 = vmatpush1.bf16.msra.mxu0 0
    %4430 = vmatprep.subr.bf16.mxu0 0
    %4431 = vmatpush1.bf16.msra.mxu0 0
    %4432 = vmatprep.subr.bf16.mxu0 0
    %4433 = vmatpush1.bf16.msra.mxu0 0
    %4434 = vmatprep.subr.bf16.mxu0 0
    %4435 = vmatpush1.bf16.msra.mxu0 0
    %4436 = vmatprep.subr.bf16.mxu0 0
    %4437 = vmatpush1.bf16.msra.mxu0 0
    %4438 = vmatprep.subr.bf16.mxu0 0
    %4439 = vmatpush1.bf16.msra.mxu0 0
    %4440 = vmatprep.subr.bf16.mxu0 0
    %4441 = vmatpush1.bf16.msra.mxu0 0
    %4442 = vmatprep.mubr.bf16.mxu0 0
    %4443 = vmatmul.mubr.bf16.gmra.mrb[0].mxu0 %v4328
    %v4444 = vpop.f32.mrb[0].mxu0
    %v4445 = vadd.f32 0.0, %v4444
    %v4446 = vpop.f32.mrb[0].mxu0
    %v4447 = vadd.f32 0.0, %v4446
    %v4448 = vpop.f32.mrb[0].mxu0
    %v4449 = vpop.f32.mrb[0].mxu0
    %4450 = vdwg.mxu0
    %v4451 = vadd.f32 %v4309, %v4445
    %v4452 = vadd.f32 %v4310, %v4447
    %v4453 = vld [vmem:[#allocation4 + $0x200] sm:$0xff]
    %v4454 = vld [vmem:[#allocation4 + $0x208] sm:$0xff]
    %v4455 = vld [vmem:[#allocation4 + $0x210] sm:$0xff]
    %v4456 = vld [vmem:[#allocation4 + $0x218] sm:$0xff]
    %v4457 = vld [vmem:[#allocation4 + $0x220] sm:$0xff]
    %v4458 = vld [vmem:[#allocation4 + $0x228] sm:$0xff]
    %v4459 = vld [vmem:[#allocation4 + $0x230] sm:$0xff]
    %v4460 = vld [vmem:[#allocation4 + $0x238] sm:$0xff]
    %v4461 = vld [vmem:[#allocation4 + $0x240] sm:$0xff]
    %v4462 = vld [vmem:[#allocation4 + $0x248] sm:$0xff]
    %v4463 = vld [vmem:[#allocation4 + $0x250] sm:$0xff]
    %v4464 = vld [vmem:[#allocation4 + $0x258] sm:$0xff]
    %v4465 = vld [vmem:[#allocation4 + $0x260] sm:$0xff]
    %v4466 = vld [vmem:[#allocation4 + $0x268] sm:$0xff]
    %v4467 = vld [vmem:[#allocation4 + $0x270] sm:$0xff]
    %v4468 = vld [vmem:[#allocation4 + $0x278] sm:$0xff]
    %v4485 = vunpack.c.l.b16 %v4453
    %v4486 = vunpack.c.h.b16 %v4453
    %v4487 = vunpack.c.l.b16 %v4454
    %v4488 = vunpack.c.h.b16 %v4454
    %v4489 = vunpack.c.l.b16 %v4455
    %v4490 = vunpack.c.h.b16 %v4455
    %v4491 = vunpack.c.l.b16 %v4456
    %v4492 = vunpack.c.h.b16 %v4456
    %v4493 = vunpack.c.l.b16 %v4457
    %v4494 = vunpack.c.h.b16 %v4457
    %v4495 = vunpack.c.l.b16 %v4458
    %v4496 = vunpack.c.h.b16 %v4458
    %v4497 = vunpack.c.l.b16 %v4459
    %v4498 = vunpack.c.h.b16 %v4459
    %v4499 = vunpack.c.l.b16 %v4460
    %v4500 = vunpack.c.h.b16 %v4460
    %v4501 = vunpack.c.l.b16 %v4461
    %v4502 = vunpack.c.h.b16 %v4461
    %v4503 = vunpack.c.l.b16 %v4462
    %v4504 = vunpack.c.h.b16 %v4462
    %v4505 = vunpack.c.l.b16 %v4463
    %v4506 = vunpack.c.h.b16 %v4463
    %v4507 = vunpack.c.l.b16 %v4464
    %v4508 = vunpack.c.h.b16 %v4464
    %v4509 = vunpack.c.l.b16 %v4465
    %v4510 = vunpack.c.h.b16 %v4465
    %v4511 = vunpack.c.l.b16 %v4466
    %v4512 = vunpack.c.h.b16 %v4466
    %v4513 = vunpack.c.l.b16 %v4467
    %v4514 = vunpack.c.h.b16 %v4467
    %v4515 = vunpack.c.l.b16 %v4468
    %v4516 = vunpack.c.h.b16 %v4468
    %v4517 = vpack.c.b16 %v4487, %v4485
    %v4518 = vpack.c.b16 %v4488, %v4486
    %v4519 = vpack.c.b16 %v4491, %v4489
    %v4520 = vpack.c.b16 %v4492, %v4490
    %v4521 = vpack.c.b16 %v4495, %v4493
    %v4522 = vpack.c.b16 %v4496, %v4494
    %v4523 = vpack.c.b16 %v4499, %v4497
    %v4524 = vpack.c.b16 %v4500, %v4498
    %v4525 = vpack.c.b16 %v4503, %v4501
    %v4526 = vpack.c.b16 %v4504, %v4502
    %v4527 = vpack.c.b16 %v4507, %v4505
    %v4528 = vpack.c.b16 %v4508, %v4506
    %v4529 = vpack.c.b16 %v4511, %v4509
    %v4530 = vpack.c.b16 %v4512, %v4510
    %v4531 = vpack.c.b16 %v4515, %v4513
    %v4532 = vpack.c.b16 %v4516, %v4514
    %4549 = vmatprep.subr.bf16.mxu0 %v4518
    %4550 = vmatpush1.bf16.msra.mxu0 %v4517
    %4551 = vmatprep.subr.bf16.mxu0 %v4520
    %4552 = vmatpush1.bf16.msra.mxu0 %v4519
    %4553 = vmatprep.subr.bf16.mxu0 %v4522
    %4554 = vmatpush1.bf16.msra.mxu0 %v4521
    %4555 = vmatprep.subr.bf16.mxu0 %v4524
    %4556 = vmatpush1.bf16.msra.mxu0 %v4523
    %4557 = vmatprep.subr.bf16.mxu0 %v4526
    %4558 = vmatpush1.bf16.msra.mxu0 %v4525
    %4559 = vmatprep.subr.bf16.mxu0 %v4528
    %4560 = vmatpush1.bf16.msra.mxu0 %v4527
    %4561 = vmatprep.subr.bf16.mxu0 %v4530
    %4562 = vmatpush1.bf16.msra.mxu0 %v4529
    %4563 = vmatprep.subr.bf16.mxu0 %v4532
    %4564 = vmatpush1.bf16.msra.mxu0 %v4531
    %4565 = vmatprep.subr.bf16.mxu0 0
    %4566 = vmatpush1.bf16.msra.mxu0 0
    %4567 = vmatprep.subr.bf16.mxu0 0
    %4568 = vmatpush1.bf16.msra.mxu0 0
    %4569 = vmatprep.subr.bf16.mxu0 0
    %4570 = vmatpush1.bf16.msra.mxu0 0
    %4571 = vmatprep.subr.bf16.mxu0 0
    %4572 = vmatpush1.bf16.msra.mxu0 0
    %4573 = vmatprep.subr.bf16.mxu0 0
    %4574 = vmatpush1.bf16.msra.mxu0 0
    %4575 = vmatprep.subr.bf16.mxu0 0
    %4576 = vmatpush1.bf16.msra.mxu0 0
    %4577 = vmatprep.subr.bf16.mxu0 0
    %4578 = vmatpush1.bf16.msra.mxu0 0
    %4579 = vmatprep.subr.bf16.mxu0 0
    %4580 = vmatpush1.bf16.msra.mxu0 0
    %4581 = vmatprep.mubr.bf16.mxu0 0
    %4582 = vmatmul.mubr.bf16.gmra.mrb[0].mxu0 %v3890
    %v4583 = vpop.f32.mrb[0].mxu0
    %v4584 = vadd.f32 0.0, %v4583
    %v4585 = vpop.f32.mrb[0].mxu0
    %v4586 = vadd.f32 0.0, %v4585
    %v4587 = vpop.f32.mrb[0].mxu0
    %v4588 = vpop.f32.mrb[0].mxu0
    %4589 = vdwg.mxu0
    %v4590 = vadd.f32 %v4451, %v4584
    %v4591 = vadd.f32 %v4452, %v4586
    %v4592 = vld [vmem:[#allocation4 + $0x280] sm:$0xff]
    %v4593 = vld [vmem:[#allocation4 + $0x288] sm:$0xff]
    %v4594 = vld [vmem:[#allocation4 + $0x290] sm:$0xff]
    %v4595 = vld [vmem:[#allocation4 + $0x298] sm:$0xff]
    %v4596 = vld [vmem:[#allocation4 + $0x2a0] sm:$0xff]
    %v4597 = vld [vmem:[#allocation4 + $0x2a8] sm:$0xff]
    %v4598 = vld [vmem:[#allocation4 + $0x2b0] sm:$0xff]
    %v4599 = vld [vmem:[#allocation4 + $0x2b8] sm:$0xff]
    %v4600 = vld [vmem:[#allocation4 + $0x2c0] sm:$0xff]
    %v4601 = vld [vmem:[#allocation4 + $0x2c8] sm:$0xff]
    %v4602 = vld [vmem:[#allocation4 + $0x2d0] sm:$0xff]
    %v4603 = vld [vmem:[#allocation4 + $0x2d8] sm:$0xff]
    %v4604 = vld [vmem:[#allocation4 + $0x2e0] sm:$0xff]
    %v4605 = vld [vmem:[#allocation4 + $0x2e8] sm:$0xff]
    %v4606 = vld [vmem:[#allocation4 + $0x2f0] sm:$0xff]
    %v4607 = vld [vmem:[#allocation4 + $0x2f8] sm:$0xff]
    %v4609 = vrot.slane %v3890, 4
    %v4627 = vunpack.c.l.b16 %v4592
    %v4628 = vunpack.c.h.b16 %v4592
    %v4629 = vunpack.c.l.b16 %v4593
    %v4630 = vunpack.c.h.b16 %v4593
    %v4631 = vunpack.c.l.b16 %v4594
    %v4632 = vunpack.c.h.b16 %v4594
    %v4633 = vunpack.c.l.b16 %v4595
    %v4634 = vunpack.c.h.b16 %v4595
    %v4635 = vunpack.c.l.b16 %v4596
    %v4636 = vunpack.c.h.b16 %v4596
    %v4637 = vunpack.c.l.b16 %v4597
    %v4638 = vunpack.c.h.b16 %v4597
    %v4639 = vunpack.c.l.b16 %v4598
    %v4640 = vunpack.c.h.b16 %v4598
    %v4641 = vunpack.c.l.b16 %v4599
    %v4642 = vunpack.c.h.b16 %v4599
    %v4643 = vunpack.c.l.b16 %v4600
    %v4644 = vunpack.c.h.b16 %v4600
    %v4645 = vunpack.c.l.b16 %v4601
    %v4646 = vunpack.c.h.b16 %v4601
    %v4647 = vunpack.c.l.b16 %v4602
    %v4648 = vunpack.c.h.b16 %v4602
    %v4649 = vunpack.c.l.b16 %v4603
    %v4650 = vunpack.c.h.b16 %v4603
    %v4651 = vunpack.c.l.b16 %v4604
    %v4652 = vunpack.c.h.b16 %v4604
    %v4653 = vunpack.c.l.b16 %v4605
    %v4654 = vunpack.c.h.b16 %v4605
    %v4655 = vunpack.c.l.b16 %v4606
    %v4656 = vunpack.c.h.b16 %v4606
    %v4657 = vunpack.c.l.b16 %v4607
    %v4658 = vunpack.c.h.b16 %v4607
    %v4659 = vpack.c.b16 %v4629, %v4627
    %v4660 = vpack.c.b16 %v4630, %v4628
    %v4661 = vpack.c.b16 %v4633, %v4631
    %v4662 = vpack.c.b16 %v4634, %v4632
    %v4663 = vpack.c.b16 %v4637, %v4635
    %v4664 = vpack.c.b16 %v4638, %v4636
    %v4665 = vpack.c.b16 %v4641, %v4639
    %v4666 = vpack.c.b16 %v4642, %v4640
    %v4667 = vpack.c.b16 %v4645, %v4643
    %v4668 = vpack.c.b16 %v4646, %v4644
    %v4669 = vpack.c.b16 %v4649, %v4647
    %v4670 = vpack.c.b16 %v4650, %v4648
    %v4671 = vpack.c.b16 %v4653, %v4651
    %v4672 = vpack.c.b16 %v4654, %v4652
    %v4673 = vpack.c.b16 %v4657, %v4655
    %v4674 = vpack.c.b16 %v4658, %v4656
    %4691 = vmatprep.subr.bf16.mxu0 %v4660
    %4692 = vmatpush1.bf16.msra.mxu0 %v4659
    %4693 = vmatprep.subr.bf16.mxu0 %v4662
    %4694 = vmatpush1.bf16.msra.mxu0 %v4661
    %4695 = vmatprep.subr.bf16.mxu0 %v4664
    %4696 = vmatpush1.bf16.msra.mxu0 %v4663
    %4697 = vmatprep.subr.bf16.mxu0 %v4666
    %4698 = vmatpush1.bf16.msra.mxu0 %v4665
    %4699 = vmatprep.subr.bf16.mxu0 %v4668
    %4700 = vmatpush1.bf16.msra.mxu0 %v4667
    %4701 = vmatprep.subr.bf16.mxu0 %v4670
    %4702 = vmatpush1.bf16.msra.mxu0 %v4669
    %4703 = vmatprep.subr.bf16.mxu0 %v4672
    %4704 = vmatpush1.bf16.msra.mxu0 %v4671
    %4705 = vmatprep.subr.bf16.mxu0 %v4674
    %4706 = vmatpush1.bf16.msra.mxu0 %v4673
    %4707 = vmatprep.subr.bf16.mxu0 0
    %4708 = vmatpush1.bf16.msra.mxu0 0
    %4709 = vmatprep.subr.bf16.mxu0 0
    %4710 = vmatpush1.bf16.msra.mxu0 0
    %4711 = vmatprep.subr.bf16.mxu0 0
    %4712 = vmatpush1.bf16.msra.mxu0 0
    %4713 = vmatprep.subr.bf16.mxu0 0
    %4714 = vmatpush1.bf16.msra.mxu0 0
    %4715 = vmatprep.subr.bf16.mxu0 0
    %4716 = vmatpush1.bf16.msra.mxu0 0
    %4717 = vmatprep.subr.bf16.mxu0 0
    %4718 = vmatpush1.bf16.msra.mxu0 0
    %4719 = vmatprep.subr.bf16.mxu0 0
    %4720 = vmatpush1.bf16.msra.mxu0 0
    %4721 = vmatprep.subr.bf16.mxu0 0
    %4722 = vmatpush1.bf16.msra.mxu0 0
    %4723 = vmatprep.mubr.bf16.mxu0 0
    %4724 = vmatmul.mubr.bf16.gmra.mrb[0].mxu0 %v4609
    %v4725 = vpop.f32.mrb[0].mxu0
    %v4726 = vadd.f32 0.0, %v4725
    %v4727 = vpop.f32.mrb[0].mxu0
    %v4728 = vadd.f32 0.0, %v4727
    %v4729 = vpop.f32.mrb[0].mxu0
    %v4730 = vpop.f32.mrb[0].mxu0
    %4731 = vdwg.mxu0
    %v4732 = vadd.f32 %v4590, %v4726
    %v4733 = vadd.f32 %v4591, %v4728
    %v4734 = vld [vmem:[#allocation4 + $0x300] sm:$0xff]
    %v4735 = vld [vmem:[#allocation4 + $0x308] sm:$0xff]
    %v4736 = vld [vmem:[#allocation4 + $0x310] sm:$0xff]
    %v4737 = vld [vmem:[#allocation4 + $0x318] sm:$0xff]
    %v4738 = vld [vmem:[#allocation4 + $0x320] sm:$0xff]
    %v4739 = vld [vmem:[#allocation4 + $0x328] sm:$0xff]
    %v4740 = vld [vmem:[#allocation4 + $0x330] sm:$0xff]
    %v4741 = vld [vmem:[#allocation4 + $0x338] sm:$0xff]
    %v4742 = vld [vmem:[#allocation4 + $0x340] sm:$0xff]
    %v4743 = vld [vmem:[#allocation4 + $0x348] sm:$0xff]
    %v4744 = vld [vmem:[#allocation4 + $0x350] sm:$0xff]
    %v4745 = vld [vmem:[#allocation4 + $0x358] sm:$0xff]
    %v4746 = vld [vmem:[#allocation4 + $0x360] sm:$0xff]
    %v4747 = vld [vmem:[#allocation4 + $0x368] sm:$0xff]
    %v4748 = vld [vmem:[#allocation4 + $0x370] sm:$0xff]
    %v4749 = vld [vmem:[#allocation4 + $0x378] sm:$0xff]
    %v4766 = vunpack.c.l.b16 %v4734
    %v4767 = vunpack.c.h.b16 %v4734
    %v4768 = vunpack.c.l.b16 %v4735
    %v4769 = vunpack.c.h.b16 %v4735
    %v4770 = vunpack.c.l.b16 %v4736
    %v4771 = vunpack.c.h.b16 %v4736
    %v4772 = vunpack.c.l.b16 %v4737
    %v4773 = vunpack.c.h.b16 %v4737
    %v4774 = vunpack.c.l.b16 %v4738
    %v4775 = vunpack.c.h.b16 %v4738
    %v4776 = vunpack.c.l.b16 %v4739
    %v4777 = vunpack.c.h.b16 %v4739
    %v4778 = vunpack.c.l.b16 %v4740
    %v4779 = vunpack.c.h.b16 %v4740
    %v4780 = vunpack.c.l.b16 %v4741
    %v4781 = vunpack.c.h.b16 %v4741
    %v4782 = vunpack.c.l.b16 %v4742
    %v4783 = vunpack.c.h.b16 %v4742
    %v4784 = vunpack.c.l.b16 %v4743
    %v4785 = vunpack.c.h.b16 %v4743
    %v4786 = vunpack.c.l.b16 %v4744
    %v4787 = vunpack.c.h.b16 %v4744
    %v4788 = vunpack.c.l.b16 %v4745
    %v4789 = vunpack.c.h.b16 %v4745
    %v4790 = vunpack.c.l.b16 %v4746
    %v4791 = vunpack.c.h.b16 %v4746
    %v4792 = vunpack.c.l.b16 %v4747
    %v4793 = vunpack.c.h.b16 %v4747
    %v4794 = vunpack.c.l.b16 %v4748
    %v4795 = vunpack.c.h.b16 %v4748
    %v4796 = vunpack.c.l.b16 %v4749
    %v4797 = vunpack.c.h.b16 %v4749
    %v4798 = vpack.c.b16 %v4768, %v4766
    %v4799 = vpack.c.b16 %v4769, %v4767
    %v4800 = vpack.c.b16 %v4772, %v4770
    %v4801 = vpack.c.b16 %v4773, %v4771
    %v4802 = vpack.c.b16 %v4776, %v4774
    %v4803 = vpack.c.b16 %v4777, %v4775
    %v4804 = vpack.c.b16 %v4780, %v4778
    %v4805 = vpack.c.b16 %v4781, %v4779
    %v4806 = vpack.c.b16 %v4784, %v4782
    %v4807 = vpack.c.b16 %v4785, %v4783
    %v4808 = vpack.c.b16 %v4788, %v4786
    %v4809 = vpack.c.b16 %v4789, %v4787
    %v4810 = vpack.c.b16 %v4792, %v4790
    %v4811 = vpack.c.b16 %v4793, %v4791
    %v4812 = vpack.c.b16 %v4796, %v4794
    %v4813 = vpack.c.b16 %v4797, %v4795
    %4830 = vmatprep.subr.bf16.mxu0 %v4799
    %4831 = vmatpush1.bf16.msra.mxu0 %v4798
    %4832 = vmatprep.subr.bf16.mxu0 %v4801
    %4833 = vmatpush1.bf16.msra.mxu0 %v4800
    %4834 = vmatprep.subr.bf16.mxu0 %v4803
    %4835 = vmatpush1.bf16.msra.mxu0 %v4802
    %4836 = vmatprep.subr.bf16.mxu0 %v4805
    %4837 = vmatpush1.bf16.msra.mxu0 %v4804
    %4838 = vmatprep.subr.bf16.mxu0 %v4807
    %4839 = vmatpush1.bf16.msra.mxu0 %v4806
    %4840 = vmatprep.subr.bf16.mxu0 %v4809
    %4841 = vmatpush1.bf16.msra.mxu0 %v4808
    %4842 = vmatprep.subr.bf16.mxu0 %v4811
    %4843 = vmatpush1.bf16.msra.mxu0 %v4810
    %4844 = vmatprep.subr.bf16.mxu0 %v4813
    %4845 = vmatpush1.bf16.msra.mxu0 %v4812
    %4846 = vmatprep.subr.bf16.mxu0 0
    %4847 = vmatpush1.bf16.msra.mxu0 0
    %4848 = vmatprep.subr.bf16.mxu0 0
    %4849 = vmatpush1.bf16.msra.mxu0 0
    %4850 = vmatprep.subr.bf16.mxu0 0
    %4851 = vmatpush1.bf16.msra.mxu0 0
    %4852 = vmatprep.subr.bf16.mxu0 0
    %4853 = vmatpush1.bf16.msra.mxu0 0
    %4854 = vmatprep.subr.bf16.mxu0 0
    %4855 = vmatpush1.bf16.msra.mxu0 0
    %4856 = vmatprep.subr.bf16.mxu0 0
    %4857 = vmatpush1.bf16.msra.mxu0 0
    %4858 = vmatprep.subr.bf16.mxu0 0
    %4859 = vmatpush1.bf16.msra.mxu0 0
    %4860 = vmatprep.subr.bf16.mxu0 0
    %4861 = vmatpush1.bf16.msra.mxu0 0
    %4862 = vmatprep.mubr.bf16.mxu0 0
    %4863 = vmatmul.mubr.bf16.gmra.mrb[0].mxu0 %v3891
    %v4864 = vpop.f32.mrb[0].mxu0
    %v4865 = vadd.f32 0.0, %v4864
    %v4866 = vpop.f32.mrb[0].mxu0
    %v4867 = vadd.f32 0.0, %v4866
    %v4868 = vpop.f32.mrb[0].mxu0
    %v4869 = vpop.f32.mrb[0].mxu0
    %4870 = vdwg.mxu0
    %v4871 = vadd.f32 %v4732, %v4865
    %v4872 = vadd.f32 %v4733, %v4867
    %v4873 = vld [vmem:[#allocation4 + $0x380] sm:$0xff]
    %v4874 = vld [vmem:[#allocation4 + $0x388] sm:$0xff]
    %v4875 = vld [vmem:[#allocation4 + $0x390] sm:$0xff]
    %v4876 = vld [vmem:[#allocation4 + $0x398] sm:$0xff]
    %v4877 = vld [vmem:[#allocation4 + $0x3a0] sm:$0xff]
    %v4878 = vld [vmem:[#allocation4 + $0x3a8] sm:$0xff]
    %v4879 = vld [vmem:[#allocation4 + $0x3b0] sm:$0xff]
    %v4880 = vld [vmem:[#allocation4 + $0x3b8] sm:$0xff]
    %v4881 = vld [vmem:[#allocation4 + $0x3c0] sm:$0xff]
    %v4882 = vld [vmem:[#allocation4 + $0x3c8] sm:$0xff]
    %v4883 = vld [vmem:[#allocation4 + $0x3d0] sm:$0xff]
    %v4884 = vld [vmem:[#allocation4 + $0x3d8] sm:$0xff]
    %v4885 = vld [vmem:[#allocation4 + $0x3e0] sm:$0xff]
    %v4886 = vld [vmem:[#allocation4 + $0x3e8] sm:$0xff]
    %v4887 = vld [vmem:[#allocation4 + $0x3f0] sm:$0xff]
    %v4888 = vld [vmem:[#allocation4 + $0x3f8] sm:$0xff]
    %v4890 = vrot.slane %v3891, 4
    %v4908 = vunpack.c.l.b16 %v4873
    %v4909 = vunpack.c.h.b16 %v4873
    %v4910 = vunpack.c.l.b16 %v4874
    %v4911 = vunpack.c.h.b16 %v4874
    %v4912 = vunpack.c.l.b16 %v4875
    %v4913 = vunpack.c.h.b16 %v4875
    %v4914 = vunpack.c.l.b16 %v4876
    %v4915 = vunpack.c.h.b16 %v4876
    %v4916 = vunpack.c.l.b16 %v4877
    %v4917 = vunpack.c.h.b16 %v4877
    %v4918 = vunpack.c.l.b16 %v4878
    %v4919 = vunpack.c.h.b16 %v4878
    %v4920 = vunpack.c.l.b16 %v4879
    %v4921 = vunpack.c.h.b16 %v4879
    %v4922 = vunpack.c.l.b16 %v4880
    %v4923 = vunpack.c.h.b16 %v4880
    %v4924 = vunpack.c.l.b16 %v4881
    %v4925 = vunpack.c.h.b16 %v4881
    %v4926 = vunpack.c.l.b16 %v4882
    %v4927 = vunpack.c.h.b16 %v4882
    %v4928 = vunpack.c.l.b16 %v4883
    %v4929 = vunpack.c.h.b16 %v4883
    %v4930 = vunpack.c.l.b16 %v4884
    %v4931 = vunpack.c.h.b16 %v4884
    %v4932 = vunpack.c.l.b16 %v4885
    %v4933 = vunpack.c.h.b16 %v4885
    %v4934 = vunpack.c.l.b16 %v4886
    %v4935 = vunpack.c.h.b16 %v4886
    %v4936 = vunpack.c.l.b16 %v4887
    %v4937 = vunpack.c.h.b16 %v4887
    %v4938 = vunpack.c.l.b16 %v4888
    %v4939 = vunpack.c.h.b16 %v4888
    %v4940 = vpack.c.b16 %v4910, %v4908
    %v4941 = vpack.c.b16 %v4911, %v4909
    %v4942 = vpack.c.b16 %v4914, %v4912
    %v4943 = vpack.c.b16 %v4915, %v4913
    %v4944 = vpack.c.b16 %v4918, %v4916
    %v4945 = vpack.c.b16 %v4919, %v4917
    %v4946 = vpack.c.b16 %v4922, %v4920
    %v4947 = vpack.c.b16 %v4923, %v4921
    %v4948 = vpack.c.b16 %v4926, %v4924
    %v4949 = vpack.c.b16 %v4927, %v4925
    %v4950 = vpack.c.b16 %v4930, %v4928
    %v4951 = vpack.c.b16 %v4931, %v4929
    %v4952 = vpack.c.b16 %v4934, %v4932
    %v4953 = vpack.c.b16 %v4935, %v4933
    %v4954 = vpack.c.b16 %v4938, %v4936
    %v4955 = vpack.c.b16 %v4939, %v4937
    %4972 = vmatprep.subr.bf16.mxu0 %v4941
    %4973 = vmatpush1.bf16.msra.mxu0 %v4940
    %4974 = vmatprep.subr.bf16.mxu0 %v4943
    %4975 = vmatpush1.bf16.msra.mxu0 %v4942
    %4976 = vmatprep.subr.bf16.mxu0 %v4945
    %4977 = vmatpush1.bf16.msra.mxu0 %v4944
    %4978 = vmatprep.subr.bf16.mxu0 %v4947
    %4979 = vmatpush1.bf16.msra.mxu0 %v4946
    %4980 = vmatprep.subr.bf16.mxu0 %v4949
    %4981 = vmatpush1.bf16.msra.mxu0 %v4948
    %4982 = vmatprep.subr.bf16.mxu0 %v4951
    %4983 = vmatpush1.bf16.msra.mxu0 %v4950
    %4984 = vmatprep.subr.bf16.mxu0 %v4953
    %4985 = vmatpush1.bf16.msra.mxu0 %v4952
    %4986 = vmatprep.subr.bf16.mxu0 %v4955
    %4987 = vmatpush1.bf16.msra.mxu0 %v4954
    %4988 = vmatprep.subr.bf16.mxu0 0
    %4989 = vmatpush1.bf16.msra.mxu0 0
    %4990 = vmatprep.subr.bf16.mxu0 0
    %4991 = vmatpush1.bf16.msra.mxu0 0
    %4992 = vmatprep.subr.bf16.mxu0 0
    %4993 = vmatpush1.bf16.msra.mxu0 0
    %4994 = vmatprep.subr.bf16.mxu0 0
    %4995 = vmatpush1.bf16.msra.mxu0 0
    %4996 = vmatprep.subr.bf16.mxu0 0
    %4997 = vmatpush1.bf16.msra.mxu0 0
    %4998 = vmatprep.subr.bf16.mxu0 0
    %4999 = vmatpush1.bf16.msra.mxu0 0
    %5000 = vmatprep.subr.bf16.mxu0 0
    %5001 = vmatpush1.bf16.msra.mxu0 0
    %5002 = vmatprep.subr.bf16.mxu0 0
    %5003 = vmatpush1.bf16.msra.mxu0 0
    %5004 = vmatprep.mubr.bf16.mxu0 0
    %5005 = vmatmul.mubr.bf16.gmra.mrb[0].mxu0 %v4890
    %v5006 = vpop.f32.mrb[0].mxu0
    %v5007 = vadd.f32 0.0, %v5006
    %v5008 = vpop.f32.mrb[0].mxu0
    %v5009 = vadd.f32 0.0, %v5008
    %v5010 = vpop.f32.mrb[0].mxu0
    %v5011 = vpop.f32.mrb[0].mxu0
    %5012 = vdwg.mxu0
    %v5013 = vadd.f32 %v4871, %v5007
    %v5014 = vadd.f32 %v4872, %v5009
    %v5015 = vld [vmem:[#allocation4 + $0x400] sm:$0xff]
    %v5016 = vld [vmem:[#allocation4 + $0x408] sm:$0xff]
    %v5017 = vld [vmem:[#allocation4 + $0x410] sm:$0xff]
    %v5018 = vld [vmem:[#allocation4 + $0x418] sm:$0xff]
    %v5019 = vld [vmem:[#allocation4 + $0x420] sm:$0xff]
    %v5020 = vld [vmem:[#allocation4 + $0x428] sm:$0xff]
    %v5021 = vld [vmem:[#allocation4 + $0x430] sm:$0xff]
    %v5022 = vld [vmem:[#allocation4 + $0x438] sm:$0xff]
    %v5023 = vld [vmem:[#allocation4 + $0x440] sm:$0xff]
    %v5024 = vld [vmem:[#allocation4 + $0x448] sm:$0xff]
    %v5025 = vld [vmem:[#allocation4 + $0x450] sm:$0xff]
    %v5026 = vld [vmem:[#allocation4 + $0x458] sm:$0xff]
    %v5027 = vld [vmem:[#allocation4 + $0x460] sm:$0xff]
    %v5028 = vld [vmem:[#allocation4 + $0x468] sm:$0xff]
    %v5029 = vld [vmem:[#allocation4 + $0x470] sm:$0xff]
    %v5030 = vld [vmem:[#allocation4 + $0x478] sm:$0xff]
    %v5047 = vunpack.c.l.b16 %v5015
    %v5048 = vunpack.c.h.b16 %v5015
    %v5049 = vunpack.c.l.b16 %v5016
    %v5050 = vunpack.c.h.b16 %v5016
    %v5051 = vunpack.c.l.b16 %v5017
    %v5052 = vunpack.c.h.b16 %v5017
    %v5053 = vunpack.c.l.b16 %v5018
    %v5054 = vunpack.c.h.b16 %v5018
    %v5055 = vunpack.c.l.b16 %v5019
    %v5056 = vunpack.c.h.b16 %v5019
    %v5057 = vunpack.c.l.b16 %v5020
    %v5058 = vunpack.c.h.b16 %v5020
    %v5059 = vunpack.c.l.b16 %v5021
    %v5060 = vunpack.c.h.b16 %v5021
    %v5061 = vunpack.c.l.b16 %v5022
    %v5062 = vunpack.c.h.b16 %v5022
    %v5063 = vunpack.c.l.b16 %v5023
    %v5064 = vunpack.c.h.b16 %v5023
    %v5065 = vunpack.c.l.b16 %v5024
    %v5066 = vunpack.c.h.b16 %v5024
    %v5067 = vunpack.c.l.b16 %v5025
    %v5068 = vunpack.c.h.b16 %v5025
    %v5069 = vunpack.c.l.b16 %v5026
    %v5070 = vunpack.c.h.b16 %v5026
    %v5071 = vunpack.c.l.b16 %v5027
    %v5072 = vunpack.c.h.b16 %v5027
    %v5073 = vunpack.c.l.b16 %v5028
    %v5074 = vunpack.c.h.b16 %v5028
    %v5075 = vunpack.c.l.b16 %v5029
    %v5076 = vunpack.c.h.b16 %v5029
    %v5077 = vunpack.c.l.b16 %v5030
    %v5078 = vunpack.c.h.b16 %v5030
    %v5079 = vpack.c.b16 %v5049, %v5047
    %v5080 = vpack.c.b16 %v5050, %v5048
    %v5081 = vpack.c.b16 %v5053, %v5051
    %v5082 = vpack.c.b16 %v5054, %v5052
    %v5083 = vpack.c.b16 %v5057, %v5055
    %v5084 = vpack.c.b16 %v5058, %v5056
    %v5085 = vpack.c.b16 %v5061, %v5059
    %v5086 = vpack.c.b16 %v5062, %v5060
    %v5087 = vpack.c.b16 %v5065, %v5063
    %v5088 = vpack.c.b16 %v5066, %v5064
    %v5089 = vpack.c.b16 %v5069, %v5067
    %v5090 = vpack.c.b16 %v5070, %v5068
    %v5091 = vpack.c.b16 %v5073, %v5071
    %v5092 = vpack.c.b16 %v5074, %v5072
    %v5093 = vpack.c.b16 %v5077, %v5075
    %v5094 = vpack.c.b16 %v5078, %v5076
    %5111 = vmatprep.subr.bf16.mxu0 %v5080
    %5112 = vmatpush1.bf16.msra.mxu0 %v5079
    %5113 = vmatprep.subr.bf16.mxu0 %v5082
    %5114 = vmatpush1.bf16.msra.mxu0 %v5081
    %5115 = vmatprep.subr.bf16.mxu0 %v5084
    %5116 = vmatpush1.bf16.msra.mxu0 %v5083
    %5117 = vmatprep.subr.bf16.mxu0 %v5086
    %5118 = vmatpush1.bf16.msra.mxu0 %v5085
    %5119 = vmatprep.subr.bf16.mxu0 %v5088
    %5120 = vmatpush1.bf16.msra.mxu0 %v5087
    %5121 = vmatprep.subr.bf16.mxu0 %v5090
    %5122 = vmatpush1.bf16.msra.mxu0 %v5089
    %5123 = vmatprep.subr.bf16.mxu0 %v5092
    %5124 = vmatpush1.bf16.msra.mxu0 %v5091
    %5125 = vmatprep.subr.bf16.mxu0 %v5094
    %5126 = vmatpush1.bf16.msra.mxu0 %v5093
    %5127 = vmatprep.subr.bf16.mxu0 0
    %5128 = vmatpush1.bf16.msra.mxu0 0
    %5129 = vmatprep.subr.bf16.mxu0 0
    %5130 = vmatpush1.bf16.msra.mxu0 0
    %5131 = vmatprep.subr.bf16.mxu0 0
    %5132 = vmatpush1.bf16.msra.mxu0 0
    %5133 = vmatprep.subr.bf16.mxu0 0
    %5134 = vmatpush1.bf16.msra.mxu0 0
    %5135 = vmatprep.subr.bf16.mxu0 0
    %5136 = vmatpush1.bf16.msra.mxu0 0
    %5137 = vmatprep.subr.bf16.mxu0 0
    %5138 = vmatpush1.bf16.msra.mxu0 0
    %5139 = vmatprep.subr.bf16.mxu0 0
    %5140 = vmatpush1.bf16.msra.mxu0 0
    %5141 = vmatprep.subr.bf16.mxu0 0
    %5142 = vmatpush1.bf16.msra.mxu0 0
    %5143 = vmatprep.mubr.bf16.mxu0 0
    %5144 = vmatmul.mubr.bf16.gmra.mrb[0].mxu0 %v3892
    %v5145 = vpop.f32.mrb[0].mxu0
    %v5146 = vadd.f32 0.0, %v5145
    %v5147 = vpop.f32.mrb[0].mxu0
    %v5148 = vadd.f32 0.0, %v5147
    %v5149 = vpop.f32.mrb[0].mxu0
    %v5150 = vpop.f32.mrb[0].mxu0
    %5151 = vdwg.mxu0
    %v5152 = vadd.f32 %v5013, %v5146
    %v5153 = vadd.f32 %v5014, %v5148
    %v5154 = vld [vmem:[#allocation4 + $0x480] sm:$0xff]
    %v5155 = vld [vmem:[#allocation4 + $0x488] sm:$0xff]
    %v5156 = vld [vmem:[#allocation4 + $0x490] sm:$0xff]
    %v5157 = vld [vmem:[#allocation4 + $0x498] sm:$0xff]
    %v5158 = vld [vmem:[#allocation4 + $0x4a0] sm:$0xff]
    %v5159 = vld [vmem:[#allocation4 + $0x4a8] sm:$0xff]
    %v5160 = vld [vmem:[#allocation4 + $0x4b0] sm:$0xff]
    %v5161 = vld [vmem:[#allocation4 + $0x4b8] sm:$0xff]
    %v5162 = vld [vmem:[#allocation4 + $0x4c0] sm:$0xff]
    %v5163 = vld [vmem:[#allocation4 + $0x4c8] sm:$0xff]
    %v5164 = vld [vmem:[#allocation4 + $0x4d0] sm:$0xff]
    %v5165 = vld [vmem:[#allocation4 + $0x4d8] sm:$0xff]
    %v5166 = vld [vmem:[#allocation4 + $0x4e0] sm:$0xff]
    %v5167 = vld [vmem:[#allocation4 + $0x4e8] sm:$0xff]
    %v5168 = vld [vmem:[#allocation4 + $0x4f0] sm:$0xff]
    %v5169 = vld [vmem:[#allocation4 + $0x4f8] sm:$0xff]
    %v5171 = vrot.slane %v3892, 4
    %v5189 = vunpack.c.l.b16 %v5154
    %v5190 = vunpack.c.h.b16 %v5154
    %v5191 = vunpack.c.l.b16 %v5155
    %v5192 = vunpack.c.h.b16 %v5155
    %v5193 = vunpack.c.l.b16 %v5156
    %v5194 = vunpack.c.h.b16 %v5156
    %v5195 = vunpack.c.l.b16 %v5157
    %v5196 = vunpack.c.h.b16 %v5157
    %v5197 = vunpack.c.l.b16 %v5158
    %v5198 = vunpack.c.h.b16 %v5158
    %v5199 = vunpack.c.l.b16 %v5159
    %v5200 = vunpack.c.h.b16 %v5159
    %v5201 = vunpack.c.l.b16 %v5160
    %v5202 = vunpack.c.h.b16 %v5160
    %v5203 = vunpack.c.l.b16 %v5161
    %v5204 = vunpack.c.h.b16 %v5161
    %v5205 = vunpack.c.l.b16 %v5162
    %v5206 = vunpack.c.h.b16 %v5162
    %v5207 = vunpack.c.l.b16 %v5163
    %v5208 = vunpack.c.h.b16 %v5163
    %v5209 = vunpack.c.l.b16 %v5164
    %v5210 = vunpack.c.h.b16 %v5164
    %v5211 = vunpack.c.l.b16 %v5165
    %v5212 = vunpack.c.h.b16 %v5165
    %v5213 = vunpack.c.l.b16 %v5166
    %v5214 = vunpack.c.h.b16 %v5166
    %v5215 = vunpack.c.l.b16 %v5167
    %v5216 = vunpack.c.h.b16 %v5167
    %v5217 = vunpack.c.l.b16 %v5168
    %v5218 = vunpack.c.h.b16 %v5168
    %v5219 = vunpack.c.l.b16 %v5169
    %v5220 = vunpack.c.h.b16 %v5169
    %v5221 = vpack.c.b16 %v5191, %v5189
    %v5222 = vpack.c.b16 %v5192, %v5190
    %v5223 = vpack.c.b16 %v5195, %v5193
    %v5224 = vpack.c.b16 %v5196, %v5194
    %v5225 = vpack.c.b16 %v5199, %v5197
    %v5226 = vpack.c.b16 %v5200, %v5198
    %v5227 = vpack.c.b16 %v5203, %v5201
    %v5228 = vpack.c.b16 %v5204, %v5202
    %v5229 = vpack.c.b16 %v5207, %v5205
    %v5230 = vpack.c.b16 %v5208, %v5206
    %v5231 = vpack.c.b16 %v5211, %v5209
    %v5232 = vpack.c.b16 %v5212, %v5210
    %v5233 = vpack.c.b16 %v5215, %v5213
    %v5234 = vpack.c.b16 %v5216, %v5214
    %v5235 = vpack.c.b16 %v5219, %v5217
    %v5236 = vpack.c.b16 %v5220, %v5218
    %5253 = vmatprep.subr.bf16.mxu0 %v5222
    %5254 = vmatpush1.bf16.msra.mxu0 %v5221
    %5255 = vmatprep.subr.bf16.mxu0 %v5224
    %5256 = vmatpush1.bf16.msra.mxu0 %v5223
    %5257 = vmatprep.subr.bf16.mxu0 %v5226
    %5258 = vmatpush1.bf16.msra.mxu0 %v5225
    %5259 = vmatprep.subr.bf16.mxu0 %v5228
    %5260 = vmatpush1.bf16.msra.mxu0 %v5227
    %5261 = vmatprep.subr.bf16.mxu0 %v5230
    %5262 = vmatpush1.bf16.msra.mxu0 %v5229
    %5263 = vmatprep.subr.bf16.mxu0 %v5232
    %5264 = vmatpush1.bf16.msra.mxu0 %v5231
    %5265 = vmatprep.subr.bf16.mxu0 %v5234
    %5266 = vmatpush1.bf16.msra.mxu0 %v5233
    %5267 = vmatprep.subr.bf16.mxu0 %v5236
    %5268 = vmatpush1.bf16.msra.mxu0 %v5235
    %5269 = vmatprep.subr.bf16.mxu0 0
    %5270 = vmatpush1.bf16.msra.mxu0 0
    %5271 = vmatprep.subr.bf16.mxu0 0
    %5272 = vmatpush1.bf16.msra.mxu0 0
    %5273 = vmatprep.subr.bf16.mxu0 0
    %5274 = vmatpush1.bf16.msra.mxu0 0
    %5275 = vmatprep.subr.bf16.mxu0 0
    %5276 = vmatpush1.bf16.msra.mxu0 0
    %5277 = vmatprep.subr.bf16.mxu0 0
    %5278 = vmatpush1.bf16.msra.mxu0 0
    %5279 = vmatprep.subr.bf16.mxu0 0
    %5280 = vmatpush1.bf16.msra.mxu0 0
    %5281 = vmatprep.subr.bf16.mxu0 0
    %5282 = vmatpush1.bf16.msra.mxu0 0
    %5283 = vmatprep.subr.bf16.mxu0 0
    %5284 = vmatpush1.bf16.msra.mxu0 0
    %5285 = vmatprep.mubr.bf16.mxu0 0
    %5286 = vmatmul.mubr.bf16.gmra.mrb[0].mxu0 %v5171
    %v5287 = vpop.f32.mrb[0].mxu0
    %v5288 = vadd.f32 0.0, %v5287
    %v5289 = vpop.f32.mrb[0].mxu0
    %v5290 = vadd.f32 0.0, %v5289
    %v5291 = vpop.f32.mrb[0].mxu0
    %v5292 = vpop.f32.mrb[0].mxu0
    %5293 = vdwg.mxu0
    %v5294 = vadd.f32 %v5152, %v5288
    %v5295 = vadd.f32 %v5153, %v5290
    %v5296 = vld [vmem:[#allocation4 + $0x500] sm:$0xff]
    %v5297 = vld [vmem:[#allocation4 + $0x508] sm:$0xff]
    %v5298 = vld [vmem:[#allocation4 + $0x510] sm:$0xff]
    %v5299 = vld [vmem:[#allocation4 + $0x518] sm:$0xff]
    %v5300 = vld [vmem:[#allocation4 + $0x520] sm:$0xff]
    %v5301 = vld [vmem:[#allocation4 + $0x528] sm:$0xff]
    %v5302 = vld [vmem:[#allocation4 + $0x530] sm:$0xff]
    %v5303 = vld [vmem:[#allocation4 + $0x538] sm:$0xff]
    %v5304 = vld [vmem:[#allocation4 + $0x540] sm:$0xff]
    %v5305 = vld [vmem:[#allocation4 + $0x548] sm:$0xff]
    %v5306 = vld [vmem:[#allocation4 + $0x550] sm:$0xff]
    %v5307 = vld [vmem:[#allocation4 + $0x558] sm:$0xff]
    %v5308 = vld [vmem:[#allocation4 + $0x560] sm:$0xff]
    %v5309 = vld [vmem:[#allocation4 + $0x568] sm:$0xff]
    %v5310 = vld [vmem:[#allocation4 + $0x570] sm:$0xff]
    %v5311 = vld [vmem:[#allocation4 + $0x578] sm:$0xff]
    %v5328 = vunpack.c.l.b16 %v5296
    %v5329 = vunpack.c.h.b16 %v5296
    %v5330 = vunpack.c.l.b16 %v5297
    %v5331 = vunpack.c.h.b16 %v5297
    %v5332 = vunpack.c.l.b16 %v5298
    %v5333 = vunpack.c.h.b16 %v5298
    %v5334 = vunpack.c.l.b16 %v5299
    %v5335 = vunpack.c.h.b16 %v5299
    %v5336 = vunpack.c.l.b16 %v5300
    %v5337 = vunpack.c.h.b16 %v5300
    %v5338 = vunpack.c.l.b16 %v5301
    %v5339 = vunpack.c.h.b16 %v5301
    %v5340 = vunpack.c.l.b16 %v5302
    %v5341 = vunpack.c.h.b16 %v5302
    %v5342 = vunpack.c.l.b16 %v5303
    %v5343 = vunpack.c.h.b16 %v5303
    %v5344 = vunpack.c.l.b16 %v5304
    %v5345 = vunpack.c.h.b16 %v5304
    %v5346 = vunpack.c.l.b16 %v5305
    %v5347 = vunpack.c.h.b16 %v5305
    %v5348 = vunpack.c.l.b16 %v5306
    %v5349 = vunpack.c.h.b16 %v5306
    %v5350 = vunpack.c.l.b16 %v5307
    %v5351 = vunpack.c.h.b16 %v5307
    %v5352 = vunpack.c.l.b16 %v5308
    %v5353 = vunpack.c.h.b16 %v5308
    %v5354 = vunpack.c.l.b16 %v5309
    %v5355 = vunpack.c.h.b16 %v5309
    %v5356 = vunpack.c.l.b16 %v5310
    %v5357 = vunpack.c.h.b16 %v5310
    %v5358 = vunpack.c.l.b16 %v5311
    %v5359 = vunpack.c.h.b16 %v5311
    %v5360 = vpack.c.b16 %v5330, %v5328
    %v5361 = vpack.c.b16 %v5331, %v5329
    %v5362 = vpack.c.b16 %v5334, %v5332
    %v5363 = vpack.c.b16 %v5335, %v5333
    %v5364 = vpack.c.b16 %v5338, %v5336
    %v5365 = vpack.c.b16 %v5339, %v5337
    %v5366 = vpack.c.b16 %v5342, %v5340
    %v5367 = vpack.c.b16 %v5343, %v5341
    %v5368 = vpack.c.b16 %v5346, %v5344
    %v5369 = vpack.c.b16 %v5347, %v5345
    %v5370 = vpack.c.b16 %v5350, %v5348
    %v5371 = vpack.c.b16 %v5351, %v5349
    %v5372 = vpack.c.b16 %v5354, %v5352
    %v5373 = vpack.c.b16 %v5355, %v5353
    %v5374 = vpack.c.b16 %v5358, %v5356
    %v5375 = vpack.c.b16 %v5359, %v5357
    %5392 = vmatprep.subr.bf16.mxu0 %v5361
    %5393 = vmatpush1.bf16.msra.mxu0 %v5360
    %5394 = vmatprep.subr.bf16.mxu0 %v5363
    %5395 = vmatpush1.bf16.msra.mxu0 %v5362
    %5396 = vmatprep.subr.bf16.mxu0 %v5365
    %5397 = vmatpush1.bf16.msra.mxu0 %v5364
    %5398 = vmatprep.subr.bf16.mxu0 %v5367
    %5399 = vmatpush1.bf16.msra.mxu0 %v5366
    %5400 = vmatprep.subr.bf16.mxu0 %v5369
    %5401 = vmatpush1.bf16.msra.mxu0 %v5368
    %5402 = vmatprep.subr.bf16.mxu0 %v5371
    %5403 = vmatpush1.bf16.msra.mxu0 %v5370
    %5404 = vmatprep.subr.bf16.mxu0 %v5373
    %5405 = vmatpush1.bf16.msra.mxu0 %v5372
    %5406 = vmatprep.subr.bf16.mxu0 %v5375
    %5407 = vmatpush1.bf16.msra.mxu0 %v5374
    %5408 = vmatprep.subr.bf16.mxu0 0
    %5409 = vmatpush1.bf16.msra.mxu0 0
    %5410 = vmatprep.subr.bf16.mxu0 0
    %5411 = vmatpush1.bf16.msra.mxu0 0
    %5412 = vmatprep.subr.bf16.mxu0 0
    %5413 = vmatpush1.bf16.msra.mxu0 0
    %5414 = vmatprep.subr.bf16.mxu0 0
    %5415 = vmatpush1.bf16.msra.mxu0 0
    %5416 = vmatprep.subr.bf16.mxu0 0
    %5417 = vmatpush1.bf16.msra.mxu0 0
    %5418 = vmatprep.subr.bf16.mxu0 0
    %5419 = vmatpush1.bf16.msra.mxu0 0
    %5420 = vmatprep.subr.bf16.mxu0 0
    %5421 = vmatpush1.bf16.msra.mxu0 0
    %5422 = vmatprep.subr.bf16.mxu0 0
    %5423 = vmatpush1.bf16.msra.mxu0 0
    %5424 = vmatprep.mubr.bf16.mxu0 0
    %5425 = vmatmul.mubr.bf16.gmra.mrb[0].mxu0 %v3893
    %v5426 = vpop.f32.mrb[0].mxu0
    %v5427 = vadd.f32 0.0, %v5426
    %v5428 = vpop.f32.mrb[0].mxu0
    %v5429 = vadd.f32 0.0, %v5428
    %v5430 = vpop.f32.mrb[0].mxu0
    %v5431 = vpop.f32.mrb[0].mxu0
    %5432 = vdwg.mxu0
    %v5433 = vadd.f32 %v5294, %v5427
    %v5434 = vadd.f32 %v5295, %v5429
    %v5435 = vld [vmem:[#allocation4 + $0x580] sm:$0xff]
    %v5436 = vld [vmem:[#allocation4 + $0x588] sm:$0xff]
    %v5437 = vld [vmem:[#allocation4 + $0x590] sm:$0xff]
    %v5438 = vld [vmem:[#allocation4 + $0x598] sm:$0xff]
    %v5439 = vld [vmem:[#allocation4 + $0x5a0] sm:$0xff]
    %v5440 = vld [vmem:[#allocation4 + $0x5a8] sm:$0xff]
    %v5441 = vld [vmem:[#allocation4 + $0x5b0] sm:$0xff]
    %v5442 = vld [vmem:[#allocation4 + $0x5b8] sm:$0xff]
    %v5443 = vld [vmem:[#allocation4 + $0x5c0] sm:$0xff]
    %v5444 = vld [vmem:[#allocation4 + $0x5c8] sm:$0xff]
    %v5445 = vld [vmem:[#allocation4 + $0x5d0] sm:$0xff]
    %v5446 = vld [vmem:[#allocation4 + $0x5d8] sm:$0xff]
    %v5447 = vld [vmem:[#allocation4 + $0x5e0] sm:$0xff]
    %v5448 = vld [vmem:[#allocation4 + $0x5e8] sm:$0xff]
    %v5449 = vld [vmem:[#allocation4 + $0x5f0] sm:$0xff]
    %v5450 = vld [vmem:[#allocation4 + $0x5f8] sm:$0xff]
    %v5452 = vrot.slane %v3893, 4
    %v5470 = vunpack.c.l.b16 %v5435
    %v5471 = vunpack.c.h.b16 %v5435
    %v5472 = vunpack.c.l.b16 %v5436
    %v5473 = vunpack.c.h.b16 %v5436
    %v5474 = vunpack.c.l.b16 %v5437
    %v5475 = vunpack.c.h.b16 %v5437
    %v5476 = vunpack.c.l.b16 %v5438
    %v5477 = vunpack.c.h.b16 %v5438
    %v5478 = vunpack.c.l.b16 %v5439
    %v5479 = vunpack.c.h.b16 %v5439
    %v5480 = vunpack.c.l.b16 %v5440
    %v5481 = vunpack.c.h.b16 %v5440
    %v5482 = vunpack.c.l.b16 %v5441
    %v5483 = vunpack.c.h.b16 %v5441
    %v5484 = vunpack.c.l.b16 %v5442
    %v5485 = vunpack.c.h.b16 %v5442
    %v5486 = vunpack.c.l.b16 %v5443
    %v5487 = vunpack.c.h.b16 %v5443
    %v5488 = vunpack.c.l.b16 %v5444
    %v5489 = vunpack.c.h.b16 %v5444
    %v5490 = vunpack.c.l.b16 %v5445
    %v5491 = vunpack.c.h.b16 %v5445
    %v5492 = vunpack.c.l.b16 %v5446
    %v5493 = vunpack.c.h.b16 %v5446
    %v5494 = vunpack.c.l.b16 %v5447
    %v5495 = vunpack.c.h.b16 %v5447
    %v5496 = vunpack.c.l.b16 %v5448
    %v5497 = vunpack.c.h.b16 %v5448
    %v5498 = vunpack.c.l.b16 %v5449
    %v5499 = vunpack.c.h.b16 %v5449
    %v5500 = vunpack.c.l.b16 %v5450
    %v5501 = vunpack.c.h.b16 %v5450
    %v5502 = vpack.c.b16 %v5472, %v5470
    %v5503 = vpack.c.b16 %v5473, %v5471
    %v5504 = vpack.c.b16 %v5476, %v5474
    %v5505 = vpack.c.b16 %v5477, %v5475
    %v5506 = vpack.c.b16 %v5480, %v5478
    %v5507 = vpack.c.b16 %v5481, %v5479
    %v5508 = vpack.c.b16 %v5484, %v5482
    %v5509 = vpack.c.b16 %v5485, %v5483
    %v5510 = vpack.c.b16 %v5488, %v5486
    %v5511 = vpack.c.b16 %v5489, %v5487
    %v5512 = vpack.c.b16 %v5492, %v5490
    %v5513 = vpack.c.b16 %v5493, %v5491
    %v5514 = vpack.c.b16 %v5496, %v5494
    %v5515 = vpack.c.b16 %v5497, %v5495
    %v5516 = vpack.c.b16 %v5500, %v5498
    %v5517 = vpack.c.b16 %v5501, %v5499
    %5534 = vmatprep.subr.bf16.mxu0 %v5503
    %5535 = vmatpush1.bf16.msra.mxu0 %v5502
    %5536 = vmatprep.subr.bf16.mxu0 %v5505
    %5537 = vmatpush1.bf16.msra.mxu0 %v5504
    %5538 = vmatprep.subr.bf16.mxu0 %v5507
    %5539 = vmatpush1.bf16.msra.mxu0 %v5506
    %5540 = vmatprep.subr.bf16.mxu0 %v5509
    %5541 = vmatpush1.bf16.msra.mxu0 %v5508
    %5542 = vmatprep.subr.bf16.mxu0 %v5511
    %5543 = vmatpush1.bf16.msra.mxu0 %v5510
    %5544 = vmatprep.subr.bf16.mxu0 %v5513
    %5545 = vmatpush1.bf16.msra.mxu0 %v5512
    %5546 = vmatprep.subr.bf16.mxu0 %v5515
    %5547 = vmatpush1.bf16.msra.mxu0 %v5514
    %5548 = vmatprep.subr.bf16.mxu0 %v5517
    %5549 = vmatpush1.bf16.msra.mxu0 %v5516
    %5550 = vmatprep.subr.bf16.mxu0 0
    %5551 = vmatpush1.bf16.msra.mxu0 0
    %5552 = vmatprep.subr.bf16.mxu0 0
    %5553 = vmatpush1.bf16.msra.mxu0 0
    %5554 = vmatprep.subr.bf16.mxu0 0
    %5555 = vmatpush1.bf16.msra.mxu0 0
    %5556 = vmatprep.subr.bf16.mxu0 0
    %5557 = vmatpush1.bf16.msra.mxu0 0
    %5558 = vmatprep.subr.bf16.mxu0 0
    %5559 = vmatpush1.bf16.msra.mxu0 0
    %5560 = vmatprep.subr.bf16.mxu0 0
    %5561 = vmatpush1.bf16.msra.mxu0 0
    %5562 = vmatprep.subr.bf16.mxu0 0
    %5563 = vmatpush1.bf16.msra.mxu0 0
    %5564 = vmatprep.subr.bf16.mxu0 0
    %5565 = vmatpush1.bf16.msra.mxu0 0
    %5566 = vmatprep.mubr.bf16.mxu0 0
    %5567 = vmatmul.mubr.bf16.gmra.mrb[0].mxu0 %v5452
    %v5568 = vpop.f32.mrb[0].mxu0
    %v5569 = vadd.f32 0.0, %v5568
    %v5570 = vpop.f32.mrb[0].mxu0
    %v5571 = vadd.f32 0.0, %v5570
    %v5572 = vpop.f32.mrb[0].mxu0
    %v5573 = vpop.f32.mrb[0].mxu0
    %5574 = vdwg.mxu0
    %v5575 = vadd.f32 %v5433, %v5569
    %v5576 = vadd.f32 %v5434, %v5571
    %v5577 = vld [vmem:[#allocation4 + $0x600] sm:$0xff]
    %v5578 = vld [vmem:[#allocation4 + $0x608] sm:$0xff]
    %v5579 = vld [vmem:[#allocation4 + $0x610] sm:$0xff]
    %v5580 = vld [vmem:[#allocation4 + $0x618] sm:$0xff]
    %v5581 = vld [vmem:[#allocation4 + $0x620] sm:$0xff]
    %v5582 = vld [vmem:[#allocation4 + $0x628] sm:$0xff]
    %v5583 = vld [vmem:[#allocation4 + $0x630] sm:$0xff]
    %v5584 = vld [vmem:[#allocation4 + $0x638] sm:$0xff]
    %v5585 = vld [vmem:[#allocation4 + $0x640] sm:$0xff]
    %v5586 = vld [vmem:[#allocation4 + $0x648] sm:$0xff]
    %v5587 = vld [vmem:[#allocation4 + $0x650] sm:$0xff]
    %v5588 = vld [vmem:[#allocation4 + $0x658] sm:$0xff]
    %v5589 = vld [vmem:[#allocation4 + $0x660] sm:$0xff]
    %v5590 = vld [vmem:[#allocation4 + $0x668] sm:$0xff]
    %v5591 = vld [vmem:[#allocation4 + $0x670] sm:$0xff]
    %v5592 = vld [vmem:[#allocation4 + $0x678] sm:$0xff]
    %v5609 = vunpack.c.l.b16 %v5577
    %v5610 = vunpack.c.h.b16 %v5577
    %v5611 = vunpack.c.l.b16 %v5578
    %v5612 = vunpack.c.h.b16 %v5578
    %v5613 = vunpack.c.l.b16 %v5579
    %v5614 = vunpack.c.h.b16 %v5579
    %v5615 = vunpack.c.l.b16 %v5580
    %v5616 = vunpack.c.h.b16 %v5580
    %v5617 = vunpack.c.l.b16 %v5581
    %v5618 = vunpack.c.h.b16 %v5581
    %v5619 = vunpack.c.l.b16 %v5582
    %v5620 = vunpack.c.h.b16 %v5582
    %v5621 = vunpack.c.l.b16 %v5583
    %v5622 = vunpack.c.h.b16 %v5583
    %v5623 = vunpack.c.l.b16 %v5584
    %v5624 = vunpack.c.h.b16 %v5584
    %v5625 = vunpack.c.l.b16 %v5585
    %v5626 = vunpack.c.h.b16 %v5585
    %v5627 = vunpack.c.l.b16 %v5586
    %v5628 = vunpack.c.h.b16 %v5586
    %v5629 = vunpack.c.l.b16 %v5587
    %v5630 = vunpack.c.h.b16 %v5587
    %v5631 = vunpack.c.l.b16 %v5588
    %v5632 = vunpack.c.h.b16 %v5588
    %v5633 = vunpack.c.l.b16 %v5589
    %v5634 = vunpack.c.h.b16 %v5589
    %v5635 = vunpack.c.l.b16 %v5590
    %v5636 = vunpack.c.h.b16 %v5590
    %v5637 = vunpack.c.l.b16 %v5591
    %v5638 = vunpack.c.h.b16 %v5591
    %v5639 = vunpack.c.l.b16 %v5592
    %v5640 = vunpack.c.h.b16 %v5592
    %v5641 = vpack.c.b16 %v5611, %v5609
    %v5642 = vpack.c.b16 %v5612, %v5610
    %v5643 = vpack.c.b16 %v5615, %v5613
    %v5644 = vpack.c.b16 %v5616, %v5614
    %v5645 = vpack.c.b16 %v5619, %v5617
    %v5646 = vpack.c.b16 %v5620, %v5618
    %v5647 = vpack.c.b16 %v5623, %v5621
    %v5648 = vpack.c.b16 %v5624, %v5622
    %v5649 = vpack.c.b16 %v5627, %v5625
    %v5650 = vpack.c.b16 %v5628, %v5626
    %v5651 = vpack.c.b16 %v5631, %v5629
    %v5652 = vpack.c.b16 %v5632, %v5630
    %v5653 = vpack.c.b16 %v5635, %v5633
    %v5654 = vpack.c.b16 %v5636, %v5634
    %v5655 = vpack.c.b16 %v5639, %v5637
    %v5656 = vpack.c.b16 %v5640, %v5638
    %5673 = vmatprep.subr.bf16.mxu0 %v5642
    %5674 = vmatpush1.bf16.msra.mxu0 %v5641
    %5675 = vmatprep.subr.bf16.mxu0 %v5644
    %5676 = vmatpush1.bf16.msra.mxu0 %v5643
    %5677 = vmatprep.subr.bf16.mxu0 %v5646
    %5678 = vmatpush1.bf16.msra.mxu0 %v5645
    %5679 = vmatprep.subr.bf16.mxu0 %v5648
    %5680 = vmatpush1.bf16.msra.mxu0 %v5647
    %5681 = vmatprep.subr.bf16.mxu0 %v5650
    %5682 = vmatpush1.bf16.msra.mxu0 %v5649
    %5683 = vmatprep.subr.bf16.mxu0 %v5652
    %5684 = vmatpush1.bf16.msra.mxu0 %v5651
    %5685 = vmatprep.subr.bf16.mxu0 %v5654
    %5686 = vmatpush1.bf16.msra.mxu0 %v5653
    %5687 = vmatprep.subr.bf16.mxu0 %v5656
    %5688 = vmatpush1.bf16.msra.mxu0 %v5655
    %5689 = vmatprep.subr.bf16.mxu0 0
    %5690 = vmatpush1.bf16.msra.mxu0 0
    %5691 = vmatprep.subr.bf16.mxu0 0
    %5692 = vmatpush1.bf16.msra.mxu0 0
    %5693 = vmatprep.subr.bf16.mxu0 0
    %5694 = vmatpush1.bf16.msra.mxu0 0
    %5695 = vmatprep.subr.bf16.mxu0 0
    %5696 = vmatpush1.bf16.msra.mxu0 0
    %5697 = vmatprep.subr.bf16.mxu0 0
    %5698 = vmatpush1.bf16.msra.mxu0 0
    %5699 = vmatprep.subr.bf16.mxu0 0
    %5700 = vmatpush1.bf16.msra.mxu0 0
    %5701 = vmatprep.subr.bf16.mxu0 0
    %5702 = vmatpush1.bf16.msra.mxu0 0
    %5703 = vmatprep.subr.bf16.mxu0 0
    %5704 = vmatpush1.bf16.msra.mxu0 0
    %5705 = vmatprep.mubr.bf16.mxu0 0
    %5706 = vmatmul.mubr.bf16.gmra.mrb[0].mxu0 %v3894
    %v5707 = vpop.f32.mrb[0].mxu0
    %v5708 = vadd.f32 0.0, %v5707
    %v5709 = vpop.f32.mrb[0].mxu0
    %v5710 = vadd.f32 0.0, %v5709
    %v5711 = vpop.f32.mrb[0].mxu0
    %v5712 = vpop.f32.mrb[0].mxu0
    %5713 = vdwg.mxu0
    %v5714 = vadd.f32 %v5575, %v5708
    %v5715 = vadd.f32 %v5576, %v5710
    %v5718 = vrot.slane %v5714, 2
    %v5719 = vrot.slane %v5715, 2
    %v5722 = vadd.f32 %v5714, %v5718
    %v5723 = vadd.f32 %v5715, %v5719
    %v5724 = vrot.slane %v5714, 4
    %v5725 = vrot.slane %v5715, 4
    %v5728 = vadd.f32 %v5722, %v5724
    %v5729 = vadd.f32 %v5723, %v5725
    %v5730 = vrot.slane %v5714, 6
    %v5731 = vrot.slane %v5715, 6
    %v5734 = vadd.f32 %v5728, %v5730
    %v5735 = vadd.f32 %v5729, %v5731
    %v5736 = vld [vmem:[%s7] sm:$0x3]
    %v5738 = vlaneseq
    %v5739 = vshrl.u32 %v5738, 7
    %v5740 = vsub.s32 0, %v5739
    %v5741 = vrot.slane %v5736, %v5740
    %v5742 = vlaneseq
    %v5743 = vshrl.u32 %v5742, 7
    %v5744 = vsub.s32 1, %v5743
    %v5745 = vrot.slane %v5736, %v5744
    %v5748 = vadd.f32 %v5734, %v5741
    %v5749 = vadd.f32 %v5735, %v5745
    %v5750 = vmax.f32 %v5748, 0.0
    %v5751 = vmax.f32 %v5749, 0.0
    %v5752 = vpack.c.bf16 %v5750, %v5750
    %v5753 = vpack.c.bf16 %v5751, %v5751
    %v5754 = vld [vmem:[%s8] sm:$0xf]
    %v5755 = vld [vmem:[%s8 + $0x4] sm:$0xf]
    %v5756 = vld [vmem:[%s8 + $0x8] sm:$0xf]
    %v5757 = vld [vmem:[%s8 + $0xc] sm:$0xf]
    %v5758 = vld [vmem:[%s8 + $0x10] sm:$0xf]
    %v5759 = vld [vmem:[%s8 + $0x14] sm:$0xf]
    %v5760 = vld [vmem:[%s8 + $0x18] sm:$0xf]
    %v5761 = vld [vmem:[%s8 + $0x1c] sm:$0xf]
    %v5762 = vld [vmem:[%s8 + $0x20] sm:$0xf]
    %v5763 = vld [vmem:[%s8 + $0x24] sm:$0xf]
    %v5764 = vld [vmem:[%s8 + $0x28] sm:$0xf]
    %v5765 = vld [vmem:[%s8 + $0x2c] sm:$0xf]
    %v5766 = vld [vmem:[%s8 + $0x30] sm:$0xf]
    %v5767 = vld [vmem:[%s8 + $0x34] sm:$0xf]
    %v5768 = vld [vmem:[%s8 + $0x38] sm:$0xf]
    %v5769 = vld [vmem:[%s8 + $0x3c] sm:$0xf]
    %v5770 = vld [vmem:[%s8 + $0x40] sm:$0xf]
    %v5771 = vld [vmem:[%s8 + $0x44] sm:$0xf]
    %v5772 = vld [vmem:[%s8 + $0x48] sm:$0xf]
    %v5773 = vld [vmem:[%s8 + $0x4c] sm:$0xf]
    %v5774 = vld [vmem:[%s8 + $0x50] sm:$0xf]
    %v5775 = vld [vmem:[%s8 + $0x54] sm:$0xf]
    %v5776 = vld [vmem:[%s8 + $0x58] sm:$0xf]
    %v5777 = vld [vmem:[%s8 + $0x5c] sm:$0xf]
    %v5778 = vld [vmem:[%s8 + $0x60] sm:$0xf]
    %v5779 = vld [vmem:[%s8 + $0x64] sm:$0xf]
    %v5780 = vld [vmem:[%s8 + $0x68] sm:$0xf]
    %v5781 = vld [vmem:[%s8 + $0x6c] sm:$0xf]
    %v5782 = vld [vmem:[%s8 + $0x70] sm:$0xf]
    %v5783 = vld [vmem:[%s8 + $0x74] sm:$0xf]
    %v5784 = vld [vmem:[%s8 + $0x78] sm:$0xf]
    %v5785 = vld [vmem:[%s8 + $0x7c] sm:$0xf]
    %v5786 = vld [vmem:[%s9] sm:$0x1]
    %v5788 = vlaneseq
    %v5789 = vshrl.u32 %v5788, 7
    %v5790 = vsub.s32 0, %v5789
    %v5791 = vrot.slane %v5786, %v5790
    %v5825 = vunpack.c.l.b16 %v5754
    %v5826 = vunpack.c.l.b16 %v5755
    %v5827 = vunpack.c.l.b16 %v5756
    %v5828 = vunpack.c.l.b16 %v5757
    %v5829 = vunpack.c.l.b16 %v5758
    %v5830 = vunpack.c.l.b16 %v5759
    %v5831 = vunpack.c.l.b16 %v5760
    %v5832 = vunpack.c.l.b16 %v5761
    %v5833 = vunpack.c.l.b16 %v5762
    %v5834 = vunpack.c.l.b16 %v5763
    %v5835 = vunpack.c.l.b16 %v5764
    %v5836 = vunpack.c.l.b16 %v5765
    %v5837 = vunpack.c.l.b16 %v5766
    %v5838 = vunpack.c.l.b16 %v5767
    %v5839 = vunpack.c.l.b16 %v5768
    %v5840 = vunpack.c.l.b16 %v5769
    %v5841 = vunpack.c.l.b16 %v5770
    %v5842 = vunpack.c.l.b16 %v5771
    %v5843 = vunpack.c.l.b16 %v5772
    %v5844 = vunpack.c.l.b16 %v5773
    %v5845 = vunpack.c.l.b16 %v5774
    %v5846 = vunpack.c.l.b16 %v5775
    %v5847 = vunpack.c.l.b16 %v5776
    %v5848 = vunpack.c.l.b16 %v5777
    %v5849 = vunpack.c.l.b16 %v5778
    %v5850 = vunpack.c.l.b16 %v5779
    %v5851 = vunpack.c.l.b16 %v5780
    %v5852 = vunpack.c.l.b16 %v5781
    %v5853 = vunpack.c.l.b16 %v5782
    %v5854 = vunpack.c.l.b16 %v5783
    %v5855 = vunpack.c.l.b16 %v5784
    %v5856 = vunpack.c.l.b16 %v5785
    %v5857 = vpack.c.b16 %v5826, %v5825
    %v5858 = vpack.c.b16 %v5828, %v5827
    %v5859 = vpack.c.b16 %v5830, %v5829
    %v5860 = vpack.c.b16 %v5832, %v5831
    %v5861 = vpack.c.b16 %v5834, %v5833
    %v5862 = vpack.c.b16 %v5836, %v5835
    %v5863 = vpack.c.b16 %v5838, %v5837
    %v5864 = vpack.c.b16 %v5840, %v5839
    %v5865 = vpack.c.b16 %v5842, %v5841
    %v5866 = vpack.c.b16 %v5844, %v5843
    %v5867 = vpack.c.b16 %v5846, %v5845
    %v5868 = vpack.c.b16 %v5848, %v5847
    %v5869 = vpack.c.b16 %v5850, %v5849
    %v5870 = vpack.c.b16 %v5852, %v5851
    %v5871 = vpack.c.b16 %v5854, %v5853
    %v5872 = vpack.c.b16 %v5856, %v5855
    %5889 = vmatprep.subr.bf16.mxu0 0
    %5890 = vmatpush1.bf16.msra.mxu0 %v5857
    %5891 = vmatprep.subr.bf16.mxu0 0
    %5892 = vmatpush1.bf16.msra.mxu0 %v5858
    %5893 = vmatprep.subr.bf16.mxu0 0
    %5894 = vmatpush1.bf16.msra.mxu0 %v5859
    %5895 = vmatprep.subr.bf16.mxu0 0
    %5896 = vmatpush1.bf16.msra.mxu0 %v5860
    %5897 = vmatprep.subr.bf16.mxu0 0
    %5898 = vmatpush1.bf16.msra.mxu0 %v5861
    %5899 = vmatprep.subr.bf16.mxu0 0
    %5900 = vmatpush1.bf16.msra.mxu0 %v5862
    %5901 = vmatprep.subr.bf16.mxu0 0
    %5902 = vmatpush1.bf16.msra.mxu0 %v5863
    %5903 = vmatprep.subr.bf16.mxu0 0
    %5904 = vmatpush1.bf16.msra.mxu0 %v5864
    %5905 = vmatprep.subr.bf16.mxu0 0
    %5906 = vmatpush1.bf16.msra.mxu0 %v5865
    %5907 = vmatprep.subr.bf16.mxu0 0
    %5908 = vmatpush1.bf16.msra.mxu0 %v5866
    %5909 = vmatprep.subr.bf16.mxu0 0
    %5910 = vmatpush1.bf16.msra.mxu0 %v5867
    %5911 = vmatprep.subr.bf16.mxu0 0
    %5912 = vmatpush1.bf16.msra.mxu0 %v5868
    %5913 = vmatprep.subr.bf16.mxu0 0
    %5914 = vmatpush1.bf16.msra.mxu0 %v5869
    %5915 = vmatprep.subr.bf16.mxu0 0
    %5916 = vmatpush1.bf16.msra.mxu0 %v5870
    %5917 = vmatprep.subr.bf16.mxu0 0
    %5918 = vmatpush1.bf16.msra.mxu0 %v5871
    %5919 = vmatprep.subr.bf16.mxu0 0
    %5920 = vmatpush1.bf16.msra.mxu0 %v5872
    %5921 = vmatprep.mubr.bf16.mxu0 %v5753
    %5922 = vmatmul.mubr.bf16.gmra.mrb[0].mxu0 %v5752
    %v5923 = vpop.f32.mrb[0].mxu0
    %v5924 = vadd.f32 %v5791, %v5923
    %v5925 = vpop.f32.mrb[0].mxu0
    %v5926 = vpop.f32.mrb[0].mxu0
    %v5927 = vpop.f32.mrb[0].mxu0
    %5928 = vdwg.mxu0
    %5929 = vst [vmem:[%s10] sm:$0x3] %v5924
    // Predicated region
    $region46: #{actor_critic_forward.1} parent=1 // pred_check
      _
    $region47: #{actor_critic_forward.1} parent=1 // pred_check_branch
      %5931 = sbr.rel (0) target = $region49
    $region48: #{actor_critic_forward.1} parent=1 // pred_region
      _
    $region49: #{actor_critic_forward.1} parent=1 // pred_fallthru
      _
    // Predicated region
    $region50: #{actor_critic_forward.1} parent=1 // pred_check
      _
    $region51: #{actor_critic_forward.1} parent=1 // pred_check_branch
      %5933 = sbr.rel (0) target = $region53
    $region52: #{actor_critic_forward.1} parent=1 // pred_region
      _
    $region53: #{actor_critic_forward.1} parent=1 // pred_fallthru
      _
    %5934 = vsyncpa [#allocation5], 1

</llo_original>
